<compile_context>
chip_gen: v6e
topology: v6e:2x2x1
jax: 0.10.0
libtpu: 0.0.40
codegen_flags: <defaults>
</compile_context>

<pallas_src>
import functools

import numpy as np
import jax
import jax.numpy as jnp
from jax.experimental import pallas as pl
from jax.experimental.pallas import tpu as pltpu


# -----------------------------------------------------------------------------
# In-kernel helpers
# -----------------------------------------------------------------------------
_SQRT1_2 = 0.7071067811865476


def _erf_approx(z):
    """erf via Abramowitz & Stegun 7.1.26 (|err| < 1.5e-7): exp + VPU polys."""
    a1, a2, a3, a4, a5 = (0.254829592, -0.284496736, 1.421413741,
                          -1.453152027, 1.061405429)
    pc = 0.3275911
    sgn = jnp.where(z >= 0.0, 1.0, -1.0)
    az = jnp.abs(z)
    t = 1.0 / (1.0 + pc * az)
    poly = ((((a5 * t + a4) * t + a3) * t + a2) * t + a1) * t
    return sgn * (1.0 - poly * jnp.exp(-az * az))


def _gelu(x):
    # Exact (erf-based) GELU, matching torch.nn.GELU default.
    return 0.5 * x * (1.0 + _erf_approx(x * _SQRT1_2))


def _layer_norm(x, gamma, beta, eps):
    mu = jnp.mean(x, axis=-1, keepdims=True)
    xc = x - mu
    var = jnp.mean(xc * xc, axis=-1, keepdims=True)
    return xc * jax.lax.rsqrt(var + eps) * gamma + beta


# -----------------------------------------------------------------------------
# Fused Block kernel: one grid step = TW windows (= TW*N tokens)
# -----------------------------------------------------------------------------
def _swin_block_kernel(
    # tiled over the window axis:
    x_ref,                                   # (TW, N, C) f32 windowed tokens
    # resident parameters (constant index maps):
    ln1_g_ref, ln1_b_ref,                    # (1, C) f32
    w_q_ref, w_k_ref, w_v_ref,               # (C, C) matmul dtype (scale in w_q)
    b_q_ref, b_k_ref, b_v_ref,               # (1, C) f32 (scale in b_q)
    bias_ref,                                # (H, N, N) f32 rel-pos bias
    w_proj_ref, b_proj_ref,                  # (C, C) mmd / (1, C) f32
    ln2_g_ref, ln2_b_ref,                    # (1, C) f32
    w_fc1_ref, b_fc1_ref,                    # (C, CH) mmd / (1, CH) f32
    w_fc2_ref, b_fc2_ref,                    # (CH, C) mmd / (1, C) f32
    # tiled output:
    o_ref,                                   # (TW, N, C) f32
    *, num_heads, head_dim, eps, matmul_dtype,
):
    TW, N, C = x_ref.shape
    H, D = num_heads, head_dim
    mmd = matmul_dtype
    T = TW * N

    x = x_ref[...].reshape(T, C)             # merge (window, token) -> rows

    # ---- LayerNorm 1 ---------------------------------------------------------
    h1 = _layer_norm(x, ln1_g_ref[...], ln1_b_ref[...], eps).astype(mmd)

    # ---- Q / K / V projections (independent, lane-contiguous outputs) --------
    # 1/sqrt(D) is already folded into w_q / b_q (prepare_block_params).
    q = (jnp.dot(h1, w_q_ref[...], preferred_element_type=jnp.float32)
         + b_q_ref[...]).astype(mmd)
    k = (jnp.dot(h1, w_k_ref[...], preferred_element_type=jnp.float32)
         + b_k_ref[...]).astype(mmd)
    v = (jnp.dot(h1, w_v_ref[...], preferred_element_type=jnp.float32)
         + b_v_ref[...]).astype(mmd)

    # ---- windowed attention; head merge folded into the output projection ----
    w_proj = w_proj_ref[...]
    attn_proj = jnp.zeros((T, C), jnp.float32)
    for h in range(H):
        sl = slice(h * D, (h + 1) * D)
        qh = q[:, sl].reshape(TW, N, D)
        kh = k[:, sl].reshape(TW, N, D)
        vh = v[:, sl].reshape(TW, N, D)
        # Scores for all windows of the tile in one batched einsum (single
        # leading batch dim = the Mosaic-supported dot_general form).
        s = jnp.einsum("bqd,bkd->bqk", qh, kh,
                       preferred_element_type=jnp.float32)       # (TW, N, N)
        s = s + bias_ref[h]                                       # rel-pos bias
        m = jnp.max(s, axis=-1, keepdims=True)
        p = jnp.exp(s - m)
        denom = jnp.sum(p, axis=-1, keepdims=True)
        oh = jnp.einsum("bqk,bkd->bqd", p.astype(mmd), vh,
                        preferred_element_type=jnp.float32)       # (TW, N, D)
        # Softmax 1/denominator on the EUP, folded into the smaller P@V output.
        oh = oh * pl.reciprocal(denom, approx=True)
        # Head merge folded into the projection: accumulate this head's
        # (T, D) @ (D, C) contribution (no jnp.concatenate lane shuffle).
        attn_proj = attn_proj + jnp.dot(
            oh.reshape(T, D).astype(mmd), w_proj[sl, :],
            preferred_element_type=jnp.float32)
    x1 = x + attn_proj + b_proj_ref[...]                          # residual 1

    # ---- LayerNorm 2 + MLP + residual 2 ---------------------------------------
    h2 = _layer_norm(x1, ln2_g_ref[...], ln2_b_ref[...], eps)
    f1 = jnp.dot(h2.astype(mmd), w_fc1_ref[...],
                 preferred_element_type=jnp.float32) + b_fc1_ref[...]
    f2 = jnp.dot(_gelu(f1).astype(mmd), w_fc2_ref[...],
                 preferred_element_type=jnp.float32) + b_fc2_ref[...]
    o_ref[...] = (x1 + f2).reshape(TW, N, C)


# -----------------------------------------------------------------------------
# Wrapper: grid over window tiles, resident parameters, explicit VMEM limit
# -----------------------------------------------------------------------------
def _windows_per_tile(num_windows, win_tokens, max_tokens):
    """Largest divisor of num_windows whose token count fits max_tokens."""
    tw = max(1, min(num_windows, max_tokens // max(win_tokens, 1)))
    while num_windows % tw:
        tw -= 1
    return tw


def swin_block_fused(xw, p, *, num_heads, tokens_per_tile=512):
    """xw: (num_windows, win_tokens, C) windowed tokens -> same-shape output."""
    BW, N, C = xw.shape
    H = num_heads
    D = C // H
    CH = p["w_fc1"].shape[1]
    mmd = p["w_q"].dtype

    TW = _windows_per_tile(BW, N, tokens_per_tile)
    grid = (BW // TW,)

    kernel = functools.partial(
        _swin_block_kernel,
        num_heads=H, head_dim=D, eps=1e-5, matmul_dtype=mmd)

    tok_spec = pl.BlockSpec((TW, N, C), lambda i: (i, 0, 0))

    def const(shape):               # grid-invariant parameter (fetched once)
        zeros = (0,) * len(shape)
        return pl.BlockSpec(shape, lambda i, _z=zeros: _z)

    # Explicit scoped-VMEM limit sized from the per-step footprint (v5e default
    # scoped limit is 16 MiB; keep well under v7x's 64 MiB physical VMEM).
    mm_bytes = jnp.dtype(mmd).itemsize
    tile_tokens = TW * N
    weight_bytes = (4 * C * C + 2 * C * CH) * mm_bytes \
        + (H * N * N + 8 * C + CH) * 4
    io_bytes = 2 * 2 * tile_tokens * C * 4                 # x + out, 2x buffered
    act_bytes = tile_tokens * (8 * C + 3 * CH) * 4 + 2 * TW * N * N * 4
    vmem_limit = int(min(max(2 * weight_bytes + io_bytes + 2 * act_bytes,
                             24 << 20), 48 << 20))

    return pl.pallas_call(
        kernel,
        out_shape=jax.ShapeDtypeStruct((BW, N, C), jnp.float32),
        grid=grid,
        in_specs=[
            tok_spec,                                       # x (windowed tokens)
            const((1, C)), const((1, C)),                   # LN1 gamma / beta
            const((C, C)), const((C, C)), const((C, C)),    # w_q / w_k / w_v
            const((1, C)), const((1, C)), const((1, C)),    # b_q / b_k / b_v
            const((H, N, N)),                               # rel-pos bias
            const((C, C)), const((1, C)),                   # proj weight / bias
            const((1, C)), const((1, C)),                   # LN2 gamma / beta
            const((C, CH)), const((1, CH)),                 # fc1 weight / bias
            const((CH, C)), const((1, C)),                  # fc2 weight / bias
        ],
        out_specs=tok_spec,
        compiler_params=pltpu.CompilerParams(
            dimension_semantics=("parallel",),              # megacore on v7x
            vmem_limit_bytes=vmem_limit),
    )(
        xw,
        p["ln1_g"], p["ln1_b"],
        p["w_q"], p["w_k"], p["w_v"],
        p["b_q"], p["b_k"], p["b_v"],
        p["bias"],
        p["w_proj"], p["b_proj"],
        p["ln2_g"], p["ln2_b"],
        p["w_fc1"], p["b_fc1"],
        p["w_fc2"], p["b_fc2"],
    )


# -----------------------------------------------------------------------------
# Window partition / reverse (mirrors space_to_depth / depth_to_space + reshape)
# -----------------------------------------------------------------------------
def window_partition(x, ws):
    B, Hs, Ws, C = x.shape
    x = x.reshape(B, Hs // ws, ws, Ws // ws, ws, C)
    x = jnp.transpose(x, (0, 1, 3, 2, 4, 5))
    return x.reshape(B * (Hs // ws) * (Ws // ws), ws * ws, C)


def window_reverse(xw, ws, B, Hs, Ws):
    C = xw.shape[-1]
    x = xw.reshape(B, Hs // ws, Ws // ws, ws, ws, C)
    x = jnp.transpose(x, (0, 1, 3, 2, 4, 5))
    return x.reshape(B, Hs, Ws, C)


def block_forward(prepared, x, *, num_heads, window_size, tokens_per_tile=512):
    """Block.forward with shift_size=0, mask=None, drop_path=0, downsample=None.

    All per-token ops (LN, residuals, MLP) commute with the window permutation,
    so the whole block is computed in windowed-token layout inside the kernel.
    """
    # TODO(synk): shifted-window attention mask (shift_size>0 / Block.get_mask),
    # DropPath with p>0 and the optional `downsample` module are not implemented.
    B, Hs, Ws, _ = x.shape
    xw = window_partition(x, window_size)                   # (BW, N, C)
    y = swin_block_fused(xw, prepared, num_heads=num_heads,
                         tokens_per_tile=tokens_per_tile)
    return window_reverse(y, window_size, B, Hs, Ws)


# -----------------------------------------------------------------------------
# Parameters, relative position index, and one-time kernel-param preparation
# -----------------------------------------------------------------------------
def make_rel_pos_index(window_size):
    grid = np.arange(window_size)
    pos = np.stack(np.meshgrid(grid, grid, indexing="ij"))
    pos = pos.reshape((2, -1))
    pos = pos[:, :, None] - pos[:, None, :]
    pos += window_size - 1
    pos[0] *= 2 * window_size - 1
    return pos.sum(0).astype(np.int32)   # torch keeps int64; int32 is lossless


def init_params(key, dim, num_heads, window_size, mlp_ratio=4):
    hidden = int(dim * mlp_ratio)
    num_pos = (2 * window_size - 1) ** 2 + 3
    ks = jax.random.split(key, 9)

    def nrm(k, shape):
        return 0.02 * jax.random.normal(k, shape, jnp.float32)

    return {
        "ln1_g": jnp.ones((dim,), jnp.float32),
        "ln1_b": jnp.zeros((dim,), jnp.float32),
        "w_qkv": nrm(ks[0], (dim, 3 * dim)),        # stored as y = x @ W + b
        "b_qkv": nrm(ks[1], (3 * dim,)),
        "rel_weight": nrm(ks[2], (num_heads, num_pos)),
        "w_proj": nrm(ks[3], (dim, dim)),
        "b_proj": nrm(ks[4], (dim,)),
        "ln2_g": jnp.ones((dim,), jnp.float32),
        "ln2_b": jnp.zeros((dim,), jnp.float32),
        "w_fc1": nrm(ks[5], (dim, hidden)),
        "b_fc1": nrm(ks[6], (hidden,)),
        "w_fc2": nrm(ks[7], (hidden, dim)),
        "b_fc2": nrm(ks[8], (dim,)),
    }


def prepare_block_params(params, *, num_heads, window_size,
                         matmul_dtype=jnp.bfloat16):
    """One-time (per parameter set) prep: split qkv into lane-contiguous
    w_q/w_k/w_v, fold 1/sqrt(D) into the q projection, gather the rel-pos bias
    to (H, N, N), cast the big matrices to the MXU operand dtype, reshape
    vectors to (1, C)/(1, CH)."""
    C = params["w_qkv"].shape[0]
    D = C // num_heads
    scale = D ** -0.5
    CH = params["w_fc1"].shape[1]
    f32 = jnp.float32
    mmd = matmul_dtype

    rel_index = jnp.asarray(make_rel_pos_index(window_size))      # (N, N)
    bias = params["rel_weight"][:, rel_index].astype(f32)         # (H, N, N)

    w_qkv, b_qkv = params["w_qkv"], params["b_qkv"]
    return {
        "ln1_g": params["ln1_g"].reshape(1, C).astype(f32),
        "ln1_b": params["ln1_b"].reshape(1, C).astype(f32),
        "w_q": (w_qkv[:, :C] * scale).astype(mmd),
        "w_k": w_qkv[:, C:2 * C].astype(mmd),
        "w_v": w_qkv[:, 2 * C:].astype(mmd),
        "b_q": (b_qkv[:C] * scale).reshape(1, C).astype(f32),
        "b_k": b_qkv[C:2 * C].reshape(1, C).astype(f32),
        "b_v": b_qkv[2 * C:].reshape(1, C).astype(f32),
        "bias": bias,
        "w_proj": params["w_proj"].astype(mmd),
        "b_proj": params["b_proj"].reshape(1, C).astype(f32),
        "ln2_g": params["ln2_g"].reshape(1, C).astype(f32),
        "ln2_b": params["ln2_b"].reshape(1, C).astype(f32),
        "w_fc1": params["w_fc1"].astype(mmd),
        "b_fc1": params["b_fc1"].reshape(1, CH).astype(f32),
        "w_fc2": params["w_fc2"].astype(mmd),
        "b_fc2": params["b_fc2"].reshape(1, C).astype(f32),
    }


# -----------------------------------------------------------------------------
# Pure-JAX reference (for the correctness check)
# -----------------------------------------------------------------------------
def block_reference(params, x, rel_index, num_heads, window_size):
    B, Hs, Ws, C = x.shape
    D = C // num_heads
    scale = D ** -0.5
    eps = 1e-5

    def ln(z, g, b):
        mu = jnp.mean(z, axis=-1, keepdims=True)
        var = jnp.mean((z - mu) ** 2, axis=-1, keepdims=True)
        return (z - mu) * jax.lax.rsqrt(var + eps) * g + b

    shortcut = x
    h = ln(x, params["ln1_g"], params["ln1_b"])
    xw = window_partition(h, window_size)                      # (BW, N, C)
    BW, N, _ = xw.shape
    qkv = xw @ params["w_qkv"] + params["b_qkv"]
    qkv = qkv.reshape(BW, N, 3, num_heads, D).transpose(2, 0, 3, 1, 4)
    q, k, v = qkv[0], qkv[1], qkv[2]
    attn = jnp.einsum("bhnd,bhmd->bhnm", q, k) * scale
    attn = attn + params["rel_weight"][:, rel_index][None]
    attn = jax.nn.softmax(attn, axis=-1)
    o = jnp.einsum("bhnm,bhmd->bhnd", attn, v)
    o = o.transpose(0, 2, 1, 3).reshape(BW, N, C)
    o = o @ params["w_proj"] + params["b_proj"]
    o = window_reverse(o, window_size, B, Hs, Ws)
    x1 = shortcut + o
    h2 = ln(x1, params["ln2_g"], params["ln2_b"])
    m = jax.nn.gelu(h2 @ params["w_fc1"] + params["b_fc1"], approximate=False)
    m = m @ params["w_fc2"] + params["b_fc2"]
    return x1 + m


# -----------------------------------------------------------------------------
if __name__ == "__main__":
    B = 2
    dim = 32
    num_heads = 4
    window_size = 4
    spatial = 8                     # 8x8 feature map -> 4 windows per image

    key = jax.random.PRNGKey(0)
    kx, kp = jax.random.split(key)
    x = jax.random.normal(kx, (B, spatial, spatial, dim), jnp.float32)
    params = init_params(kp, dim, num_heads, window_size)
    rel_index = jnp.asarray(make_rel_pos_index(window_size))   # (N, N) int32

    with jax.default_matmul_precision("highest"):
        ref = block_reference(params, x, rel_index, num_heads, window_size)
    ref = np.asarray(jax.block_until_ready(ref))

    # --- float32-MXU path on a multi-step grid (2 tiles x 4 windows): tight check.
    prep32 = prepare_block_params(params, num_heads=num_heads,
                                  window_size=window_size,
                                  matmul_dtype=jnp.float32)
    fwd32 = jax.jit(functools.partial(block_forward, num_heads=num_heads,
                                      window_size=window_size,
                                      tokens_per_tile=64))
    out32 = np.asarray(jax.block_until_ready(fwd32(prep32, x)))
    np.testing.assert_allclose(out32, ref, rtol=2e-3, atol=2e-3)

    # --- default bf16-MXU path (f32 accumulation), single tile: loose check.
    prep16 = prepare_block_params(params, num_heads=num_heads,
                                  window_size=window_size)     # bf16 default
    fwd16 = jax.jit(functools.partial(block_forward, num_heads=num_heads,
                                      window_size=window_size))
    out16 = np.asarray(jax.block_until_ready(fwd16(prep16, x)))
    np.testing.assert_allclose(out16, ref, rtol=3e-2, atol=3e-2)

    print("KERNEL_OK")
</pallas_src>

<mosaic_0001>
module attributes {stable_mosaic.version = 11 : i64} {
  func.func @_swin_block_kernel(%arg0: i32, %arg1: memref<4x16x32xf32, #tpu.memory_space<vmem>>, %arg2: memref<1x32xf32, #tpu.memory_space<vmem>>, %arg3: memref<1x32xf32, #tpu.memory_space<vmem>>, %arg4: memref<32x32xf32, #tpu.memory_space<vmem>>, %arg5: memref<32x32xf32, #tpu.memory_space<vmem>>, %arg6: memref<32x32xf32, #tpu.memory_space<vmem>>, %arg7: memref<1x32xf32, #tpu.memory_space<vmem>>, %arg8: memref<1x32xf32, #tpu.memory_space<vmem>>, %arg9: memref<1x32xf32, #tpu.memory_space<vmem>>, %arg10: memref<4x16x16xf32, #tpu.memory_space<vmem>>, %arg11: memref<32x32xf32, #tpu.memory_space<vmem>>, %arg12: memref<1x32xf32, #tpu.memory_space<vmem>>, %arg13: memref<1x32xf32, #tpu.memory_space<vmem>>, %arg14: memref<1x32xf32, #tpu.memory_space<vmem>>, %arg15: memref<32x128xf32, #tpu.memory_space<vmem>>, %arg16: memref<1x128xf32, #tpu.memory_space<vmem>>, %arg17: memref<128x32xf32, #tpu.memory_space<vmem>>, %arg18: memref<1x32xf32, #tpu.memory_space<vmem>>, %arg19: memref<4x16x32xf32, #tpu.memory_space<vmem>>) attributes {dimension_semantics = [#tpu.dimension_semantics<parallel>], iteration_bounds = array<i64: 2>, scalar_prefetch = 0 : i64, scratch_operands = 0 : i64, tpu.core_type = #tpu.core_type<tc>, window_params = [{transform_indices = @transform_0, window_bounds = array<i64: 4, 16, 32>}, {pipeline_mode = #tpu.pipeline_mode<synchronous>, transform_indices = @transform_1, window_bounds = array<i64: 1, 32>}, {pipeline_mode = #tpu.pipeline_mode<synchronous>, transform_indices = @transform_2, window_bounds = array<i64: 1, 32>}, {pipeline_mode = #tpu.pipeline_mode<synchronous>, transform_indices = @transform_3, window_bounds = array<i64: 32, 32>}, {pipeline_mode = #tpu.pipeline_mode<synchronous>, transform_indices = @transform_4, window_bounds = array<i64: 32, 32>}, {pipeline_mode = #tpu.pipeline_mode<synchronous>, transform_indices = @transform_5, window_bounds = array<i64: 32, 32>}, {pipeline_mode = #tpu.pipeline_mode<synchronous>, transform_indices = @transform_6, window_bounds = array<i64: 1, 32>}, {pipeline_mode = #tpu.pipeline_mode<synchronous>, transform_indices = @transform_7, window_bounds = array<i64: 1, 32>}, {pipeline_mode = #tpu.pipeline_mode<synchronous>, transform_indices = @transform_8, window_bounds = array<i64: 1, 32>}, {pipeline_mode = #tpu.pipeline_mode<synchronous>, transform_indices = @transform_9, window_bounds = array<i64: 4, 16, 16>}, {pipeline_mode = #tpu.pipeline_mode<synchronous>, transform_indices = @transform_10, window_bounds = array<i64: 32, 32>}, {pipeline_mode = #tpu.pipeline_mode<synchronous>, transform_indices = @transform_11, window_bounds = array<i64: 1, 32>}, {pipeline_mode = #tpu.pipeline_mode<synchronous>, transform_indices = @transform_12, window_bounds = array<i64: 1, 32>}, {pipeline_mode = #tpu.pipeline_mode<synchronous>, transform_indices = @transform_13, window_bounds = array<i64: 1, 32>}, {pipeline_mode = #tpu.pipeline_mode<synchronous>, transform_indices = @transform_14, window_bounds = array<i64: 32, 128>}, {pipeline_mode = #tpu.pipeline_mode<synchronous>, transform_indices = @transform_15, window_bounds = array<i64: 1, 128>}, {pipeline_mode = #tpu.pipeline_mode<synchronous>, transform_indices = @transform_16, window_bounds = array<i64: 128, 32>}, {pipeline_mode = #tpu.pipeline_mode<synchronous>, transform_indices = @transform_17, window_bounds = array<i64: 1, 32>}, {transform_indices = @transform_18, window_bounds = array<i64: 4, 16, 32>}]} {
    %c0 = arith.constant 0 : index
    %c0_0 = arith.constant 0 : index
    %c0_1 = arith.constant 0 : index
    %0 = vector.load %arg1[%c0, %c0_0, %c0_1] : memref<4x16x32xf32, #tpu.memory_space<vmem>>, vector<4x16x32xf32>
    %1 = vector.shape_cast %0 : vector<4x16x32xf32> to vector<64x32xf32>
    %c0_2 = arith.constant 0 : index
    %c0_3 = arith.constant 0 : index
    %2 = vector.load %arg2[%c0_2, %c0_3] : memref<1x32xf32, #tpu.memory_space<vmem>>, vector<1x32xf32>
    %c0_4 = arith.constant 0 : index
    %c0_5 = arith.constant 0 : index
    %3 = vector.load %arg3[%c0_4, %c0_5] : memref<1x32xf32, #tpu.memory_space<vmem>>, vector<1x32xf32>
    %cst = arith.constant dense<0.000000e+00> : vector<64xf32>
    %4 = vector.multi_reduction <add>, %1, %cst [1] : vector<64x32xf32> to vector<64xf32>
    %5 = vector.shape_cast %4 : vector<64xf32> to vector<64x1xf32>
    %cst_6 = arith.constant 3.200000e+01 : f32
    %6 = vector.broadcast %cst_6 : f32 to vector<64x1xf32>
    %7 = arith.divf %5, %6 : vector<64x1xf32>
    %8 = vector.broadcast %7 : vector<64x1xf32> to vector<64x32xf32>
    %9 = arith.subf %1, %8 : vector<64x32xf32>
    %10 = arith.mulf %9, %9 : vector<64x32xf32>
    %cst_7 = arith.constant dense<0.000000e+00> : vector<64xf32>
    %11 = vector.multi_reduction <add>, %10, %cst_7 [1] : vector<64x32xf32> to vector<64xf32>
    %12 = vector.shape_cast %11 : vector<64xf32> to vector<64x1xf32>
    %cst_8 = arith.constant 3.200000e+01 : f32
    %13 = vector.broadcast %cst_8 : f32 to vector<64x1xf32>
    %14 = arith.divf %12, %13 : vector<64x1xf32>
    %cst_9 = arith.constant 9.99999974E-6 : f32
    %15 = vector.broadcast %cst_9 : f32 to vector<64x1xf32>
    %16 = arith.addf %14, %15 : vector<64x1xf32>
    %17 = math.rsqrt %16 : vector<64x1xf32>
    %18 = vector.broadcast %17 : vector<64x1xf32> to vector<64x32xf32>
    %19 = arith.mulf %9, %18 : vector<64x32xf32>
    %20 = vector.broadcast %2 : vector<1x32xf32> to vector<64x32xf32>
    %21 = arith.mulf %19, %20 : vector<64x32xf32>
    %22 = vector.broadcast %3 : vector<1x32xf32> to vector<64x32xf32>
    %23 = arith.addf %21, %22 : vector<64x32xf32>
    %c0_10 = arith.constant 0 : index
    %c0_11 = arith.constant 0 : index
    %24 = vector.load %arg4[%c0_10, %c0_11] : memref<32x32xf32, #tpu.memory_space<vmem>>, vector<32x32xf32>
    %cst_12 = arith.constant dense<0.000000e+00> : vector<64x32xf32>
    %25 = tpu.matmul %23, %24, %cst_12 {dimension_numbers = #tpu.dot_dimension_numbers<[1], [0], [0], [1], [0, 0, 1, 1], [], []>} : vector<64x32xf32>, vector<32x32xf32>, vector<64x32xf32> -> vector<64x32xf32>
    %c0_13 = arith.constant 0 : index
    %c0_14 = arith.constant 0 : index
    %26 = vector.load %arg7[%c0_13, %c0_14] : memref<1x32xf32, #tpu.memory_space<vmem>>, vector<1x32xf32>
    %27 = vector.broadcast %26 : vector<1x32xf32> to vector<64x32xf32>
    %28 = arith.addf %25, %27 : vector<64x32xf32>
    %c0_15 = arith.constant 0 : index
    %c0_16 = arith.constant 0 : index
    %29 = vector.load %arg5[%c0_15, %c0_16] : memref<32x32xf32, #tpu.memory_space<vmem>>, vector<32x32xf32>
    %cst_17 = arith.constant dense<0.000000e+00> : vector<64x32xf32>
    %30 = tpu.matmul %23, %29, %cst_17 {dimension_numbers = #tpu.dot_dimension_numbers<[1], [0], [0], [1], [0, 0, 1, 1], [], []>} : vector<64x32xf32>, vector<32x32xf32>, vector<64x32xf32> -> vector<64x32xf32>
    %c0_18 = arith.constant 0 : index
    %c0_19 = arith.constant 0 : index
    %31 = vector.load %arg8[%c0_18, %c0_19] : memref<1x32xf32, #tpu.memory_space<vmem>>, vector<1x32xf32>
    %32 = vector.broadcast %31 : vector<1x32xf32> to vector<64x32xf32>
    %33 = arith.addf %30, %32 : vector<64x32xf32>
    %c0_20 = arith.constant 0 : index
    %c0_21 = arith.constant 0 : index
    %34 = vector.load %arg6[%c0_20, %c0_21] : memref<32x32xf32, #tpu.memory_space<vmem>>, vector<32x32xf32>
    %cst_22 = arith.constant dense<0.000000e+00> : vector<64x32xf32>
    %35 = tpu.matmul %23, %34, %cst_22 {dimension_numbers = #tpu.dot_dimension_numbers<[1], [0], [0], [1], [0, 0, 1, 1], [], []>} : vector<64x32xf32>, vector<32x32xf32>, vector<64x32xf32> -> vector<64x32xf32>
    %c0_23 = arith.constant 0 : index
    %c0_24 = arith.constant 0 : index
    %36 = vector.load %arg9[%c0_23, %c0_24] : memref<1x32xf32, #tpu.memory_space<vmem>>, vector<1x32xf32>
    %37 = vector.broadcast %36 : vector<1x32xf32> to vector<64x32xf32>
    %38 = arith.addf %35, %37 : vector<64x32xf32>
    %c0_25 = arith.constant 0 : index
    %c0_26 = arith.constant 0 : index
    %39 = vector.load %arg11[%c0_25, %c0_26] : memref<32x32xf32, #tpu.memory_space<vmem>>, vector<32x32xf32>
    %cst_27 = arith.constant 0.000000e+00 : f32
    %40 = vector.broadcast %cst_27 : f32 to vector<64x32xf32>
    %41 = vector.extract_strided_slice %28 {offsets = [0, 0], sizes = [64, 8], strides = [1, 1]} : vector<64x32xf32> to vector<64x8xf32>
    %42 = vector.shape_cast %41 : vector<64x8xf32> to vector<4x16x8xf32>
    %43 = vector.extract_strided_slice %33 {offsets = [0, 0], sizes = [64, 8], strides = [1, 1]} : vector<64x32xf32> to vector<64x8xf32>
    %44 = vector.shape_cast %43 : vector<64x8xf32> to vector<4x16x8xf32>
    %45 = vector.extract_strided_slice %38 {offsets = [0, 0], sizes = [64, 8], strides = [1, 1]} : vector<64x32xf32> to vector<64x8xf32>
    %46 = vector.shape_cast %45 : vector<64x8xf32> to vector<4x16x8xf32>
    "tpu.trace_start"() <{level = 10 : i32, message = "bqd,bkd->bqk"}> : () -> ()
    %cst_28 = arith.constant dense<0.000000e+00> : vector<4x16x16xf32>
    %47 = tpu.matmul %42, %44, %cst_28 {dimension_numbers = #tpu.dot_dimension_numbers<[2], [2], [1], [1], [0, 0, 0, 1, 1, 1], [0], [0]>} : vector<4x16x8xf32>, vector<4x16x8xf32>, vector<4x16x16xf32> -> vector<4x16x16xf32>
    "tpu.trace_stop"() : () -> ()
    %c0_29 = arith.constant 0 : index
    %c0_30 = arith.constant 0 : index
    %c0_31 = arith.constant 0 : index
    %48 = vector.load %arg10[%c0_29, %c0_30, %c0_31] : memref<4x16x16xf32, #tpu.memory_space<vmem>>, vector<1x16x16xf32>
    %49 = vector.shape_cast %48 : vector<1x16x16xf32> to vector<16x16xf32>
    %50 = vector.shape_cast %49 : vector<16x16xf32> to vector<1x16x16xf32>
    %51 = vector.broadcast %50 : vector<1x16x16xf32> to vector<4x16x16xf32>
    %52 = arith.addf %47, %51 : vector<4x16x16xf32>
    %cst_32 = arith.constant dense<0xFF800000> : vector<4x16xf32>
    %53 = vector.multi_reduction <maximumf>, %52, %cst_32 [2] : vector<4x16x16xf32> to vector<4x16xf32>
    %54 = vector.shape_cast %53 : vector<4x16xf32> to vector<4x16x1xf32>
    %55 = vector.broadcast %54 : vector<4x16x1xf32> to vector<4x16x16xf32>
    %56 = arith.subf %52, %55 : vector<4x16x16xf32>
    %57 = math.exp %56 : vector<4x16x16xf32>
    %cst_33 = arith.constant dense<0.000000e+00> : vector<4x16xf32>
    %58 = vector.multi_reduction <add>, %57, %cst_33 [2] : vector<4x16x16xf32> to vector<4x16xf32>
    %59 = vector.shape_cast %58 : vector<4x16xf32> to vector<4x16x1xf32>
    "tpu.trace_start"() <{level = 10 : i32, message = "bqk,bkd->bqd"}> : () -> ()
    %cst_34 = arith.constant dense<0.000000e+00> : vector<4x16x8xf32>
    %60 = tpu.matmul %57, %46, %cst_34 {dimension_numbers = #tpu.dot_dimension_numbers<[2], [1], [1], [2], [0, 0, 0, 1, 1, 2], [0], [0]>} : vector<4x16x16xf32>, vector<4x16x8xf32>, vector<4x16x8xf32> -> vector<4x16x8xf32>
    "tpu.trace_stop"() : () -> ()
    %61 = tpu.reciprocal %59 {approx = true} : vector<4x16x1xf32> -> vector<4x16x1xf32>
    %62 = vector.broadcast %61 : vector<4x16x1xf32> to vector<4x16x8xf32>
    %63 = arith.mulf %60, %62 : vector<4x16x8xf32>
    %64 = vector.shape_cast %63 : vector<4x16x8xf32> to vector<64x8xf32>
    %65 = vector.extract_strided_slice %39 {offsets = [0, 0], sizes = [8, 32], strides = [1, 1]} : vector<32x32xf32> to vector<8x32xf32>
    %cst_35 = arith.constant dense<0.000000e+00> : vector<64x32xf32>
    %66 = tpu.matmul %64, %65, %cst_35 {dimension_numbers = #tpu.dot_dimension_numbers<[1], [0], [0], [1], [0, 0, 1, 1], [], []>} : vector<64x8xf32>, vector<8x32xf32>, vector<64x32xf32> -> vector<64x32xf32>
    %67 = arith.addf %40, %66 : vector<64x32xf32>
    %68 = vector.extract_strided_slice %28 {offsets = [0, 8], sizes = [64, 8], strides = [1, 1]} : vector<64x32xf32> to vector<64x8xf32>
    %69 = vector.shape_cast %68 : vector<64x8xf32> to vector<4x16x8xf32>
    %70 = vector.extract_strided_slice %33 {offsets = [0, 8], sizes = [64, 8], strides = [1, 1]} : vector<64x32xf32> to vector<64x8xf32>
    %71 = vector.shape_cast %70 : vector<64x8xf32> to vector<4x16x8xf32>
    %72 = vector.extract_strided_slice %38 {offsets = [0, 8], sizes = [64, 8], strides = [1, 1]} : vector<64x32xf32> to vector<64x8xf32>
    %73 = vector.shape_cast %72 : vector<64x8xf32> to vector<4x16x8xf32>
    "tpu.trace_start"() <{level = 10 : i32, message = "bqd,bkd->bqk"}> : () -> ()
    %cst_36 = arith.constant dense<0.000000e+00> : vector<4x16x16xf32>
    %74 = tpu.matmul %69, %71, %cst_36 {dimension_numbers = #tpu.dot_dimension_numbers<[2], [2], [1], [1], [0, 0, 0, 1, 1, 1], [0], [0]>} : vector<4x16x8xf32>, vector<4x16x8xf32>, vector<4x16x16xf32> -> vector<4x16x16xf32>
    "tpu.trace_stop"() : () -> ()
    %c1 = arith.constant 1 : index
    %c0_37 = arith.constant 0 : index
    %c0_38 = arith.constant 0 : index
    %75 = vector.load %arg10[%c1, %c0_37, %c0_38] : memref<4x16x16xf32, #tpu.memory_space<vmem>>, vector<1x16x16xf32>
    %76 = vector.shape_cast %75 : vector<1x16x16xf32> to vector<16x16xf32>
    %77 = vector.shape_cast %76 : vector<16x16xf32> to vector<1x16x16xf32>
    %78 = vector.broadcast %77 : vector<1x16x16xf32> to vector<4x16x16xf32>
    %79 = arith.addf %74, %78 : vector<4x16x16xf32>
    %cst_39 = arith.constant dense<0xFF800000> : vector<4x16xf32>
    %80 = vector.multi_reduction <maximumf>, %79, %cst_39 [2] : vector<4x16x16xf32> to vector<4x16xf32>
    %81 = vector.shape_cast %80 : vector<4x16xf32> to vector<4x16x1xf32>
    %82 = vector.broadcast %81 : vector<4x16x1xf32> to vector<4x16x16xf32>
    %83 = arith.subf %79, %82 : vector<4x16x16xf32>
    %84 = math.exp %83 : vector<4x16x16xf32>
    %cst_40 = arith.constant dense<0.000000e+00> : vector<4x16xf32>
    %85 = vector.multi_reduction <add>, %84, %cst_40 [2] : vector<4x16x16xf32> to vector<4x16xf32>
    %86 = vector.shape_cast %85 : vector<4x16xf32> to vector<4x16x1xf32>
    "tpu.trace_start"() <{level = 10 : i32, message = "bqk,bkd->bqd"}> : () -> ()
    %cst_41 = arith.constant dense<0.000000e+00> : vector<4x16x8xf32>
    %87 = tpu.matmul %84, %73, %cst_41 {dimension_numbers = #tpu.dot_dimension_numbers<[2], [1], [1], [2], [0, 0, 0, 1, 1, 2], [0], [0]>} : vector<4x16x16xf32>, vector<4x16x8xf32>, vector<4x16x8xf32> -> vector<4x16x8xf32>
    "tpu.trace_stop"() : () -> ()
    %88 = tpu.reciprocal %86 {approx = true} : vector<4x16x1xf32> -> vector<4x16x1xf32>
    %89 = vector.broadcast %88 : vector<4x16x1xf32> to vector<4x16x8xf32>
    %90 = arith.mulf %87, %89 : vector<4x16x8xf32>
    %91 = vector.shape_cast %90 : vector<4x16x8xf32> to vector<64x8xf32>
    %92 = vector.extract_strided_slice %39 {offsets = [8, 0], sizes = [8, 32], strides = [1, 1]} : vector<32x32xf32> to vector<8x32xf32>
    %cst_42 = arith.constant dense<0.000000e+00> : vector<64x32xf32>
    %93 = tpu.matmul %91, %92, %cst_42 {dimension_numbers = #tpu.dot_dimension_numbers<[1], [0], [0], [1], [0, 0, 1, 1], [], []>} : vector<64x8xf32>, vector<8x32xf32>, vector<64x32xf32> -> vector<64x32xf32>
    %94 = arith.addf %67, %93 : vector<64x32xf32>
    %95 = vector.extract_strided_slice %28 {offsets = [0, 16], sizes = [64, 8], strides = [1, 1]} : vector<64x32xf32> to vector<64x8xf32>
    %96 = vector.shape_cast %95 : vector<64x8xf32> to vector<4x16x8xf32>
    %97 = vector.extract_strided_slice %33 {offsets = [0, 16], sizes = [64, 8], strides = [1, 1]} : vector<64x32xf32> to vector<64x8xf32>
    %98 = vector.shape_cast %97 : vector<64x8xf32> to vector<4x16x8xf32>
    %99 = vector.extract_strided_slice %38 {offsets = [0, 16], sizes = [64, 8], strides = [1, 1]} : vector<64x32xf32> to vector<64x8xf32>
    %100 = vector.shape_cast %99 : vector<64x8xf32> to vector<4x16x8xf32>
    "tpu.trace_start"() <{level = 10 : i32, message = "bqd,bkd->bqk"}> : () -> ()
    %cst_43 = arith.constant dense<0.000000e+00> : vector<4x16x16xf32>
    %101 = tpu.matmul %96, %98, %cst_43 {dimension_numbers = #tpu.dot_dimension_numbers<[2], [2], [1], [1], [0, 0, 0, 1, 1, 1], [0], [0]>} : vector<4x16x8xf32>, vector<4x16x8xf32>, vector<4x16x16xf32> -> vector<4x16x16xf32>
    "tpu.trace_stop"() : () -> ()
    %c2 = arith.constant 2 : index
    %c0_44 = arith.constant 0 : index
    %c0_45 = arith.constant 0 : index
    %102 = vector.load %arg10[%c2, %c0_44, %c0_45] : memref<4x16x16xf32, #tpu.memory_space<vmem>>, vector<1x16x16xf32>
    %103 = vector.shape_cast %102 : vector<1x16x16xf32> to vector<16x16xf32>
    %104 = vector.shape_cast %103 : vector<16x16xf32> to vector<1x16x16xf32>
    %105 = vector.broadcast %104 : vector<1x16x16xf32> to vector<4x16x16xf32>
    %106 = arith.addf %101, %105 : vector<4x16x16xf32>
    %cst_46 = arith.constant dense<0xFF800000> : vector<4x16xf32>
    %107 = vector.multi_reduction <maximumf>, %106, %cst_46 [2] : vector<4x16x16xf32> to vector<4x16xf32>
    %108 = vector.shape_cast %107 : vector<4x16xf32> to vector<4x16x1xf32>
    %109 = vector.broadcast %108 : vector<4x16x1xf32> to vector<4x16x16xf32>
    %110 = arith.subf %106, %109 : vector<4x16x16xf32>
    %111 = math.exp %110 : vector<4x16x16xf32>
    %cst_47 = arith.constant dense<0.000000e+00> : vector<4x16xf32>
    %112 = vector.multi_reduction <add>, %111, %cst_47 [2] : vector<4x16x16xf32> to vector<4x16xf32>
    %113 = vector.shape_cast %112 : vector<4x16xf32> to vector<4x16x1xf32>
    "tpu.trace_start"() <{level = 10 : i32, message = "bqk,bkd->bqd"}> : () -> ()
    %cst_48 = arith.constant dense<0.000000e+00> : vector<4x16x8xf32>
    %114 = tpu.matmul %111, %100, %cst_48 {dimension_numbers = #tpu.dot_dimension_numbers<[2], [1], [1], [2], [0, 0, 0, 1, 1, 2], [0], [0]>} : vector<4x16x16xf32>, vector<4x16x8xf32>, vector<4x16x8xf32> -> vector<4x16x8xf32>
    "tpu.trace_stop"() : () -> ()
    %115 = tpu.reciprocal %113 {approx = true} : vector<4x16x1xf32> -> vector<4x16x1xf32>
    %116 = vector.broadcast %115 : vector<4x16x1xf32> to vector<4x16x8xf32>
    %117 = arith.mulf %114, %116 : vector<4x16x8xf32>
    %118 = vector.shape_cast %117 : vector<4x16x8xf32> to vector<64x8xf32>
    %119 = vector.extract_strided_slice %39 {offsets = [16, 0], sizes = [8, 32], strides = [1, 1]} : vector<32x32xf32> to vector<8x32xf32>
    %cst_49 = arith.constant dense<0.000000e+00> : vector<64x32xf32>
    %120 = tpu.matmul %118, %119, %cst_49 {dimension_numbers = #tpu.dot_dimension_numbers<[1], [0], [0], [1], [0, 0, 1, 1], [], []>} : vector<64x8xf32>, vector<8x32xf32>, vector<64x32xf32> -> vector<64x32xf32>
    %121 = arith.addf %94, %120 : vector<64x32xf32>
    %122 = vector.extract_strided_slice %28 {offsets = [0, 24], sizes = [64, 8], strides = [1, 1]} : vector<64x32xf32> to vector<64x8xf32>
    %123 = vector.shape_cast %122 : vector<64x8xf32> to vector<4x16x8xf32>
    %124 = vector.extract_strided_slice %33 {offsets = [0, 24], sizes = [64, 8], strides = [1, 1]} : vector<64x32xf32> to vector<64x8xf32>
    %125 = vector.shape_cast %124 : vector<64x8xf32> to vector<4x16x8xf32>
    %126 = vector.extract_strided_slice %38 {offsets = [0, 24], sizes = [64, 8], strides = [1, 1]} : vector<64x32xf32> to vector<64x8xf32>
    %127 = vector.shape_cast %126 : vector<64x8xf32> to vector<4x16x8xf32>
    "tpu.trace_start"() <{level = 10 : i32, message = "bqd,bkd->bqk"}> : () -> ()
    %cst_50 = arith.constant dense<0.000000e+00> : vector<4x16x16xf32>
    %128 = tpu.matmul %123, %125, %cst_50 {dimension_numbers = #tpu.dot_dimension_numbers<[2], [2], [1], [1], [0, 0, 0, 1, 1, 1], [0], [0]>} : vector<4x16x8xf32>, vector<4x16x8xf32>, vector<4x16x16xf32> -> vector<4x16x16xf32>
    "tpu.trace_stop"() : () -> ()
    %c3 = arith.constant 3 : index
    %c0_51 = arith.constant 0 : index
    %c0_52 = arith.constant 0 : index
    %129 = vector.load %arg10[%c3, %c0_51, %c0_52] : memref<4x16x16xf32, #tpu.memory_space<vmem>>, vector<1x16x16xf32>
    %130 = vector.shape_cast %129 : vector<1x16x16xf32> to vector<16x16xf32>
    %131 = vector.shape_cast %130 : vector<16x16xf32> to vector<1x16x16xf32>
    %132 = vector.broadcast %131 : vector<1x16x16xf32> to vector<4x16x16xf32>
    %133 = arith.addf %128, %132 : vector<4x16x16xf32>
    %cst_53 = arith.constant dense<0xFF800000> : vector<4x16xf32>
    %134 = vector.multi_reduction <maximumf>, %133, %cst_53 [2] : vector<4x16x16xf32> to vector<4x16xf32>
    %135 = vector.shape_cast %134 : vector<4x16xf32> to vector<4x16x1xf32>
    %136 = vector.broadcast %135 : vector<4x16x1xf32> to vector<4x16x16xf32>
    %137 = arith.subf %133, %136 : vector<4x16x16xf32>
    %138 = math.exp %137 : vector<4x16x16xf32>
    %cst_54 = arith.constant dense<0.000000e+00> : vector<4x16xf32>
    %139 = vector.multi_reduction <add>, %138, %cst_54 [2] : vector<4x16x16xf32> to vector<4x16xf32>
    %140 = vector.shape_cast %139 : vector<4x16xf32> to vector<4x16x1xf32>
    "tpu.trace_start"() <{level = 10 : i32, message = "bqk,bkd->bqd"}> : () -> ()
    %cst_55 = arith.constant dense<0.000000e+00> : vector<4x16x8xf32>
    %141 = tpu.matmul %138, %127, %cst_55 {dimension_numbers = #tpu.dot_dimension_numbers<[2], [1], [1], [2], [0, 0, 0, 1, 1, 2], [0], [0]>} : vector<4x16x16xf32>, vector<4x16x8xf32>, vector<4x16x8xf32> -> vector<4x16x8xf32>
    "tpu.trace_stop"() : () -> ()
    %142 = tpu.reciprocal %140 {approx = true} : vector<4x16x1xf32> -> vector<4x16x1xf32>
    %143 = vector.broadcast %142 : vector<4x16x1xf32> to vector<4x16x8xf32>
    %144 = arith.mulf %141, %143 : vector<4x16x8xf32>
    %145 = vector.shape_cast %144 : vector<4x16x8xf32> to vector<64x8xf32>
    %146 = vector.extract_strided_slice %39 {offsets = [24, 0], sizes = [8, 32], strides = [1, 1]} : vector<32x32xf32> to vector<8x32xf32>
    %cst_56 = arith.constant dense<0.000000e+00> : vector<64x32xf32>
    %147 = tpu.matmul %145, %146, %cst_56 {dimension_numbers = #tpu.dot_dimension_numbers<[1], [0], [0], [1], [0, 0, 1, 1], [], []>} : vector<64x8xf32>, vector<8x32xf32>, vector<64x32xf32> -> vector<64x32xf32>
    %148 = arith.addf %121, %147 : vector<64x32xf32>
    %149 = arith.addf %1, %148 : vector<64x32xf32>
    %c0_57 = arith.constant 0 : index
    %c0_58 = arith.constant 0 : index
    %150 = vector.load %arg12[%c0_57, %c0_58] : memref<1x32xf32, #tpu.memory_space<vmem>>, vector<1x32xf32>
    %151 = vector.broadcast %150 : vector<1x32xf32> to vector<64x32xf32>
    %152 = arith.addf %149, %151 : vector<64x32xf32>
    %c0_59 = arith.constant 0 : index
    %c0_60 = arith.constant 0 : index
    %153 = vector.load %arg13[%c0_59, %c0_60] : memref<1x32xf32, #tpu.memory_space<vmem>>, vector<1x32xf32>
    %c0_61 = arith.constant 0 : index
    %c0_62 = arith.constant 0 : index
    %154 = vector.load %arg14[%c0_61, %c0_62] : memref<1x32xf32, #tpu.memory_space<vmem>>, vector<1x32xf32>
    %cst_63 = arith.constant dense<0.000000e+00> : vector<64xf32>
    %155 = vector.multi_reduction <add>, %152, %cst_63 [1] : vector<64x32xf32> to vector<64xf32>
    %156 = vector.shape_cast %155 : vector<64xf32> to vector<64x1xf32>
    %cst_64 = arith.constant 3.200000e+01 : f32
    %157 = vector.broadcast %cst_64 : f32 to vector<64x1xf32>
    %158 = arith.divf %156, %157 : vector<64x1xf32>
    %159 = vector.broadcast %158 : vector<64x1xf32> to vector<64x32xf32>
    %160 = arith.subf %152, %159 : vector<64x32xf32>
    %161 = arith.mulf %160, %160 : vector<64x32xf32>
    %cst_65 = arith.constant dense<0.000000e+00> : vector<64xf32>
    %162 = vector.multi_reduction <add>, %161, %cst_65 [1] : vector<64x32xf32> to vector<64xf32>
    %163 = vector.shape_cast %162 : vector<64xf32> to vector<64x1xf32>
    %cst_66 = arith.constant 3.200000e+01 : f32
    %164 = vector.broadcast %cst_66 : f32 to vector<64x1xf32>
    %165 = arith.divf %163, %164 : vector<64x1xf32>
    %cst_67 = arith.constant 9.99999974E-6 : f32
    %166 = vector.broadcast %cst_67 : f32 to vector<64x1xf32>
    %167 = arith.addf %165, %166 : vector<64x1xf32>
    %168 = math.rsqrt %167 : vector<64x1xf32>
    %169 = vector.broadcast %168 : vector<64x1xf32> to vector<64x32xf32>
    %170 = arith.mulf %160, %169 : vector<64x32xf32>
    %171 = vector.broadcast %153 : vector<1x32xf32> to vector<64x32xf32>
    %172 = arith.mulf %170, %171 : vector<64x32xf32>
    %173 = vector.broadcast %154 : vector<1x32xf32> to vector<64x32xf32>
    %174 = arith.addf %172, %173 : vector<64x32xf32>
    %c0_68 = arith.constant 0 : index
    %c0_69 = arith.constant 0 : index
    %175 = vector.load %arg15[%c0_68, %c0_69] : memref<32x128xf32, #tpu.memory_space<vmem>>, vector<32x128xf32>
    %cst_70 = arith.constant dense<0.000000e+00> : vector<64x128xf32>
    %176 = tpu.matmul %174, %175, %cst_70 {dimension_numbers = #tpu.dot_dimension_numbers<[1], [0], [0], [1], [0, 0, 1, 1], [], []>} : vector<64x32xf32>, vector<32x128xf32>, vector<64x128xf32> -> vector<64x128xf32>
    %c0_71 = arith.constant 0 : index
    %c0_72 = arith.constant 0 : index
    %177 = vector.load %arg16[%c0_71, %c0_72] : memref<1x128xf32, #tpu.memory_space<vmem>>, vector<1x128xf32>
    %178 = vector.broadcast %177 : vector<1x128xf32> to vector<64x128xf32>
    %179 = arith.addf %176, %178 : vector<64x128xf32>
    %cst_73 = arith.constant 5.000000e-01 : f32
    %180 = vector.broadcast %cst_73 : f32 to vector<64x128xf32>
    %181 = arith.mulf %180, %179 : vector<64x128xf32>
    %cst_74 = arith.constant 0.707106769 : f32
    %182 = vector.broadcast %cst_74 : f32 to vector<64x128xf32>
    %183 = arith.mulf %179, %182 : vector<64x128xf32>
    %cst_75 = arith.constant 0.000000e+00 : f32
    %184 = vector.broadcast %cst_75 : f32 to vector<64x128xf32>
    %185 = arith.cmpf oge, %183, %184 : vector<64x128xf32>
    %cst_76 = arith.constant 1.000000e+00 : f32
    %cst_77 = arith.constant -1.000000e+00 : f32
    %186 = vector.broadcast %cst_76 : f32 to vector<64x128xf32>
    %187 = vector.broadcast %cst_77 : f32 to vector<64x128xf32>
    %188 = arith.select %185, %186, %187 : vector<64x128xi1>, vector<64x128xf32>
    %189 = math.absf %183 : vector<64x128xf32>
    %cst_78 = arith.constant 0.327591091 : f32
    %190 = vector.broadcast %cst_78 : f32 to vector<64x128xf32>
    %191 = arith.mulf %190, %189 : vector<64x128xf32>
    %cst_79 = arith.constant 1.000000e+00 : f32
    %192 = vector.broadcast %cst_79 : f32 to vector<64x128xf32>
    %193 = arith.addf %192, %191 : vector<64x128xf32>
    %cst_80 = arith.constant 1.000000e+00 : f32
    %194 = vector.broadcast %cst_80 : f32 to vector<64x128xf32>
    %195 = arith.divf %194, %193 : vector<64x128xf32>
    %cst_81 = arith.constant 1.06140542 : f32
    %196 = vector.broadcast %cst_81 : f32 to vector<64x128xf32>
    %197 = arith.mulf %196, %195 : vector<64x128xf32>
    %cst_82 = arith.constant -1.45315206 : f32
    %198 = vector.broadcast %cst_82 : f32 to vector<64x128xf32>
    %199 = arith.addf %197, %198 : vector<64x128xf32>
    %200 = arith.mulf %199, %195 : vector<64x128xf32>
    %cst_83 = arith.constant 1.42141378 : f32
    %201 = vector.broadcast %cst_83 : f32 to vector<64x128xf32>
    %202 = arith.addf %200, %201 : vector<64x128xf32>
    %203 = arith.mulf %202, %195 : vector<64x128xf32>
    %cst_84 = arith.constant -0.284496725 : f32
    %204 = vector.broadcast %cst_84 : f32 to vector<64x128xf32>
    %205 = arith.addf %203, %204 : vector<64x128xf32>
    %206 = arith.mulf %205, %195 : vector<64x128xf32>
    %cst_85 = arith.constant 0.254829586 : f32
    %207 = vector.broadcast %cst_85 : f32 to vector<64x128xf32>
    %208 = arith.addf %206, %207 : vector<64x128xf32>
    %209 = arith.mulf %208, %195 : vector<64x128xf32>
    %cst_86 = arith.constant 0.000000e+00 : f32
    %210 = vector.broadcast %cst_86 : f32 to vector<64x128xf32>
    %211 = arith.subf %210, %189 : vector<64x128xf32>
    %212 = arith.mulf %211, %189 : vector<64x128xf32>
    %213 = math.exp %212 : vector<64x128xf32>
    %214 = arith.mulf %209, %213 : vector<64x128xf32>
    %cst_87 = arith.constant 1.000000e+00 : f32
    %215 = vector.broadcast %cst_87 : f32 to vector<64x128xf32>
    %216 = arith.subf %215, %214 : vector<64x128xf32>
    %217 = arith.mulf %188, %216 : vector<64x128xf32>
    %cst_88 = arith.constant 1.000000e+00 : f32
    %218 = vector.broadcast %cst_88 : f32 to vector<64x128xf32>
    %219 = arith.addf %218, %217 : vector<64x128xf32>
    %220 = arith.mulf %181, %219 : vector<64x128xf32>
    %c0_89 = arith.constant 0 : index
    %c0_90 = arith.constant 0 : index
    %221 = vector.load %arg17[%c0_89, %c0_90] : memref<128x32xf32, #tpu.memory_space<vmem>>, vector<128x32xf32>
    %cst_91 = arith.constant dense<0.000000e+00> : vector<64x32xf32>
    %222 = tpu.matmul %220, %221, %cst_91 {dimension_numbers = #tpu.dot_dimension_numbers<[1], [0], [0], [1], [0, 0, 1, 1], [], []>} : vector<64x128xf32>, vector<128x32xf32>, vector<64x32xf32> -> vector<64x32xf32>
    %c0_92 = arith.constant 0 : index
    %c0_93 = arith.constant 0 : index
    %223 = vector.load %arg18[%c0_92, %c0_93] : memref<1x32xf32, #tpu.memory_space<vmem>>, vector<1x32xf32>
    %224 = vector.broadcast %223 : vector<1x32xf32> to vector<64x32xf32>
    %225 = arith.addf %222, %224 : vector<64x32xf32>
    %226 = arith.addf %152, %225 : vector<64x32xf32>
    %227 = vector.shape_cast %226 : vector<64x32xf32> to vector<4x16x32xf32>
    %c0_94 = arith.constant 0 : index
    %c0_95 = arith.constant 0 : index
    %c0_96 = arith.constant 0 : index
    %228 = vector.load %arg19[%c0_94, %c0_95, %c0_96] : memref<4x16x32xf32, #tpu.memory_space<vmem>>, vector<4x16x32xf32>
    tpu.vector_store %arg19[%c0_94, %c0_95, %c0_96], %227 {strides = array<i32>} : memref<4x16x32xf32, #tpu.memory_space<vmem>>, vector<4x16x32xf32>,
    return
  }
  func.func @transform_0(%arg0: i32) -> (i32, i32, i32) {
    %c0_i32 = arith.constant 0 : i32
    %c0_i32_0 = arith.constant 0 : i32
    %c0_i32_1 = arith.constant 0 : i32
    return %arg0, %c0_i32, %c0_i32_0 : i32, i32, i32
  }
  func.func @transform_1(%arg0: i32) -> (i32, i32) {
    %c0_i32 = arith.constant 0 : i32
    %c0_i32_0 = arith.constant 0 : i32
    %c0_i32_1 = arith.constant 0 : i32
    return %c0_i32, %c0_i32_0 : i32, i32
  }
  func.func @transform_2(%arg0: i32) -> (i32, i32) {
    %c0_i32 = arith.constant 0 : i32
    %c0_i32_0 = arith.constant 0 : i32
    %c0_i32_1 = arith.constant 0 : i32
    return %c0_i32, %c0_i32_0 : i32, i32
  }
  func.func @transform_3(%arg0: i32) -> (i32, i32) {
    %c0_i32 = arith.constant 0 : i32
    %c0_i32_0 = arith.constant 0 : i32
    %c0_i32_1 = arith.constant 0 : i32
    return %c0_i32, %c0_i32_0 : i32, i32
  }
  func.func @transform_4(%arg0: i32) -> (i32, i32) {
    %c0_i32 = arith.constant 0 : i32
    %c0_i32_0 = arith.constant 0 : i32
    %c0_i32_1 = arith.constant 0 : i32
    return %c0_i32, %c0_i32_0 : i32, i32
  }
  func.func @transform_5(%arg0: i32) -> (i32, i32) {
    %c0_i32 = arith.constant 0 : i32
    %c0_i32_0 = arith.constant 0 : i32
    %c0_i32_1 = arith.constant 0 : i32
    return %c0_i32, %c0_i32_0 : i32, i32
  }
  func.func @transform_6(%arg0: i32) -> (i32, i32) {
    %c0_i32 = arith.constant 0 : i32
    %c0_i32_0 = arith.constant 0 : i32
    %c0_i32_1 = arith.constant 0 : i32
    return %c0_i32, %c0_i32_0 : i32, i32
  }
  func.func @transform_7(%arg0: i32) -> (i32, i32) {
    %c0_i32 = arith.constant 0 : i32
    %c0_i32_0 = arith.constant 0 : i32
    %c0_i32_1 = arith.constant 0 : i32
    return %c0_i32, %c0_i32_0 : i32, i32
  }
  func.func @transform_8(%arg0: i32) -> (i32, i32) {
    %c0_i32 = arith.constant 0 : i32
    %c0_i32_0 = arith.constant 0 : i32
    %c0_i32_1 = arith.constant 0 : i32
    return %c0_i32, %c0_i32_0 : i32, i32
  }
  func.func @transform_9(%arg0: i32) -> (i32, i32, i32) {
    %c0_i32 = arith.constant 0 : i32
    %c0_i32_0 = arith.constant 0 : i32
    %c0_i32_1 = arith.constant 0 : i32
    %c0_i32_2 = arith.constant 0 : i32
    return %c0_i32, %c0_i32_0, %c0_i32_1 : i32, i32, i32
  }
  func.func @transform_10(%arg0: i32) -> (i32, i32) {
    %c0_i32 = arith.constant 0 : i32
    %c0_i32_0 = arith.constant 0 : i32
    %c0_i32_1 = arith.constant 0 : i32
    return %c0_i32, %c0_i32_0 : i32, i32
  }
  func.func @transform_11(%arg0: i32) -> (i32, i32) {
    %c0_i32 = arith.constant 0 : i32
    %c0_i32_0 = arith.constant 0 : i32
    %c0_i32_1 = arith.constant 0 : i32
    return %c0_i32, %c0_i32_0 : i32, i32
  }
  func.func @transform_12(%arg0: i32) -> (i32, i32) {
    %c0_i32 = arith.constant 0 : i32
    %c0_i32_0 = arith.constant 0 : i32
    %c0_i32_1 = arith.constant 0 : i32
    return %c0_i32, %c0_i32_0 : i32, i32
  }
  func.func @transform_13(%arg0: i32) -> (i32, i32) {
    %c0_i32 = arith.constant 0 : i32
    %c0_i32_0 = arith.constant 0 : i32
    %c0_i32_1 = arith.constant 0 : i32
    return %c0_i32, %c0_i32_0 : i32, i32
  }
  func.func @transform_14(%arg0: i32) -> (i32, i32) {
    %c0_i32 = arith.constant 0 : i32
    %c0_i32_0 = arith.constant 0 : i32
    %c0_i32_1 = arith.constant 0 : i32
    return %c0_i32, %c0_i32_0 : i32, i32
  }
  func.func @transform_15(%arg0: i32) -> (i32, i32) {
    %c0_i32 = arith.constant 0 : i32
    %c0_i32_0 = arith.constant 0 : i32
    %c0_i32_1 = arith.constant 0 : i32
    return %c0_i32, %c0_i32_0 : i32, i32
  }
  func.func @transform_16(%arg0: i32) -> (i32, i32) {
    %c0_i32 = arith.constant 0 : i32
    %c0_i32_0 = arith.constant 0 : i32
    %c0_i32_1 = arith.constant 0 : i32
    return %c0_i32, %c0_i32_0 : i32, i32
  }
  func.func @transform_17(%arg0: i32) -> (i32, i32) {
    %c0_i32 = arith.constant 0 : i32
    %c0_i32_0 = arith.constant 0 : i32
    %c0_i32_1 = arith.constant 0 : i32
    return %c0_i32, %c0_i32_0 : i32, i32
  }
  func.func @transform_18(%arg0: i32) -> (i32, i32, i32) {
    %c0_i32 = arith.constant 0 : i32
    %c0_i32_0 = arith.constant 0 : i32
    %c0_i32_1 = arith.constant 0 : i32
    return %arg0, %c0_i32, %c0_i32_0 : i32, i32, i32
  }
}

</mosaic_0001>

<llo_original>
// kernel: block_forward.1
$region0: #{block_forward.1}
  #allocation0 [shape = 'u32[]', space=smem, size = 0x4, offset = 0x4, fixed_abs, tag = 'smem constant byte address 0x4 - core index']
  #allocation1 [shape = 'u32[144,128]{1,0:T(1,128)}', space=vmem, size = 0x12000, scoped, tag = 'internal scratch']
  %s0 = inlined_call_operand.vmem [shape: f32[8,16,32], index: 0, kind: input, shape index: {}]
  %s1 = inlined_call_operand.vmem [shape: f32[1,32], index: 1, kind: input, shape index: {}]
  %s2 = inlined_call_operand.vmem [shape: f32[1,32], index: 2, kind: input, shape index: {}]
  %s3 = inlined_call_operand.vmem [shape: f32[32,32], index: 3, kind: input, shape index: {}]
  %s4 = inlined_call_operand.vmem [shape: f32[32,32], index: 4, kind: input, shape index: {}]
  %s5 = inlined_call_operand.vmem [shape: f32[32,32], index: 5, kind: input, shape index: {}]
  %s6 = inlined_call_operand.vmem [shape: f32[1,32], index: 6, kind: input, shape index: {}]
  %s7 = inlined_call_operand.vmem [shape: f32[1,32], index: 7, kind: input, shape index: {}]
  %s8 = inlined_call_operand.vmem [shape: f32[1,32], index: 8, kind: input, shape index: {}]
  %s9 = inlined_call_operand.vmem [shape: f32[4,16,16], index: 9, kind: input, shape index: {}]
  %s10 = inlined_call_operand.vmem [shape: f32[32,32], index: 10, kind: input, shape index: {}]
  %s11 = inlined_call_operand.vmem [shape: f32[1,32], index: 11, kind: input, shape index: {}]
  %s12 = inlined_call_operand.vmem [shape: f32[1,32], index: 12, kind: input, shape index: {}]
  %s13 = inlined_call_operand.vmem [shape: f32[1,32], index: 13, kind: input, shape index: {}]
  %s14 = inlined_call_operand.vmem [shape: f32[32,128], index: 14, kind: input, shape index: {}]
  %s15 = inlined_call_operand.vmem [shape: f32[1,128], index: 15, kind: input, shape index: {}]
  %s16 = inlined_call_operand.vmem [shape: f32[128,32], index: 16, kind: input, shape index: {}]
  %s17 = inlined_call_operand.vmem [shape: f32[1,32], index: 17, kind: input, shape index: {}]
  %s18 = inlined_call_operand.vmem [shape: f32[8,16,32], index: 18, kind: output, shape index: {}]
  %s19 = sld [smem:[#allocation0]]
  $region105: #{block_forward.1} parent=0
    _
  %s21 = ssub.s32 1, %s19
  %s22 = scalar_select 0, %s21, %s19
  loop: start=0, step=1, limit=4
  $region2: #{block_forward.1} parent=0 // loop_pre_header
    _
  $region3: #{block_forward.1} parent=0 // loop_header
    %s24 = sphi 0, %s28
    %p25 = scmp.ge.s32.totalorder %s24, 4
    %s34 = sphi 0, %s36
    %s37 = sphi 0, %s34
    %s38 = sphi 0, %s37
    %s54 = sphi 0, %s38
    %s58 = sphi 0, %s58
    %s60 = sphi 0, %s58
    %s61 = sphi 0, %s60
    %s75 = sphi 0, %s61
    %s79 = sphi 0, %s79
    %s81 = sphi 0, %s79
    %s82 = sphi 0, %s81
    %s96 = sphi 0, %s82
    %s100 = sphi 0, %s100
    %s102 = sphi 0, %s100
    %s103 = sphi 0, %s102
    %s117 = sphi 0, %s103
    %s121 = sphi 0, %s121
    %s123 = sphi 0, %s121
    %s124 = sphi 0, %s123
    %s138 = sphi 0, %s124
    %s142 = sphi 0, %s142
    %s144 = sphi 0, %s142
    %s145 = sphi 0, %s144
    %s159 = sphi 0, %s145
    %s163 = sphi 0, %s163
    %s165 = sphi 0, %s163
    %s166 = sphi 0, %s165
    %s180 = sphi 0, %s166
    %s184 = sphi 0, %s184
    %s186 = sphi 0, %s184
    %s187 = sphi 0, %s186
    %s201 = sphi 0, %s187
    %s205 = sphi 0, %s205
    %s207 = sphi 0, %s205
    %s208 = sphi 0, %s207
    %s222 = sphi 0, %s208
    %s226 = sphi 0, %s226
    %s228 = sphi 0, %s226
    %s229 = sphi 0, %s228
    %s243 = sphi 0, %s229
    %s247 = sphi 0, %s247
    %s249 = sphi 0, %s247
    %s250 = sphi 0, %s249
    %s264 = sphi 0, %s250
    %s268 = sphi 0, %s268
    %s270 = sphi 0, %s268
    %s271 = sphi 0, %s270
    %s285 = sphi 0, %s271
    %s289 = sphi 0, %s289
    %s291 = sphi 0, %s289
    %s292 = sphi 0, %s291
    %s306 = sphi 0, %s292
    %s310 = sphi 0, %s310
    %s312 = sphi 0, %s310
    %s313 = sphi 0, %s312
    %s327 = sphi 0, %s313
    %s331 = sphi 0, %s331
    %s333 = sphi 0, %s331
    %s334 = sphi 0, %s333
    %s348 = sphi 0, %s334
    %s352 = sphi 0, %s352
    %s354 = sphi 0, %s352
    %s355 = sphi 0, %s354
    %s369 = sphi 0, %s355
    %s373 = sphi 0, %s373
    %s375 = sphi 0, %s373
    %s376 = sphi 0, %s375
    %s390 = sphi 0, %s376
    %s394 = sphi 0, %s394
    %s396 = sphi 0, %s394
    %s397 = sphi 0, %s396
    %s411 = sphi 0, %s397
    %s417 = sphi 0, %s419
    %s420 = sphi 0, %s417
    %s421 = sphi 0, %s420
    %s437 = sphi 0, %s421
  $region4: #{block_forward.1} parent=0 // loop_header_branch
    %27 = sbr.rel (%p25) target = $region8
  $region5: #{block_forward.1} parent=0 // loop_body
    %s29 = ssub.s32 %s24, 1
    %s30 = ssub.s32 %s24, 2
    %s31 = sadd.s32 %s24, 1
    %s32 = ssub.s32 %s24, %s31
    %p33 = scmp.eq.s32.totalorder %s32, 0
    %s35 = sadd.s32 %s34, 1
    %s36 = scalar_select %p33, %s34, %s35
    %p39 = pneg %p33
    %p40 = scmp.eq.s32.totalorder %s24, 1
    %p41 = por %p39, %p40
    %p42 = scmp.ne.s32.totalorder %s34, %s37
    %p43 = scmp.eq.s32.totalorder %s24, 0
    %p44 = por %p42, %p43
    %p45 = scmp.ne.s32.totalorder %s34, %s37
    %p46 = scmp.eq.s32.totalorder %s29, 1
    %p47 = por %p45, %p46
    %p48 = scmp.ne.s32.totalorder %s37, %s38
    %p49 = scmp.eq.s32.totalorder %s29, 0
    %p50 = por %p48, %p49
    %p51 = scmp.ne.s32.totalorder %s37, %s38
    %p52 = scmp.eq.s32.totalorder %s30, 1
    %p53 = por %p51, %p52
    %p55 = scmp.ne.s32.totalorder %s38, %s54
    %p56 = scmp.eq.s32.totalorder %s30, 0
    %p57 = por %p55, %p56
    %s59 = sadd.s32 %s58, 1
    %p62 = scmp.eq.s32.totalorder %s24, 1
    %p63 = scmp.ne.s32.totalorder %s58, %s60
    %p64 = scmp.eq.s32.totalorder %s24, 0
    %p65 = por %p63, %p64
    %p66 = scmp.ne.s32.totalorder %s58, %s60
    %p67 = scmp.eq.s32.totalorder %s29, 1
    %p68 = por %p66, %p67
    %p69 = scmp.ne.s32.totalorder %s60, %s61
    %p70 = scmp.eq.s32.totalorder %s29, 0
    %p71 = por %p69, %p70
    %p72 = scmp.ne.s32.totalorder %s60, %s61
    %p73 = scmp.eq.s32.totalorder %s30, 1
    %p74 = por %p72, %p73
    %p76 = scmp.ne.s32.totalorder %s61, %s75
    %p77 = scmp.eq.s32.totalorder %s30, 0
    %p78 = por %p76, %p77
    %s80 = sadd.s32 %s79, 1
    %p83 = scmp.eq.s32.totalorder %s24, 1
    %p84 = scmp.ne.s32.totalorder %s79, %s81
    %p85 = scmp.eq.s32.totalorder %s24, 0
    %p86 = por %p84, %p85
    %p87 = scmp.ne.s32.totalorder %s79, %s81
    %p88 = scmp.eq.s32.totalorder %s29, 1
    %p89 = por %p87, %p88
    %p90 = scmp.ne.s32.totalorder %s81, %s82
    %p91 = scmp.eq.s32.totalorder %s29, 0
    %p92 = por %p90, %p91
    %p93 = scmp.ne.s32.totalorder %s81, %s82
    %p94 = scmp.eq.s32.totalorder %s30, 1
    %p95 = por %p93, %p94
    %p97 = scmp.ne.s32.totalorder %s82, %s96
    %p98 = scmp.eq.s32.totalorder %s30, 0
    %p99 = por %p97, %p98
    %s101 = sadd.s32 %s100, 1
    %p104 = scmp.eq.s32.totalorder %s24, 1
    %p105 = scmp.ne.s32.totalorder %s100, %s102
    %p106 = scmp.eq.s32.totalorder %s24, 0
    %p107 = por %p105, %p106
    %p108 = scmp.ne.s32.totalorder %s100, %s102
    %p109 = scmp.eq.s32.totalorder %s29, 1
    %p110 = por %p108, %p109
    %p111 = scmp.ne.s32.totalorder %s102, %s103
    %p112 = scmp.eq.s32.totalorder %s29, 0
    %p113 = por %p111, %p112
    %p114 = scmp.ne.s32.totalorder %s102, %s103
    %p115 = scmp.eq.s32.totalorder %s30, 1
    %p116 = por %p114, %p115
    %p118 = scmp.ne.s32.totalorder %s103, %s117
    %p119 = scmp.eq.s32.totalorder %s30, 0
    %p120 = por %p118, %p119
    %s122 = sadd.s32 %s121, 1
    %p125 = scmp.eq.s32.totalorder %s24, 1
    %p126 = scmp.ne.s32.totalorder %s121, %s123
    %p127 = scmp.eq.s32.totalorder %s24, 0
    %p128 = por %p126, %p127
    %p129 = scmp.ne.s32.totalorder %s121, %s123
    %p130 = scmp.eq.s32.totalorder %s29, 1
    %p131 = por %p129, %p130
    %p132 = scmp.ne.s32.totalorder %s123, %s124
    %p133 = scmp.eq.s32.totalorder %s29, 0
    %p134 = por %p132, %p133
    %p135 = scmp.ne.s32.totalorder %s123, %s124
    %p136 = scmp.eq.s32.totalorder %s30, 1
    %p137 = por %p135, %p136
    %p139 = scmp.ne.s32.totalorder %s124, %s138
    %p140 = scmp.eq.s32.totalorder %s30, 0
    %p141 = por %p139, %p140
    %s143 = sadd.s32 %s142, 1
    %p146 = scmp.eq.s32.totalorder %s24, 1
    %p147 = scmp.ne.s32.totalorder %s142, %s144
    %p148 = scmp.eq.s32.totalorder %s24, 0
    %p149 = por %p147, %p148
    %p150 = scmp.ne.s32.totalorder %s142, %s144
    %p151 = scmp.eq.s32.totalorder %s29, 1
    %p152 = por %p150, %p151
    %p153 = scmp.ne.s32.totalorder %s144, %s145
    %p154 = scmp.eq.s32.totalorder %s29, 0
    %p155 = por %p153, %p154
    %p156 = scmp.ne.s32.totalorder %s144, %s145
    %p157 = scmp.eq.s32.totalorder %s30, 1
    %p158 = por %p156, %p157
    %p160 = scmp.ne.s32.totalorder %s145, %s159
    %p161 = scmp.eq.s32.totalorder %s30, 0
    %p162 = por %p160, %p161
    %s164 = sadd.s32 %s163, 1
    %p167 = scmp.eq.s32.totalorder %s24, 1
    %p168 = scmp.ne.s32.totalorder %s163, %s165
    %p169 = scmp.eq.s32.totalorder %s24, 0
    %p170 = por %p168, %p169
    %p171 = scmp.ne.s32.totalorder %s163, %s165
    %p172 = scmp.eq.s32.totalorder %s29, 1
    %p173 = por %p171, %p172
    %p174 = scmp.ne.s32.totalorder %s165, %s166
    %p175 = scmp.eq.s32.totalorder %s29, 0
    %p176 = por %p174, %p175
    %p177 = scmp.ne.s32.totalorder %s165, %s166
    %p178 = scmp.eq.s32.totalorder %s30, 1
    %p179 = por %p177, %p178
    %p181 = scmp.ne.s32.totalorder %s166, %s180
    %p182 = scmp.eq.s32.totalorder %s30, 0
    %p183 = por %p181, %p182
    %s185 = sadd.s32 %s184, 1
    %p188 = scmp.eq.s32.totalorder %s24, 1
    %p189 = scmp.ne.s32.totalorder %s184, %s186
    %p190 = scmp.eq.s32.totalorder %s24, 0
    %p191 = por %p189, %p190
    %p192 = scmp.ne.s32.totalorder %s184, %s186
    %p193 = scmp.eq.s32.totalorder %s29, 1
    %p194 = por %p192, %p193
    %p195 = scmp.ne.s32.totalorder %s186, %s187
    %p196 = scmp.eq.s32.totalorder %s29, 0
    %p197 = por %p195, %p196
    %p198 = scmp.ne.s32.totalorder %s186, %s187
    %p199 = scmp.eq.s32.totalorder %s30, 1
    %p200 = por %p198, %p199
    %p202 = scmp.ne.s32.totalorder %s187, %s201
    %p203 = scmp.eq.s32.totalorder %s30, 0
    %p204 = por %p202, %p203
    %s206 = sadd.s32 %s205, 1
    %p209 = scmp.eq.s32.totalorder %s24, 1
    %p210 = scmp.ne.s32.totalorder %s205, %s207
    %p211 = scmp.eq.s32.totalorder %s24, 0
    %p212 = por %p210, %p211
    %p213 = scmp.ne.s32.totalorder %s205, %s207
    %p214 = scmp.eq.s32.totalorder %s29, 1
    %p215 = por %p213, %p214
    %p216 = scmp.ne.s32.totalorder %s207, %s208
    %p217 = scmp.eq.s32.totalorder %s29, 0
    %p218 = por %p216, %p217
    %p219 = scmp.ne.s32.totalorder %s207, %s208
    %p220 = scmp.eq.s32.totalorder %s30, 1
    %p221 = por %p219, %p220
    %p223 = scmp.ne.s32.totalorder %s208, %s222
    %p224 = scmp.eq.s32.totalorder %s30, 0
    %p225 = por %p223, %p224
    %s227 = sadd.s32 %s226, 1
    %p230 = scmp.eq.s32.totalorder %s24, 1
    %p231 = scmp.ne.s32.totalorder %s226, %s228
    %p232 = scmp.eq.s32.totalorder %s24, 0
    %p233 = por %p231, %p232
    %p234 = scmp.ne.s32.totalorder %s226, %s228
    %p235 = scmp.eq.s32.totalorder %s29, 1
    %p236 = por %p234, %p235
    %p237 = scmp.ne.s32.totalorder %s228, %s229
    %p238 = scmp.eq.s32.totalorder %s29, 0
    %p239 = por %p237, %p238
    %p240 = scmp.ne.s32.totalorder %s228, %s229
    %p241 = scmp.eq.s32.totalorder %s30, 1
    %p242 = por %p240, %p241
    %p244 = scmp.ne.s32.totalorder %s229, %s243
    %p245 = scmp.eq.s32.totalorder %s30, 0
    %p246 = por %p244, %p245
    %s248 = sadd.s32 %s247, 1
    %p251 = scmp.eq.s32.totalorder %s24, 1
    %p252 = scmp.ne.s32.totalorder %s247, %s249
    %p253 = scmp.eq.s32.totalorder %s24, 0
    %p254 = por %p252, %p253
    %p255 = scmp.ne.s32.totalorder %s247, %s249
    %p256 = scmp.eq.s32.totalorder %s29, 1
    %p257 = por %p255, %p256
    %p258 = scmp.ne.s32.totalorder %s249, %s250
    %p259 = scmp.eq.s32.totalorder %s29, 0
    %p260 = por %p258, %p259
    %p261 = scmp.ne.s32.totalorder %s249, %s250
    %p262 = scmp.eq.s32.totalorder %s30, 1
    %p263 = por %p261, %p262
    %p265 = scmp.ne.s32.totalorder %s250, %s264
    %p266 = scmp.eq.s32.totalorder %s30, 0
    %p267 = por %p265, %p266
    %s269 = sadd.s32 %s268, 1
    %p272 = scmp.eq.s32.totalorder %s24, 1
    %p273 = scmp.ne.s32.totalorder %s268, %s270
    %p274 = scmp.eq.s32.totalorder %s24, 0
    %p275 = por %p273, %p274
    %p276 = scmp.ne.s32.totalorder %s268, %s270
    %p277 = scmp.eq.s32.totalorder %s29, 1
    %p278 = por %p276, %p277
    %p279 = scmp.ne.s32.totalorder %s270, %s271
    %p280 = scmp.eq.s32.totalorder %s29, 0
    %p281 = por %p279, %p280
    %p282 = scmp.ne.s32.totalorder %s270, %s271
    %p283 = scmp.eq.s32.totalorder %s30, 1
    %p284 = por %p282, %p283
    %p286 = scmp.ne.s32.totalorder %s271, %s285
    %p287 = scmp.eq.s32.totalorder %s30, 0
    %p288 = por %p286, %p287
    %s290 = sadd.s32 %s289, 1
    %p293 = scmp.eq.s32.totalorder %s24, 1
    %p294 = scmp.ne.s32.totalorder %s289, %s291
    %p295 = scmp.eq.s32.totalorder %s24, 0
    %p296 = por %p294, %p295
    %p297 = scmp.ne.s32.totalorder %s289, %s291
    %p298 = scmp.eq.s32.totalorder %s29, 1
    %p299 = por %p297, %p298
    %p300 = scmp.ne.s32.totalorder %s291, %s292
    %p301 = scmp.eq.s32.totalorder %s29, 0
    %p302 = por %p300, %p301
    %p303 = scmp.ne.s32.totalorder %s291, %s292
    %p304 = scmp.eq.s32.totalorder %s30, 1
    %p305 = por %p303, %p304
    %p307 = scmp.ne.s32.totalorder %s292, %s306
    %p308 = scmp.eq.s32.totalorder %s30, 0
    %p309 = por %p307, %p308
    %s311 = sadd.s32 %s310, 1
    %p314 = scmp.eq.s32.totalorder %s24, 1
    %p315 = scmp.ne.s32.totalorder %s310, %s312
    %p316 = scmp.eq.s32.totalorder %s24, 0
    %p317 = por %p315, %p316
    %p318 = scmp.ne.s32.totalorder %s310, %s312
    %p319 = scmp.eq.s32.totalorder %s29, 1
    %p320 = por %p318, %p319
    %p321 = scmp.ne.s32.totalorder %s312, %s313
    %p322 = scmp.eq.s32.totalorder %s29, 0
    %p323 = por %p321, %p322
    %p324 = scmp.ne.s32.totalorder %s312, %s313
    %p325 = scmp.eq.s32.totalorder %s30, 1
    %p326 = por %p324, %p325
    %p328 = scmp.ne.s32.totalorder %s313, %s327
    %p329 = scmp.eq.s32.totalorder %s30, 0
    %p330 = por %p328, %p329
    %s332 = sadd.s32 %s331, 1
    %p335 = scmp.eq.s32.totalorder %s24, 1
    %p336 = scmp.ne.s32.totalorder %s331, %s333
    %p337 = scmp.eq.s32.totalorder %s24, 0
    %p338 = por %p336, %p337
    %p339 = scmp.ne.s32.totalorder %s331, %s333
    %p340 = scmp.eq.s32.totalorder %s29, 1
    %p341 = por %p339, %p340
    %p342 = scmp.ne.s32.totalorder %s333, %s334
    %p343 = scmp.eq.s32.totalorder %s29, 0
    %p344 = por %p342, %p343
    %p345 = scmp.ne.s32.totalorder %s333, %s334
    %p346 = scmp.eq.s32.totalorder %s30, 1
    %p347 = por %p345, %p346
    %p349 = scmp.ne.s32.totalorder %s334, %s348
    %p350 = scmp.eq.s32.totalorder %s30, 0
    %p351 = por %p349, %p350
    %s353 = sadd.s32 %s352, 1
    %p356 = scmp.eq.s32.totalorder %s24, 1
    %p357 = scmp.ne.s32.totalorder %s352, %s354
    %p358 = scmp.eq.s32.totalorder %s24, 0
    %p359 = por %p357, %p358
    %p360 = scmp.ne.s32.totalorder %s352, %s354
    %p361 = scmp.eq.s32.totalorder %s29, 1
    %p362 = por %p360, %p361
    %p363 = scmp.ne.s32.totalorder %s354, %s355
    %p364 = scmp.eq.s32.totalorder %s29, 0
    %p365 = por %p363, %p364
    %p366 = scmp.ne.s32.totalorder %s354, %s355
    %p367 = scmp.eq.s32.totalorder %s30, 1
    %p368 = por %p366, %p367
    %p370 = scmp.ne.s32.totalorder %s355, %s369
    %p371 = scmp.eq.s32.totalorder %s30, 0
    %p372 = por %p370, %p371
    %s374 = sadd.s32 %s373, 1
    %p377 = scmp.eq.s32.totalorder %s24, 1
    %p378 = scmp.ne.s32.totalorder %s373, %s375
    %p379 = scmp.eq.s32.totalorder %s24, 0
    %p380 = por %p378, %p379
    %p381 = scmp.ne.s32.totalorder %s373, %s375
    %p382 = scmp.eq.s32.totalorder %s29, 1
    %p383 = por %p381, %p382
    %p384 = scmp.ne.s32.totalorder %s375, %s376
    %p385 = scmp.eq.s32.totalorder %s29, 0
    %p386 = por %p384, %p385
    %p387 = scmp.ne.s32.totalorder %s375, %s376
    %p388 = scmp.eq.s32.totalorder %s30, 1
    %p389 = por %p387, %p388
    %p391 = scmp.ne.s32.totalorder %s376, %s390
    %p392 = scmp.eq.s32.totalorder %s30, 0
    %p393 = por %p391, %p392
    %s395 = sadd.s32 %s394, 1
    %p398 = scmp.eq.s32.totalorder %s24, 1
    %p399 = scmp.ne.s32.totalorder %s394, %s396
    %p400 = scmp.eq.s32.totalorder %s24, 0
    %p401 = por %p399, %p400
    %p402 = scmp.ne.s32.totalorder %s394, %s396
    %p403 = scmp.eq.s32.totalorder %s29, 1
    %p404 = por %p402, %p403
    %p405 = scmp.ne.s32.totalorder %s396, %s397
    %p406 = scmp.eq.s32.totalorder %s29, 0
    %p407 = por %p405, %p406
    %p408 = scmp.ne.s32.totalorder %s396, %s397
    %p409 = scmp.eq.s32.totalorder %s30, 1
    %p410 = por %p408, %p409
    %p412 = scmp.ne.s32.totalorder %s397, %s411
    %p413 = scmp.eq.s32.totalorder %s30, 0
    %p414 = por %p412, %p413
    %s415 = ssub.s32 %s24, %s31
    %p416 = scmp.eq.s32.totalorder %s415, 0
    %s418 = sadd.s32 %s417, 1
    %s419 = scalar_select %p416, %s417, %s418
    %p422 = pneg %p416
    %p423 = scmp.eq.s32.totalorder %s24, 1
    %p424 = por %p422, %p423
    %p425 = scmp.ne.s32.totalorder %s417, %s420
    %p426 = scmp.eq.s32.totalorder %s24, 0
    %p427 = por %p425, %p426
    %p428 = scmp.ne.s32.totalorder %s417, %s420
    %p429 = scmp.eq.s32.totalorder %s29, 1
    %p430 = por %p428, %p429
    %p431 = scmp.ne.s32.totalorder %s420, %s421
    %p432 = scmp.eq.s32.totalorder %s29, 0
    %p433 = por %p431, %p432
    %p434 = scmp.ne.s32.totalorder %s420, %s421
    %p435 = scmp.eq.s32.totalorder %s30, 1
    %p436 = por %p434, %p435
    %p438 = scmp.ne.s32.totalorder %s421, %s437
    %p439 = scmp.eq.s32.totalorder %s30, 0
    %p440 = por %p438, %p439
    %p441 = scmp.le.s32.totalorder 1, %s24
    %p442 = scmp.lt.s32.totalorder %s24, 3
    %p443 = pnand %p441, %p442
    %p444 = pneg %p443
    // Predicated region
    $region9: #{block_forward.1} parent=5 // pred_check
      _
    $region10: #{block_forward.1} parent=5 // pred_check_branch
      %446 = sbr.rel (%p443) target = $region12
    $region11: #{block_forward.1} parent=5 // pred_region
      %s447 = ssub.s32 %s24, 1
      // Predicated region
      $region13: #{block_forward.1} parent=11 // pred_check
        %p448 = pneg %p71
      $region14: #{block_forward.1} parent=11 // pred_check_branch
        %450 = sbr.rel (%p448) target = $region16
      $region15: #{block_forward.1} parent=11 // pred_region
        _
      $region16: #{block_forward.1} parent=11 // pred_fallthru
        _
      // Predicated region
      $region17: #{block_forward.1} parent=11 // pred_check
        %p451 = pneg %p92
      $region18: #{block_forward.1} parent=11 // pred_check_branch
        %453 = sbr.rel (%p451) target = $region20
      $region19: #{block_forward.1} parent=11 // pred_region
        _
      $region20: #{block_forward.1} parent=11 // pred_fallthru
        _
      // Predicated region
      $region21: #{block_forward.1} parent=11 // pred_check
        %p454 = pneg %p113
      $region22: #{block_forward.1} parent=11 // pred_check_branch
        %456 = sbr.rel (%p454) target = $region24
      $region23: #{block_forward.1} parent=11 // pred_region
        _
      $region24: #{block_forward.1} parent=11 // pred_fallthru
        _
      // Predicated region
      $region25: #{block_forward.1} parent=11 // pred_check
        %p457 = pneg %p134
      $region26: #{block_forward.1} parent=11 // pred_check_branch
        %459 = sbr.rel (%p457) target = $region28
      $region27: #{block_forward.1} parent=11 // pred_region
        _
      $region28: #{block_forward.1} parent=11 // pred_fallthru
        _
      // Predicated region
      $region29: #{block_forward.1} parent=11 // pred_check
        %p460 = pneg %p155
      $region30: #{block_forward.1} parent=11 // pred_check_branch
        %462 = sbr.rel (%p460) target = $region32
      $region31: #{block_forward.1} parent=11 // pred_region
        _
      $region32: #{block_forward.1} parent=11 // pred_fallthru
        _
      // Predicated region
      $region33: #{block_forward.1} parent=11 // pred_check
        %p463 = pneg %p176
      $region34: #{block_forward.1} parent=11 // pred_check_branch
        %465 = sbr.rel (%p463) target = $region36
      $region35: #{block_forward.1} parent=11 // pred_region
        _
      $region36: #{block_forward.1} parent=11 // pred_fallthru
        _
      // Predicated region
      $region37: #{block_forward.1} parent=11 // pred_check
        %p466 = pneg %p197
      $region38: #{block_forward.1} parent=11 // pred_check_branch
        %468 = sbr.rel (%p466) target = $region40
      $region39: #{block_forward.1} parent=11 // pred_region
        _
      $region40: #{block_forward.1} parent=11 // pred_fallthru
        _
      // Predicated region
      $region41: #{block_forward.1} parent=11 // pred_check
        %p469 = pneg %p218
      $region42: #{block_forward.1} parent=11 // pred_check_branch
        %471 = sbr.rel (%p469) target = $region44
      $region43: #{block_forward.1} parent=11 // pred_region
        _
      $region44: #{block_forward.1} parent=11 // pred_fallthru
        _
      // Predicated region
      $region45: #{block_forward.1} parent=11 // pred_check
        %p472 = pneg %p239
      $region46: #{block_forward.1} parent=11 // pred_check_branch
        %474 = sbr.rel (%p472) target = $region48
      $region47: #{block_forward.1} parent=11 // pred_region
        _
      $region48: #{block_forward.1} parent=11 // pred_fallthru
        _
      // Predicated region
      $region49: #{block_forward.1} parent=11 // pred_check
        %p475 = pneg %p260
      $region50: #{block_forward.1} parent=11 // pred_check_branch
        %477 = sbr.rel (%p475) target = $region52
      $region51: #{block_forward.1} parent=11 // pred_region
        _
      $region52: #{block_forward.1} parent=11 // pred_fallthru
        _
      // Predicated region
      $region53: #{block_forward.1} parent=11 // pred_check
        %p478 = pneg %p281
      $region54: #{block_forward.1} parent=11 // pred_check_branch
        %480 = sbr.rel (%p478) target = $region56
      $region55: #{block_forward.1} parent=11 // pred_region
        _
      $region56: #{block_forward.1} parent=11 // pred_fallthru
        _
      // Predicated region
      $region57: #{block_forward.1} parent=11 // pred_check
        %p481 = pneg %p302
      $region58: #{block_forward.1} parent=11 // pred_check_branch
        %483 = sbr.rel (%p481) target = $region60
      $region59: #{block_forward.1} parent=11 // pred_region
        _
      $region60: #{block_forward.1} parent=11 // pred_fallthru
        _
      // Predicated region
      $region61: #{block_forward.1} parent=11 // pred_check
        %p484 = pneg %p323
      $region62: #{block_forward.1} parent=11 // pred_check_branch
        %486 = sbr.rel (%p484) target = $region64
      $region63: #{block_forward.1} parent=11 // pred_region
        _
      $region64: #{block_forward.1} parent=11 // pred_fallthru
        _
      // Predicated region
      $region65: #{block_forward.1} parent=11 // pred_check
        %p487 = pneg %p344
      $region66: #{block_forward.1} parent=11 // pred_check_branch
        %489 = sbr.rel (%p487) target = $region68
      $region67: #{block_forward.1} parent=11 // pred_region
        _
      $region68: #{block_forward.1} parent=11 // pred_fallthru
        _
      // Predicated region
      $region69: #{block_forward.1} parent=11 // pred_check
        %p490 = pneg %p365
      $region70: #{block_forward.1} parent=11 // pred_check_branch
        %492 = sbr.rel (%p490) target = $region72
      $region71: #{block_forward.1} parent=11 // pred_region
        _
      $region72: #{block_forward.1} parent=11 // pred_fallthru
        _
      // Predicated region
      $region73: #{block_forward.1} parent=11 // pred_check
        %p493 = pneg %p386
      $region74: #{block_forward.1} parent=11 // pred_check_branch
        %495 = sbr.rel (%p493) target = $region76
      $region75: #{block_forward.1} parent=11 // pred_region
        _
      $region76: #{block_forward.1} parent=11 // pred_fallthru
        _
      // Predicated region
      $region77: #{block_forward.1} parent=11 // pred_check
        %p496 = pneg %p407
      $region78: #{block_forward.1} parent=11 // pred_check_branch
        %498 = sbr.rel (%p496) target = $region80
      $region79: #{block_forward.1} parent=11 // pred_region
        _
      $region80: #{block_forward.1} parent=11 // pred_fallthru
        _
    $region12: #{block_forward.1} parent=5 // pred_fallthru
      _
    %p499 = scmp.lt.s32.totalorder %s24, 2
    // Predicated region
    $region81: #{block_forward.1} parent=5 // pred_check
      %p500 = pneg %p499
    $region82: #{block_forward.1} parent=5 // pred_check_branch
      %502 = sbr.rel (%p500) target = $region84
    $region83: #{block_forward.1} parent=5 // pred_region
      // Predicated region
      $region85: #{block_forward.1} parent=83 // pred_check
        %p503 = pneg %p44
      $region86: #{block_forward.1} parent=83 // pred_check_branch
        %505 = sbr.rel (%p503) target = $region88
      $region87: #{block_forward.1} parent=83 // pred_region
        %s506 = smul.u32 4, %s24
        %p507 = scmp.lt.s32.totalorder %s506, 7
        %s508 = scalar_select %p507, %s506, 7
        %s509 = smul.addr %s508, 2
        %s510 = smul.addr %s509, 8
        %s511 = scalar_lea.vmem %s0, %s510
        %s512 = smul.u32 4, %s24
      $region88: #{block_forward.1} parent=83 // pred_fallthru
        _
    $region84: #{block_forward.1} parent=5 // pred_fallthru
      _
    %p513 = scmp.le.s32.totalorder 1, %s24
    %p514 = scmp.lt.s32.totalorder %s24, 3
    %p515 = pnand %p513, %p514
    %p516 = pneg %p515
    // Predicated region
    $region89: #{block_forward.1} parent=5 // pred_check
      _
    $region90: #{block_forward.1} parent=5 // pred_check_branch
      %518 = sbr.rel (%p515) target = $region92
    $region91: #{block_forward.1} parent=5 // pred_region
      %s519 = ssub.s32 %s24, 1
      %s520 = smul.u32 4, %s29
      %p521 = scmp.lt.s32.totalorder %s520, 7
      %s522 = scalar_select %p521, %s520, 7
      %s523 = smul.addr %s522, 2
      %s524 = smul.addr %s523, 8
      %s525 = scalar_lea.vmem %s0, %s524
      %p526 = pneg %p50
      %p527 = pneg %p47
      %p528 = pneg %p71
      %p529 = pneg %p68
      %p530 = pneg %p92
      %p531 = pneg %p89
      %p532 = pneg %p113
      %p533 = pneg %p110
      %p534 = pneg %p134
      %p535 = pneg %p131
      %p536 = pneg %p155
      %p537 = pneg %p152
      %p538 = pneg %p176
      %p539 = pneg %p173
      %p540 = pneg %p197
      %p541 = pneg %p194
      %p542 = pneg %p218
      %p543 = pneg %p215
      %p544 = pneg %p239
      %p545 = pneg %p236
      %p546 = pneg %p260
      %p547 = pneg %p257
      %p548 = pneg %p281
      %p549 = pneg %p278
      %p550 = pneg %p302
      %p551 = pneg %p299
      %p552 = pneg %p323
      %p553 = pneg %p320
      %p554 = pneg %p344
      %p555 = pneg %p341
      %p556 = pneg %p365
      %p557 = pneg %p362
      %p558 = pneg %p386
      %p559 = pneg %p383
      %p560 = pneg %p407
      %p561 = pneg %p404
      %p562 = pneg %p433
      %p563 = pneg %p430
      %s564 = smul.u32 4, %s29
      %p565 = scmp.lt.s32.totalorder %s564, 7
      %s566 = scalar_select %p565, %s564, 7
      %s567 = smul.addr %s566, 2
      %s568 = smul.addr %s567, 8
      %s569 = scalar_lea.vmem %s18, %s568
      %s570 = smul.u32 4, %s29
      %p571 = scmp.lt.s32.totalorder %s570, 7
      %s572 = scalar_select %p571, %s570, 7
      %s573 = smul.addr %s572, 2
      %s574 = smul.addr %s573, 8
      %s575 = scalar_lea.vmem %s0, %s574
      %s576 = smul.u32 4, %s29
      %s577 = smul.u32 4, %s29
      %p578 = scmp.lt.s32.totalorder %s577, 7
      %s579 = scalar_select %p578, %s577, 7
      %s580 = smul.addr %s579, 2
      %s581 = smul.addr %s580, 8
      %s582 = scalar_lea.vmem %s18, %s581
      %s583 = smul.u32 4, %s29
      %v584 = vld [vmem:[%s575] sm:$0xff]
      %v585 = vld [vmem:[%s575 + $0x8] sm:$0xff]
      %v586 = vld [vmem:[%s575 + $0x10] sm:$0xff]
      %v587 = vld [vmem:[%s575 + $0x18] sm:$0xff]
      %v588 = vld [vmem:[%s575 + $0x20] sm:$0xff]
      %v589 = vld [vmem:[%s575 + $0x28] sm:$0xff]
      %v590 = vld [vmem:[%s575 + $0x30] sm:$0xff]
      %v591 = vld [vmem:[%s575 + $0x38] sm:$0xff]
      %v592 = vld [vmem:[%s1] sm:$0x1]
      %v593 = vld [vmem:[%s2] sm:$0x1]
      %vm594 = vcmask 261120
      %v595 = vsel %vm594, %v584, 0.0
      %596 = vadd.xlane.f32.xlu0 %v595
      %v597 = vpop.xlane.xlu0 %596
      %v598 = vsel %vm594, %v585, 0.0
      %599 = vadd.xlane.f32.xlu0 %v598
      %v600 = vpop.xlane.xlu0 %599
      %v601 = vsel %vm594, %v586, 0.0
      %602 = vadd.xlane.f32.xlu0 %v601
      %v603 = vpop.xlane.xlu0 %602
      %v604 = vsel %vm594, %v587, 0.0
      %605 = vadd.xlane.f32.xlu0 %v604
      %v606 = vpop.xlane.xlu0 %605
      %v607 = vsel %vm594, %v588, 0.0
      %608 = vadd.xlane.f32.xlu0 %v607
      %v609 = vpop.xlane.xlu0 %608
      %v610 = vsel %vm594, %v589, 0.0
      %611 = vadd.xlane.f32.xlu0 %v610
      %v612 = vpop.xlane.xlu0 %611
      %v613 = vsel %vm594, %v590, 0.0
      %614 = vadd.xlane.f32.xlu0 %v613
      %v615 = vpop.xlane.xlu0 %614
      %v616 = vsel %vm594, %v591, 0.0
      %617 = vadd.xlane.f32.xlu0 %v616
      %v618 = vpop.xlane.xlu0 %617
      %v619 = vrcp.pop 32.0
      %v620 = vmul.f32 %v597, %v619
      %v621 = vmul.f32 %v600, %v619
      %v622 = vmul.f32 %v603, %v619
      %v623 = vmul.f32 %v606, %v619
      %v624 = vmul.f32 %v609, %v619
      %v625 = vmul.f32 %v612, %v619
      %v626 = vmul.f32 %v615, %v619
      %v627 = vmul.f32 %v618, %v619
      %v628 = vsub.f32 %v584, %v620
      %v629 = vsub.f32 %v585, %v621
      %v630 = vsub.f32 %v586, %v622
      %v631 = vsub.f32 %v587, %v623
      %v632 = vsub.f32 %v588, %v624
      %v633 = vsub.f32 %v589, %v625
      %v634 = vsub.f32 %v590, %v626
      %v635 = vsub.f32 %v591, %v627
      %v636 = vmul.f32 %v628, %v628
      %v637 = vmul.f32 %v629, %v629
      %v638 = vmul.f32 %v630, %v630
      %v639 = vmul.f32 %v631, %v631
      %v640 = vmul.f32 %v632, %v632
      %v641 = vmul.f32 %v633, %v633
      %v642 = vmul.f32 %v634, %v634
      %v643 = vmul.f32 %v635, %v635
      %v644 = vsel %vm594, %v636, 0.0
      %645 = vadd.xlane.f32.xlu0 %v644
      %v646 = vpop.xlane.xlu0 %645
      %v647 = vsel %vm594, %v637, 0.0
      %648 = vadd.xlane.f32.xlu0 %v647
      %v649 = vpop.xlane.xlu0 %648
      %v650 = vsel %vm594, %v638, 0.0
      %651 = vadd.xlane.f32.xlu0 %v650
      %v652 = vpop.xlane.xlu0 %651
      %v653 = vsel %vm594, %v639, 0.0
      %654 = vadd.xlane.f32.xlu0 %v653
      %v655 = vpop.xlane.xlu0 %654
      %v656 = vsel %vm594, %v640, 0.0
      %657 = vadd.xlane.f32.xlu0 %v656
      %v658 = vpop.xlane.xlu0 %657
      %v659 = vsel %vm594, %v641, 0.0
      %660 = vadd.xlane.f32.xlu0 %v659
      %v661 = vpop.xlane.xlu0 %660
      %v662 = vsel %vm594, %v642, 0.0
      %663 = vadd.xlane.f32.xlu0 %v662
      %v664 = vpop.xlane.xlu0 %663
      %v665 = vsel %vm594, %v643, 0.0
      %666 = vadd.xlane.f32.xlu0 %v665
      %v667 = vpop.xlane.xlu0 %666
      %v668 = vmul.f32 %v646, %v619
      %v669 = vmul.f32 %v649, %v619
      %v670 = vmul.f32 %v652, %v619
      %v671 = vmul.f32 %v655, %v619
      %v672 = vmul.f32 %v658, %v619
      %v673 = vmul.f32 %v661, %v619
      %v674 = vmul.f32 %v664, %v619
      %v675 = vmul.f32 %v667, %v619
      %v676 = vadd.f32 %v668, 1e-05
      %v677 = vadd.f32 %v669, 1e-05
      %v678 = vadd.f32 %v670, 1e-05
      %v679 = vadd.f32 %v671, 1e-05
      %v680 = vadd.f32 %v672, 1e-05
      %v681 = vadd.f32 %v673, 1e-05
      %v682 = vadd.f32 %v674, 1e-05
      %v683 = vadd.f32 %v675, 1e-05
      %v684 = vrsqrt.pop %v676
      %v685 = vrsqrt.pop %v677
      %v686 = vrsqrt.pop %v678
      %v687 = vrsqrt.pop %v679
      %v688 = vrsqrt.pop %v680
      %v689 = vrsqrt.pop %v681
      %v690 = vrsqrt.pop %v682
      %v691 = vrsqrt.pop %v683
      %v692 = vmul.f32 %v628, %v684
      %v693 = vmul.f32 %v629, %v685
      %v694 = vmul.f32 %v630, %v686
      %v695 = vmul.f32 %v631, %v687
      %v696 = vmul.f32 %v632, %v688
      %v697 = vmul.f32 %v633, %v689
      %v698 = vmul.f32 %v634, %v690
      %v699 = vmul.f32 %v635, %v691
      %v701 = vlaneseq
      %v702 = vshrl.u32 %v701, 7
      %v703 = vsub.s32 0, %v702
      %v704 = vrot.slane %v592, %v703
      %v706 = vmul.f32 %v692, %v704
      %v707 = vmul.f32 %v693, %v704
      %v708 = vmul.f32 %v694, %v704
      %v709 = vmul.f32 %v695, %v704
      %v710 = vmul.f32 %v696, %v704
      %v711 = vmul.f32 %v697, %v704
      %v712 = vmul.f32 %v698, %v704
      %v713 = vmul.f32 %v699, %v704
      %v715 = vlaneseq
      %v716 = vshrl.u32 %v715, 7
      %v717 = vsub.s32 0, %v716
      %v718 = vrot.slane %v593, %v717
      %v720 = vadd.f32 %v706, %v718
      %v721 = vadd.f32 %v707, %v718
      %v722 = vadd.f32 %v708, %v718
      %v723 = vadd.f32 %v709, %v718
      %v724 = vadd.f32 %v710, %v718
      %v725 = vadd.f32 %v711, %v718
      %v726 = vadd.f32 %v712, %v718
      %v727 = vadd.f32 %v713, %v718
      %v728 = vld [vmem:[%s3] sm:$0xff]
      %v729 = vld [vmem:[%s3 + $0x8] sm:$0xff]
      %v730 = vld [vmem:[%s3 + $0x10] sm:$0xff]
      %v731 = vld [vmem:[%s3 + $0x18] sm:$0xff]
      %v732 = vld [vmem:[%s6] sm:$0x1]
      %v734 = vlaneseq
      %v735 = vshrl.u32 %v734, 7
      %v736 = vsub.s32 0, %v735
      %v737 = vrot.slane %v732, %v736
      %v740 = vsel %vm594, %v720, 0
      %v743 = vsel %vm594, %v721, 0
      %v746 = vsel %vm594, %v722, 0
      %v749 = vsel %vm594, %v723, 0
      %v752 = vsel %vm594, %v724, 0
      %v755 = vsel %vm594, %v725, 0
      %v758 = vsel %vm594, %v726, 0
      %v761 = vsel %vm594, %v727, 0
      %763 = vmatprep.subr.mxu0 0.0
      %764 = vmatpush1.msra.mxu0 0.0
      %765 = vmatprep.subr.mxu0 0.0
      %766 = vmatpush1.msra.mxu0 0.0
      %767 = vmatprep.subr.mxu0 0.0
      %768 = vmatpush1.msra.mxu0 0.0
      %769 = vmatprep.subr.mxu0 0.0
      %770 = vmatpush1.msra.mxu0 0.0
      %771 = vmatprep.subr.mxu0 0.0
      %772 = vmatpush1.msra.mxu0 0.0
      %773 = vmatprep.subr.mxu0 0.0
      %774 = vmatpush1.msra.mxu0 0.0
      %775 = vmatprep.subr.mxu0 0.0
      %776 = vmatpush1.msra.mxu0 0.0
      %777 = vmatprep.subr.mxu0 0.0
      %778 = vmatpush1.msra.mxu0 0.0
      %779 = vmatprep.subr.mxu0 0.0
      %780 = vmatpush1.msra.mxu0 0.0
      %781 = vmatprep.subr.mxu0 0.0
      %782 = vmatpush1.msra.mxu0 0.0
      %783 = vmatprep.subr.mxu0 0.0
      %784 = vmatpush1.msra.mxu0 0.0
      %785 = vmatprep.subr.mxu0 0.0
      %786 = vmatpush1.msra.mxu0 0.0
      %787 = vmatprep.subr.mxu0 0.0
      %788 = vmatpush1.msra.mxu0 %v731
      %789 = vmatprep.subr.mxu0 0.0
      %790 = vmatpush1.msra.mxu0 %v730
      %791 = vmatprep.subr.mxu0 0.0
      %792 = vmatpush1.msra.mxu0 %v729
      %793 = vmatprep.subr.mxu0 0.0
      %794 = vmatpush1.msra.mxu0 %v728
      %795 = vmatprep.subr.mxu0 0.0
      %796 = vmatpush2.msra.mxu0 0.0
      %797 = vmatprep.subr.mxu0 0.0
      %798 = vmatpush2.msra.mxu0 0.0
      %799 = vmatprep.subr.mxu0 0.0
      %800 = vmatpush2.msra.mxu0 0.0
      %801 = vmatprep.subr.mxu0 0.0
      %802 = vmatpush2.msra.mxu0 0.0
      %803 = vmatprep.subr.mxu0 0.0
      %804 = vmatpush2.msra.mxu0 0.0
      %805 = vmatprep.subr.mxu0 0.0
      %806 = vmatpush2.msra.mxu0 0.0
      %807 = vmatprep.subr.mxu0 0.0
      %808 = vmatpush2.msra.mxu0 0.0
      %809 = vmatprep.subr.mxu0 0.0
      %810 = vmatpush2.msra.mxu0 0.0
      %811 = vmatprep.subr.mxu0 0.0
      %812 = vmatpush2.msra.mxu0 0.0
      %813 = vmatprep.subr.mxu0 0.0
      %814 = vmatpush2.msra.mxu0 0.0
      %815 = vmatprep.subr.mxu0 0.0
      %816 = vmatpush2.msra.mxu0 0.0
      %817 = vmatprep.subr.mxu0 0.0
      %818 = vmatpush2.msra.mxu0 0.0
      %819 = vmatprep.subr.mxu0 0.0
      %820 = vmatpush2.msra.mxu0 0.0
      %821 = vmatprep.subr.mxu0 0.0
      %822 = vmatpush2.msra.mxu0 0.0
      %823 = vmatprep.subr.mxu0 0.0
      %824 = vmatpush2.msra.mxu0 0.0
      %825 = vmatprep.subr.mxu0 0.0
      %826 = vmatpush2.msra.mxu0 0.0
      %827 = vmatprep.mubr.f32.mxu0 0.0
      %828 = vmatmul.mubr.f32.gmra.mxu0 %v740
      %v829 = vpop.f32.mrf.mxu0
      %v830 = vadd.f32 %v737, %v829
      %v831 = vpop.f32.mrf.mxu0
      %832 = vmatprep.mubr.f32.mxu0 0.0
      %833 = vmatmul.mubr.f32.gmra.mxu0 %v743
      %v834 = vpop.f32.mrf.mxu0
      %v835 = vadd.f32 %v737, %v834
      %v836 = vpop.f32.mrf.mxu0
      %837 = vmatprep.mubr.f32.mxu0 0.0
      %838 = vmatmul.mubr.f32.gmra.mxu0 %v746
      %v839 = vpop.f32.mrf.mxu0
      %v840 = vadd.f32 %v737, %v839
      %v841 = vpop.f32.mrf.mxu0
      %842 = vmatprep.mubr.f32.mxu0 0.0
      %843 = vmatmul.mubr.f32.gmra.mxu0 %v749
      %v844 = vpop.f32.mrf.mxu0
      %v845 = vadd.f32 %v737, %v844
      %v846 = vpop.f32.mrf.mxu0
      %847 = vmatprep.mubr.f32.mxu0 0.0
      %848 = vmatmul.mubr.f32.gmra.mxu0 %v752
      %v849 = vpop.f32.mrf.mxu0
      %v850 = vadd.f32 %v737, %v849
      %v851 = vpop.f32.mrf.mxu0
      %852 = vmatprep.mubr.f32.mxu0 0.0
      %853 = vmatmul.mubr.f32.gmra.mxu0 %v755
      %v854 = vpop.f32.mrf.mxu0
      %v855 = vadd.f32 %v737, %v854
      %v856 = vpop.f32.mrf.mxu0
      %857 = vmatprep.mubr.f32.mxu0 0.0
      %858 = vmatmul.mubr.f32.gmra.mxu0 %v758
      %v859 = vpop.f32.mrf.mxu0
      %v860 = vadd.f32 %v737, %v859
      %v861 = vpop.f32.mrf.mxu0
      %862 = vmatprep.mubr.f32.mxu0 0.0
      %863 = vmatmul.mubr.f32.gmra.mxu0 %v761
      %v864 = vpop.f32.mrf.mxu0
      %v865 = vadd.f32 %v737, %v864
      %v866 = vpop.f32.mrf.mxu0
      %867 = vdwg.mxu0
      %v868 = vld [vmem:[%s4] sm:$0xff]
      %v869 = vld [vmem:[%s4 + $0x8] sm:$0xff]
      %v870 = vld [vmem:[%s4 + $0x10] sm:$0xff]
      %v871 = vld [vmem:[%s4 + $0x18] sm:$0xff]
      %v872 = vld [vmem:[%s7] sm:$0x1]
      %v874 = vlaneseq
      %v875 = vshrl.u32 %v874, 7
      %v876 = vsub.s32 0, %v875
      %v877 = vrot.slane %v872, %v876
      %879 = vmatprep.subr.mxu0 0.0
      %880 = vmatpush1.msra.mxu0 0.0
      %881 = vmatprep.subr.mxu0 0.0
      %882 = vmatpush1.msra.mxu0 0.0
      %883 = vmatprep.subr.mxu0 0.0
      %884 = vmatpush1.msra.mxu0 0.0
      %885 = vmatprep.subr.mxu0 0.0
      %886 = vmatpush1.msra.mxu0 0.0
      %887 = vmatprep.subr.mxu0 0.0
      %888 = vmatpush1.msra.mxu0 0.0
      %889 = vmatprep.subr.mxu0 0.0
      %890 = vmatpush1.msra.mxu0 0.0
      %891 = vmatprep.subr.mxu0 0.0
      %892 = vmatpush1.msra.mxu0 0.0
      %893 = vmatprep.subr.mxu0 0.0
      %894 = vmatpush1.msra.mxu0 0.0
      %895 = vmatprep.subr.mxu0 0.0
      %896 = vmatpush1.msra.mxu0 0.0
      %897 = vmatprep.subr.mxu0 0.0
      %898 = vmatpush1.msra.mxu0 0.0
      %899 = vmatprep.subr.mxu0 0.0
      %900 = vmatpush1.msra.mxu0 0.0
      %901 = vmatprep.subr.mxu0 0.0
      %902 = vmatpush1.msra.mxu0 0.0
      %903 = vmatprep.subr.mxu0 0.0
      %904 = vmatpush1.msra.mxu0 %v871
      %905 = vmatprep.subr.mxu0 0.0
      %906 = vmatpush1.msra.mxu0 %v870
      %907 = vmatprep.subr.mxu0 0.0
      %908 = vmatpush1.msra.mxu0 %v869
      %909 = vmatprep.subr.mxu0 0.0
      %910 = vmatpush1.msra.mxu0 %v868
      %911 = vmatprep.subr.mxu0 0.0
      %912 = vmatpush2.msra.mxu0 0.0
      %913 = vmatprep.subr.mxu0 0.0
      %914 = vmatpush2.msra.mxu0 0.0
      %915 = vmatprep.subr.mxu0 0.0
      %916 = vmatpush2.msra.mxu0 0.0
      %917 = vmatprep.subr.mxu0 0.0
      %918 = vmatpush2.msra.mxu0 0.0
      %919 = vmatprep.subr.mxu0 0.0
      %920 = vmatpush2.msra.mxu0 0.0
      %921 = vmatprep.subr.mxu0 0.0
      %922 = vmatpush2.msra.mxu0 0.0
      %923 = vmatprep.subr.mxu0 0.0
      %924 = vmatpush2.msra.mxu0 0.0
      %925 = vmatprep.subr.mxu0 0.0
      %926 = vmatpush2.msra.mxu0 0.0
      %927 = vmatprep.subr.mxu0 0.0
      %928 = vmatpush2.msra.mxu0 0.0
      %929 = vmatprep.subr.mxu0 0.0
      %930 = vmatpush2.msra.mxu0 0.0
      %931 = vmatprep.subr.mxu0 0.0
      %932 = vmatpush2.msra.mxu0 0.0
      %933 = vmatprep.subr.mxu0 0.0
      %934 = vmatpush2.msra.mxu0 0.0
      %935 = vmatprep.subr.mxu0 0.0
      %936 = vmatpush2.msra.mxu0 0.0
      %937 = vmatprep.subr.mxu0 0.0
      %938 = vmatpush2.msra.mxu0 0.0
      %939 = vmatprep.subr.mxu0 0.0
      %940 = vmatpush2.msra.mxu0 0.0
      %941 = vmatprep.subr.mxu0 0.0
      %942 = vmatpush2.msra.mxu0 0.0
      %943 = vmatprep.mubr.f32.mxu0 0.0
      %944 = vmatmul.mubr.f32.gmra.mxu0 %v740
      %v945 = vpop.f32.mrf.mxu0
      %v946 = vadd.f32 %v877, %v945
      %v947 = vpop.f32.mrf.mxu0
      %948 = vmatprep.mubr.f32.mxu0 0.0
      %949 = vmatmul.mubr.f32.gmra.mxu0 %v743
      %v950 = vpop.f32.mrf.mxu0
      %v951 = vadd.f32 %v877, %v950
      %v952 = vpop.f32.mrf.mxu0
      %953 = vmatprep.mubr.f32.mxu0 0.0
      %954 = vmatmul.mubr.f32.gmra.mxu0 %v746
      %v955 = vpop.f32.mrf.mxu0
      %v956 = vadd.f32 %v877, %v955
      %v957 = vpop.f32.mrf.mxu0
      %958 = vmatprep.mubr.f32.mxu0 0.0
      %959 = vmatmul.mubr.f32.gmra.mxu0 %v749
      %v960 = vpop.f32.mrf.mxu0
      %v961 = vadd.f32 %v877, %v960
      %v962 = vpop.f32.mrf.mxu0
      %963 = vmatprep.mubr.f32.mxu0 0.0
      %964 = vmatmul.mubr.f32.gmra.mxu0 %v752
      %v965 = vpop.f32.mrf.mxu0
      %v966 = vadd.f32 %v877, %v965
      %v967 = vpop.f32.mrf.mxu0
      %968 = vmatprep.mubr.f32.mxu0 0.0
      %969 = vmatmul.mubr.f32.gmra.mxu0 %v755
      %v970 = vpop.f32.mrf.mxu0
      %v971 = vadd.f32 %v877, %v970
      %v972 = vpop.f32.mrf.mxu0
      %973 = vmatprep.mubr.f32.mxu0 0.0
      %974 = vmatmul.mubr.f32.gmra.mxu0 %v758
      %v975 = vpop.f32.mrf.mxu0
      %v976 = vadd.f32 %v877, %v975
      %v977 = vpop.f32.mrf.mxu0
      %978 = vmatprep.mubr.f32.mxu0 0.0
      %979 = vmatmul.mubr.f32.gmra.mxu0 %v761
      %v980 = vpop.f32.mrf.mxu0
      %v981 = vadd.f32 %v877, %v980
      %v982 = vpop.f32.mrf.mxu0
      %983 = vdwg.mxu0
      %v984 = vld [vmem:[%s5] sm:$0xff]
      %v985 = vld [vmem:[%s5 + $0x8] sm:$0xff]
      %v986 = vld [vmem:[%s5 + $0x10] sm:$0xff]
      %v987 = vld [vmem:[%s5 + $0x18] sm:$0xff]
      %v988 = vld [vmem:[%s8] sm:$0x1]
      %v990 = vlaneseq
      %v991 = vshrl.u32 %v990, 7
      %v992 = vsub.s32 0, %v991
      %v993 = vrot.slane %v988, %v992
      %995 = vmatprep.subr.mxu0 0.0
      %996 = vmatpush1.msra.mxu0 0.0
      %997 = vmatprep.subr.mxu0 0.0
      %998 = vmatpush1.msra.mxu0 0.0
      %999 = vmatprep.subr.mxu0 0.0
      %1000 = vmatpush1.msra.mxu0 0.0
      %1001 = vmatprep.subr.mxu0 0.0
      %1002 = vmatpush1.msra.mxu0 0.0
      %1003 = vmatprep.subr.mxu0 0.0
      %1004 = vmatpush1.msra.mxu0 0.0
      %1005 = vmatprep.subr.mxu0 0.0
      %1006 = vmatpush1.msra.mxu0 0.0
      %1007 = vmatprep.subr.mxu0 0.0
      %1008 = vmatpush1.msra.mxu0 0.0
      %1009 = vmatprep.subr.mxu0 0.0
      %1010 = vmatpush1.msra.mxu0 0.0
      %1011 = vmatprep.subr.mxu0 0.0
      %1012 = vmatpush1.msra.mxu0 0.0
      %1013 = vmatprep.subr.mxu0 0.0
      %1014 = vmatpush1.msra.mxu0 0.0
      %1015 = vmatprep.subr.mxu0 0.0
      %1016 = vmatpush1.msra.mxu0 0.0
      %1017 = vmatprep.subr.mxu0 0.0
      %1018 = vmatpush1.msra.mxu0 0.0
      %1019 = vmatprep.subr.mxu0 0.0
      %1020 = vmatpush1.msra.mxu0 %v987
      %1021 = vmatprep.subr.mxu0 0.0
      %1022 = vmatpush1.msra.mxu0 %v986
      %1023 = vmatprep.subr.mxu0 0.0
      %1024 = vmatpush1.msra.mxu0 %v985
      %1025 = vmatprep.subr.mxu0 0.0
      %1026 = vmatpush1.msra.mxu0 %v984
      %1027 = vmatprep.subr.mxu0 0.0
      %1028 = vmatpush2.msra.mxu0 0.0
      %1029 = vmatprep.subr.mxu0 0.0
      %1030 = vmatpush2.msra.mxu0 0.0
      %1031 = vmatprep.subr.mxu0 0.0
      %1032 = vmatpush2.msra.mxu0 0.0
      %1033 = vmatprep.subr.mxu0 0.0
      %1034 = vmatpush2.msra.mxu0 0.0
      %1035 = vmatprep.subr.mxu0 0.0
      %1036 = vmatpush2.msra.mxu0 0.0
      %1037 = vmatprep.subr.mxu0 0.0
      %1038 = vmatpush2.msra.mxu0 0.0
      %1039 = vmatprep.subr.mxu0 0.0
      %1040 = vmatpush2.msra.mxu0 0.0
      %1041 = vmatprep.subr.mxu0 0.0
      %1042 = vmatpush2.msra.mxu0 0.0
      %1043 = vmatprep.subr.mxu0 0.0
      %1044 = vmatpush2.msra.mxu0 0.0
      %1045 = vmatprep.subr.mxu0 0.0
      %1046 = vmatpush2.msra.mxu0 0.0
      %1047 = vmatprep.subr.mxu0 0.0
      %1048 = vmatpush2.msra.mxu0 0.0
      %1049 = vmatprep.subr.mxu0 0.0
      %1050 = vmatpush2.msra.mxu0 0.0
      %1051 = vmatprep.subr.mxu0 0.0
      %1052 = vmatpush2.msra.mxu0 0.0
      %1053 = vmatprep.subr.mxu0 0.0
      %1054 = vmatpush2.msra.mxu0 0.0
      %1055 = vmatprep.subr.mxu0 0.0
      %1056 = vmatpush2.msra.mxu0 0.0
      %1057 = vmatprep.subr.mxu0 0.0
      %1058 = vmatpush2.msra.mxu0 0.0
      %1059 = vmatprep.mubr.f32.mxu0 0.0
      %1060 = vmatmul.mubr.f32.gmra.mxu0 %v740
      %v1061 = vpop.f32.mrf.mxu0
      %v1062 = vadd.f32 %v993, %v1061
      %v1063 = vpop.f32.mrf.mxu0
      %1064 = vmatprep.mubr.f32.mxu0 0.0
      %1065 = vmatmul.mubr.f32.gmra.mxu0 %v743
      %v1066 = vpop.f32.mrf.mxu0
      %v1067 = vadd.f32 %v993, %v1066
      %v1068 = vpop.f32.mrf.mxu0
      %1069 = vmatprep.mubr.f32.mxu0 0.0
      %1070 = vmatmul.mubr.f32.gmra.mxu0 %v746
      %v1071 = vpop.f32.mrf.mxu0
      %v1072 = vadd.f32 %v993, %v1071
      %v1073 = vpop.f32.mrf.mxu0
      %1074 = vmatprep.mubr.f32.mxu0 0.0
      %1075 = vmatmul.mubr.f32.gmra.mxu0 %v749
      %v1076 = vpop.f32.mrf.mxu0
      %v1077 = vadd.f32 %v993, %v1076
      %v1078 = vpop.f32.mrf.mxu0
      %1079 = vmatprep.mubr.f32.mxu0 0.0
      %1080 = vmatmul.mubr.f32.gmra.mxu0 %v752
      %v1081 = vpop.f32.mrf.mxu0
      %v1082 = vadd.f32 %v993, %v1081
      %v1083 = vpop.f32.mrf.mxu0
      %1084 = vmatprep.mubr.f32.mxu0 0.0
      %1085 = vmatmul.mubr.f32.gmra.mxu0 %v755
      %v1086 = vpop.f32.mrf.mxu0
      %v1087 = vadd.f32 %v993, %v1086
      %v1088 = vpop.f32.mrf.mxu0
      %1089 = vmatprep.mubr.f32.mxu0 0.0
      %1090 = vmatmul.mubr.f32.gmra.mxu0 %v758
      %v1091 = vpop.f32.mrf.mxu0
      %v1092 = vadd.f32 %v993, %v1091
      %v1093 = vpop.f32.mrf.mxu0
      %1094 = vmatprep.mubr.f32.mxu0 0.0
      %1095 = vmatmul.mubr.f32.gmra.mxu0 %v761
      %v1096 = vpop.f32.mrf.mxu0
      %v1097 = vadd.f32 %v993, %v1096
      %v1098 = vpop.f32.mrf.mxu0
      %1099 = vdwg.mxu0
      %v1100 = vld [vmem:[%s10] sm:$0xff]
      %v1101 = vld [vmem:[%s10 + $0x8] sm:$0xff]
      %v1102 = vld [vmem:[%s10 + $0x10] sm:$0xff]
      %v1103 = vld [vmem:[%s10 + $0x18] sm:$0xff]
      %v1104 = vld [vmem:[%s9] sm:$0xff]
      %v1105 = vld [vmem:[%s9 + $0x8] sm:$0xff]
      %vm1106 = vcmask 64512
      %v1108 = vsel %vm1106, %v830, 0
      %v1111 = vsel %vm1106, %v835, 0
      %v1114 = vsel %vm1106, %v946, 0
      %v1117 = vsel %vm1106, %v951, 0
      %1119 = vmatprep.subr.mxu0 0.0
      %1120 = vmatpush1.xpose.msra.mxu0 0.0
      %1121 = vmatprep.subr.mxu0 0.0
      %1122 = vmatpush1.xpose.msra.mxu0 0.0
      %1123 = vmatprep.subr.mxu0 0.0
      %1124 = vmatpush1.xpose.msra.mxu0 0.0
      %1125 = vmatprep.subr.mxu0 0.0
      %1126 = vmatpush1.xpose.msra.mxu0 0.0
      %1127 = vmatprep.subr.mxu0 0.0
      %1128 = vmatpush1.xpose.msra.mxu0 0.0
      %1129 = vmatprep.subr.mxu0 0.0
      %1130 = vmatpush1.xpose.msra.mxu0 0.0
      %1131 = vmatprep.subr.mxu0 0.0
      %1132 = vmatpush1.xpose.msra.mxu0 0.0
      %1133 = vmatprep.subr.mxu0 0.0
      %1134 = vmatpush1.xpose.msra.mxu0 0.0
      %1135 = vmatprep.subr.mxu0 0.0
      %1136 = vmatpush1.xpose.msra.mxu0 0.0
      %1137 = vmatprep.subr.mxu0 0.0
      %1138 = vmatpush1.xpose.msra.mxu0 0.0
      %1139 = vmatprep.subr.mxu0 0.0
      %1140 = vmatpush1.xpose.msra.mxu0 0.0
      %1141 = vmatprep.subr.mxu0 0.0
      %1142 = vmatpush1.xpose.msra.mxu0 0.0
      %1143 = vmatprep.subr.mxu0 0.0
      %1144 = vmatpush1.xpose.msra.mxu0 0.0
      %1145 = vmatprep.subr.mxu0 0.0
      %1146 = vmatpush1.xpose.msra.mxu0 0.0
      %1147 = vmatprep.subr.mxu0 0.0
      %1148 = vmatpush1.xpose.msra.mxu0 %v1117
      %1149 = vmatprep.subr.mxu0 0.0
      %1150 = vmatpush1.xpose.msra.mxu0 %v1114
      %1151 = vmatprep.subr.mxu0 0.0
      %1152 = vmatpush2.xpose.msra.mxu0 0.0
      %1153 = vmatprep.subr.mxu0 0.0
      %1154 = vmatpush2.xpose.msra.mxu0 0.0
      %1155 = vmatprep.subr.mxu0 0.0
      %1156 = vmatpush2.xpose.msra.mxu0 0.0
      %1157 = vmatprep.subr.mxu0 0.0
      %1158 = vmatpush2.xpose.msra.mxu0 0.0
      %1159 = vmatprep.subr.mxu0 0.0
      %1160 = vmatpush2.xpose.msra.mxu0 0.0
      %1161 = vmatprep.subr.mxu0 0.0
      %1162 = vmatpush2.xpose.msra.mxu0 0.0
      %1163 = vmatprep.subr.mxu0 0.0
      %1164 = vmatpush2.xpose.msra.mxu0 0.0
      %1165 = vmatprep.subr.mxu0 0.0
      %1166 = vmatpush2.xpose.msra.mxu0 0.0
      %1167 = vmatprep.subr.mxu0 0.0
      %1168 = vmatpush2.xpose.msra.mxu0 0.0
      %1169 = vmatprep.subr.mxu0 0.0
      %1170 = vmatpush2.xpose.msra.mxu0 0.0
      %1171 = vmatprep.subr.mxu0 0.0
      %1172 = vmatpush2.xpose.msra.mxu0 0.0
      %1173 = vmatprep.subr.mxu0 0.0
      %1174 = vmatpush2.xpose.msra.mxu0 0.0
      %1175 = vmatprep.subr.mxu0 0.0
      %1176 = vmatpush2.xpose.msra.mxu0 0.0
      %1177 = vmatprep.subr.mxu0 0.0
      %1178 = vmatpush2.xpose.msra.mxu0 0.0
      %1179 = vmatprep.subr.mxu0 0.0
      %1180 = vmatpush2.xpose.msra.mxu0 0.0
      %1181 = vmatprep.subr.mxu0 0.0
      %1182 = vmatpush2.xpose.msra.mxu0 0.0
      %1183 = vmatprep.mubr.f32.mxu0 0.0
      %1184 = vmatmul.mubr.f32.gmra.mxu0 %v1108
      %v1185 = vpop.f32.mrf.mxu0
      %v1186 = vadd.f32 %v1104, %v1185
      %v1187 = vpop.f32.mrf.mxu0
      %1188 = vmatprep.mubr.f32.mxu0 0.0
      %1189 = vmatmul.mubr.f32.gmra.mxu0 %v1111
      %v1190 = vpop.f32.mrf.mxu0
      %v1191 = vadd.f32 %v1105, %v1190
      %v1192 = vpop.f32.mrf.mxu0
      %1193 = vdwg.mxu0
      %v1195 = vsel %vm1106, %v840, 0
      %v1198 = vsel %vm1106, %v845, 0
      %v1201 = vsel %vm1106, %v956, 0
      %v1204 = vsel %vm1106, %v961, 0
      %1206 = vmatprep.subr.mxu0 0.0
      %1207 = vmatpush1.xpose.msra.mxu0 0.0
      %1208 = vmatprep.subr.mxu0 0.0
      %1209 = vmatpush1.xpose.msra.mxu0 0.0
      %1210 = vmatprep.subr.mxu0 0.0
      %1211 = vmatpush1.xpose.msra.mxu0 0.0
      %1212 = vmatprep.subr.mxu0 0.0
      %1213 = vmatpush1.xpose.msra.mxu0 0.0
      %1214 = vmatprep.subr.mxu0 0.0
      %1215 = vmatpush1.xpose.msra.mxu0 0.0
      %1216 = vmatprep.subr.mxu0 0.0
      %1217 = vmatpush1.xpose.msra.mxu0 0.0
      %1218 = vmatprep.subr.mxu0 0.0
      %1219 = vmatpush1.xpose.msra.mxu0 0.0
      %1220 = vmatprep.subr.mxu0 0.0
      %1221 = vmatpush1.xpose.msra.mxu0 0.0
      %1222 = vmatprep.subr.mxu0 0.0
      %1223 = vmatpush1.xpose.msra.mxu0 0.0
      %1224 = vmatprep.subr.mxu0 0.0
      %1225 = vmatpush1.xpose.msra.mxu0 0.0
      %1226 = vmatprep.subr.mxu0 0.0
      %1227 = vmatpush1.xpose.msra.mxu0 0.0
      %1228 = vmatprep.subr.mxu0 0.0
      %1229 = vmatpush1.xpose.msra.mxu0 0.0
      %1230 = vmatprep.subr.mxu0 0.0
      %1231 = vmatpush1.xpose.msra.mxu0 0.0
      %1232 = vmatprep.subr.mxu0 0.0
      %1233 = vmatpush1.xpose.msra.mxu0 0.0
      %1234 = vmatprep.subr.mxu0 0.0
      %1235 = vmatpush1.xpose.msra.mxu0 %v1204
      %1236 = vmatprep.subr.mxu0 0.0
      %1237 = vmatpush1.xpose.msra.mxu0 %v1201
      %1238 = vmatprep.subr.mxu0 0.0
      %1239 = vmatpush2.xpose.msra.mxu0 0.0
      %1240 = vmatprep.subr.mxu0 0.0
      %1241 = vmatpush2.xpose.msra.mxu0 0.0
      %1242 = vmatprep.subr.mxu0 0.0
      %1243 = vmatpush2.xpose.msra.mxu0 0.0
      %1244 = vmatprep.subr.mxu0 0.0
      %1245 = vmatpush2.xpose.msra.mxu0 0.0
      %1246 = vmatprep.subr.mxu0 0.0
      %1247 = vmatpush2.xpose.msra.mxu0 0.0
      %1248 = vmatprep.subr.mxu0 0.0
      %1249 = vmatpush2.xpose.msra.mxu0 0.0
      %1250 = vmatprep.subr.mxu0 0.0
      %1251 = vmatpush2.xpose.msra.mxu0 0.0
      %1252 = vmatprep.subr.mxu0 0.0
      %1253 = vmatpush2.xpose.msra.mxu0 0.0
      %1254 = vmatprep.subr.mxu0 0.0
      %1255 = vmatpush2.xpose.msra.mxu0 0.0
      %1256 = vmatprep.subr.mxu0 0.0
      %1257 = vmatpush2.xpose.msra.mxu0 0.0
      %1258 = vmatprep.subr.mxu0 0.0
      %1259 = vmatpush2.xpose.msra.mxu0 0.0
      %1260 = vmatprep.subr.mxu0 0.0
      %1261 = vmatpush2.xpose.msra.mxu0 0.0
      %1262 = vmatprep.subr.mxu0 0.0
      %1263 = vmatpush2.xpose.msra.mxu0 0.0
      %1264 = vmatprep.subr.mxu0 0.0
      %1265 = vmatpush2.xpose.msra.mxu0 0.0
      %1266 = vmatprep.subr.mxu0 0.0
      %1267 = vmatpush2.xpose.msra.mxu0 0.0
      %1268 = vmatprep.subr.mxu0 0.0
      %1269 = vmatpush2.xpose.msra.mxu0 0.0
      %1270 = vmatprep.mubr.f32.mxu0 0.0
      %1271 = vmatmul.mubr.f32.gmra.mxu0 %v1195
      %v1272 = vpop.f32.mrf.mxu0
      %v1273 = vadd.f32 %v1104, %v1272
      %v1274 = vpop.f32.mrf.mxu0
      %1275 = vmatprep.mubr.f32.mxu0 0.0
      %1276 = vmatmul.mubr.f32.gmra.mxu0 %v1198
      %v1277 = vpop.f32.mrf.mxu0
      %v1278 = vadd.f32 %v1105, %v1277
      %v1279 = vpop.f32.mrf.mxu0
      %1280 = vdwg.mxu0
      %v1282 = vsel %vm1106, %v850, 0
      %v1285 = vsel %vm1106, %v855, 0
      %v1288 = vsel %vm1106, %v966, 0
      %v1291 = vsel %vm1106, %v971, 0
      %1293 = vmatprep.subr.mxu0 0.0
      %1294 = vmatpush1.xpose.msra.mxu0 0.0
      %1295 = vmatprep.subr.mxu0 0.0
      %1296 = vmatpush1.xpose.msra.mxu0 0.0
      %1297 = vmatprep.subr.mxu0 0.0
      %1298 = vmatpush1.xpose.msra.mxu0 0.0
      %1299 = vmatprep.subr.mxu0 0.0
      %1300 = vmatpush1.xpose.msra.mxu0 0.0
      %1301 = vmatprep.subr.mxu0 0.0
      %1302 = vmatpush1.xpose.msra.mxu0 0.0
      %1303 = vmatprep.subr.mxu0 0.0
      %1304 = vmatpush1.xpose.msra.mxu0 0.0
      %1305 = vmatprep.subr.mxu0 0.0
      %1306 = vmatpush1.xpose.msra.mxu0 0.0
      %1307 = vmatprep.subr.mxu0 0.0
      %1308 = vmatpush1.xpose.msra.mxu0 0.0
      %1309 = vmatprep.subr.mxu0 0.0
      %1310 = vmatpush1.xpose.msra.mxu0 0.0
      %1311 = vmatprep.subr.mxu0 0.0
      %1312 = vmatpush1.xpose.msra.mxu0 0.0
      %1313 = vmatprep.subr.mxu0 0.0
      %1314 = vmatpush1.xpose.msra.mxu0 0.0
      %1315 = vmatprep.subr.mxu0 0.0
      %1316 = vmatpush1.xpose.msra.mxu0 0.0
      %1317 = vmatprep.subr.mxu0 0.0
      %1318 = vmatpush1.xpose.msra.mxu0 0.0
      %1319 = vmatprep.subr.mxu0 0.0
      %1320 = vmatpush1.xpose.msra.mxu0 0.0
      %1321 = vmatprep.subr.mxu0 0.0
      %1322 = vmatpush1.xpose.msra.mxu0 %v1291
      %1323 = vmatprep.subr.mxu0 0.0
      %1324 = vmatpush1.xpose.msra.mxu0 %v1288
      %1325 = vmatprep.subr.mxu0 0.0
      %1326 = vmatpush2.xpose.msra.mxu0 0.0
      %1327 = vmatprep.subr.mxu0 0.0
      %1328 = vmatpush2.xpose.msra.mxu0 0.0
      %1329 = vmatprep.subr.mxu0 0.0
      %1330 = vmatpush2.xpose.msra.mxu0 0.0
      %1331 = vmatprep.subr.mxu0 0.0
      %1332 = vmatpush2.xpose.msra.mxu0 0.0
      %1333 = vmatprep.subr.mxu0 0.0
      %1334 = vmatpush2.xpose.msra.mxu0 0.0
      %1335 = vmatprep.subr.mxu0 0.0
      %1336 = vmatpush2.xpose.msra.mxu0 0.0
      %1337 = vmatprep.subr.mxu0 0.0
      %1338 = vmatpush2.xpose.msra.mxu0 0.0
      %1339 = vmatprep.subr.mxu0 0.0
      %1340 = vmatpush2.xpose.msra.mxu0 0.0
      %1341 = vmatprep.subr.mxu0 0.0
      %1342 = vmatpush2.xpose.msra.mxu0 0.0
      %1343 = vmatprep.subr.mxu0 0.0
      %1344 = vmatpush2.xpose.msra.mxu0 0.0
      %1345 = vmatprep.subr.mxu0 0.0
      %1346 = vmatpush2.xpose.msra.mxu0 0.0
      %1347 = vmatprep.subr.mxu0 0.0
      %1348 = vmatpush2.xpose.msra.mxu0 0.0
      %1349 = vmatprep.subr.mxu0 0.0
      %1350 = vmatpush2.xpose.msra.mxu0 0.0
      %1351 = vmatprep.subr.mxu0 0.0
      %1352 = vmatpush2.xpose.msra.mxu0 0.0
      %1353 = vmatprep.subr.mxu0 0.0
      %1354 = vmatpush2.xpose.msra.mxu0 0.0
      %1355 = vmatprep.subr.mxu0 0.0
      %1356 = vmatpush2.xpose.msra.mxu0 0.0
      %1357 = vmatprep.mubr.f32.mxu0 0.0
      %1358 = vmatmul.mubr.f32.gmra.mxu0 %v1282
      %v1359 = vpop.f32.mrf.mxu0
      %v1360 = vadd.f32 %v1104, %v1359
      %v1361 = vpop.f32.mrf.mxu0
      %1362 = vmatprep.mubr.f32.mxu0 0.0
      %1363 = vmatmul.mubr.f32.gmra.mxu0 %v1285
      %v1364 = vpop.f32.mrf.mxu0
      %v1365 = vadd.f32 %v1105, %v1364
      %v1366 = vpop.f32.mrf.mxu0
      %1367 = vdwg.mxu0
      %v1369 = vsel %vm1106, %v860, 0
      %v1372 = vsel %vm1106, %v865, 0
      %v1375 = vsel %vm1106, %v976, 0
      %v1378 = vsel %vm1106, %v981, 0
      %1380 = vmatprep.subr.mxu0 0.0
      %1381 = vmatpush1.xpose.msra.mxu0 0.0
      %1382 = vmatprep.subr.mxu0 0.0
      %1383 = vmatpush1.xpose.msra.mxu0 0.0
      %1384 = vmatprep.subr.mxu0 0.0
      %1385 = vmatpush1.xpose.msra.mxu0 0.0
      %1386 = vmatprep.subr.mxu0 0.0
      %1387 = vmatpush1.xpose.msra.mxu0 0.0
      %1388 = vmatprep.subr.mxu0 0.0
      %1389 = vmatpush1.xpose.msra.mxu0 0.0
      %1390 = vmatprep.subr.mxu0 0.0
      %1391 = vmatpush1.xpose.msra.mxu0 0.0
      %1392 = vmatprep.subr.mxu0 0.0
      %1393 = vmatpush1.xpose.msra.mxu0 0.0
      %1394 = vmatprep.subr.mxu0 0.0
      %1395 = vmatpush1.xpose.msra.mxu0 0.0
      %1396 = vmatprep.subr.mxu0 0.0
      %1397 = vmatpush1.xpose.msra.mxu0 0.0
      %1398 = vmatprep.subr.mxu0 0.0
      %1399 = vmatpush1.xpose.msra.mxu0 0.0
      %1400 = vmatprep.subr.mxu0 0.0
      %1401 = vmatpush1.xpose.msra.mxu0 0.0
      %1402 = vmatprep.subr.mxu0 0.0
      %1403 = vmatpush1.xpose.msra.mxu0 0.0
      %1404 = vmatprep.subr.mxu0 0.0
      %1405 = vmatpush1.xpose.msra.mxu0 0.0
      %1406 = vmatprep.subr.mxu0 0.0
      %1407 = vmatpush1.xpose.msra.mxu0 0.0
      %1408 = vmatprep.subr.mxu0 0.0
      %1409 = vmatpush1.xpose.msra.mxu0 %v1378
      %1410 = vmatprep.subr.mxu0 0.0
      %1411 = vmatpush1.xpose.msra.mxu0 %v1375
      %1412 = vmatprep.subr.mxu0 0.0
      %1413 = vmatpush2.xpose.msra.mxu0 0.0
      %1414 = vmatprep.subr.mxu0 0.0
      %1415 = vmatpush2.xpose.msra.mxu0 0.0
      %1416 = vmatprep.subr.mxu0 0.0
      %1417 = vmatpush2.xpose.msra.mxu0 0.0
      %1418 = vmatprep.subr.mxu0 0.0
      %1419 = vmatpush2.xpose.msra.mxu0 0.0
      %1420 = vmatprep.subr.mxu0 0.0
      %1421 = vmatpush2.xpose.msra.mxu0 0.0
      %1422 = vmatprep.subr.mxu0 0.0
      %1423 = vmatpush2.xpose.msra.mxu0 0.0
      %1424 = vmatprep.subr.mxu0 0.0
      %1425 = vmatpush2.xpose.msra.mxu0 0.0
      %1426 = vmatprep.subr.mxu0 0.0
      %1427 = vmatpush2.xpose.msra.mxu0 0.0
      %1428 = vmatprep.subr.mxu0 0.0
      %1429 = vmatpush2.xpose.msra.mxu0 0.0
      %1430 = vmatprep.subr.mxu0 0.0
      %1431 = vmatpush2.xpose.msra.mxu0 0.0
      %1432 = vmatprep.subr.mxu0 0.0
      %1433 = vmatpush2.xpose.msra.mxu0 0.0
      %1434 = vmatprep.subr.mxu0 0.0
      %1435 = vmatpush2.xpose.msra.mxu0 0.0
      %1436 = vmatprep.subr.mxu0 0.0
      %1437 = vmatpush2.xpose.msra.mxu0 0.0
      %1438 = vmatprep.subr.mxu0 0.0
      %1439 = vmatpush2.xpose.msra.mxu0 0.0
      %1440 = vmatprep.subr.mxu0 0.0
      %1441 = vmatpush2.xpose.msra.mxu0 0.0
      %1442 = vmatprep.subr.mxu0 0.0
      %1443 = vmatpush2.xpose.msra.mxu0 0.0
      %1444 = vmatprep.mubr.f32.mxu0 0.0
      %1445 = vmatmul.mubr.f32.gmra.mxu0 %v1369
      %v1446 = vpop.f32.mrf.mxu0
      %v1447 = vadd.f32 %v1104, %v1446
      %v1448 = vpop.f32.mrf.mxu0
      %1449 = vmatprep.mubr.f32.mxu0 0.0
      %1450 = vmatmul.mubr.f32.gmra.mxu0 %v1372
      %v1451 = vpop.f32.mrf.mxu0
      %v1452 = vadd.f32 %v1105, %v1451
      %v1453 = vpop.f32.mrf.mxu0
      %1454 = vdwg.mxu0
      %vm1455 = vcmask 130048
      %v1456 = vsel %vm1455, %v1186, -inf
      %1457 = vmax.xlane.f32.xlu0 %v1456
      %v1458 = vpop.xlane.xlu0 %1457
      %v1459 = vsel %vm1455, %v1191, -inf
      %1460 = vmax.xlane.f32.xlu0 %v1459
      %v1461 = vpop.xlane.xlu0 %1460
      %v1462 = vsel %vm1455, %v1273, -inf
      %1463 = vmax.xlane.f32.xlu0 %v1462
      %v1464 = vpop.xlane.xlu0 %1463
      %v1465 = vsel %vm1455, %v1278, -inf
      %1466 = vmax.xlane.f32.xlu0 %v1465
      %v1467 = vpop.xlane.xlu0 %1466
      %v1468 = vsel %vm1455, %v1360, -inf
      %1469 = vmax.xlane.f32.xlu0 %v1468
      %v1470 = vpop.xlane.xlu0 %1469
      %v1471 = vsel %vm1455, %v1365, -inf
      %1472 = vmax.xlane.f32.xlu0 %v1471
      %v1473 = vpop.xlane.xlu0 %1472
      %v1474 = vsel %vm1455, %v1447, -inf
      %1475 = vmax.xlane.f32.xlu0 %v1474
      %v1476 = vpop.xlane.xlu0 %1475
      %v1477 = vsel %vm1455, %v1452, -inf
      %1478 = vmax.xlane.f32.xlu0 %v1477
      %v1479 = vpop.xlane.xlu0 %1478
      %v1480 = vsub.f32 %v1186, %v1458
      %v1481 = vsub.f32 %v1191, %v1461
      %v1482 = vsub.f32 %v1273, %v1464
      %v1483 = vsub.f32 %v1278, %v1467
      %v1484 = vsub.f32 %v1360, %v1470
      %v1485 = vsub.f32 %v1365, %v1473
      %v1486 = vsub.f32 %v1447, %v1476
      %v1487 = vsub.f32 %v1452, %v1479
      %v1488 = vmul.f32 %v1480, 1.442695
      %v1489 = vpow.pop %v1488
      %v1490 = vmul.f32 %v1481, 1.442695
      %v1491 = vpow.pop %v1490
      %v1492 = vmul.f32 %v1482, 1.442695
      %v1493 = vpow.pop %v1492
      %v1494 = vmul.f32 %v1483, 1.442695
      %v1495 = vpow.pop %v1494
      %v1496 = vmul.f32 %v1484, 1.442695
      %v1497 = vpow.pop %v1496
      %v1498 = vmul.f32 %v1485, 1.442695
      %v1499 = vpow.pop %v1498
      %v1500 = vmul.f32 %v1486, 1.442695
      %v1501 = vpow.pop %v1500
      %v1502 = vmul.f32 %v1487, 1.442695
      %v1503 = vpow.pop %v1502
      %v1504 = vsel %vm1455, %v1489, 0.0
      %1505 = vadd.xlane.f32.xlu0 %v1504
      %v1506 = vpop.xlane.xlu0 %1505
      %v1507 = vsel %vm1455, %v1491, 0.0
      %1508 = vadd.xlane.f32.xlu0 %v1507
      %v1509 = vpop.xlane.xlu0 %1508
      %v1510 = vsel %vm1455, %v1493, 0.0
      %1511 = vadd.xlane.f32.xlu0 %v1510
      %v1512 = vpop.xlane.xlu0 %1511
      %v1513 = vsel %vm1455, %v1495, 0.0
      %1514 = vadd.xlane.f32.xlu0 %v1513
      %v1515 = vpop.xlane.xlu0 %1514
      %v1516 = vsel %vm1455, %v1497, 0.0
      %1517 = vadd.xlane.f32.xlu0 %v1516
      %v1518 = vpop.xlane.xlu0 %1517
      %v1519 = vsel %vm1455, %v1499, 0.0
      %1520 = vadd.xlane.f32.xlu0 %v1519
      %v1521 = vpop.xlane.xlu0 %1520
      %v1522 = vsel %vm1455, %v1501, 0.0
      %1523 = vadd.xlane.f32.xlu0 %v1522
      %v1524 = vpop.xlane.xlu0 %1523
      %v1525 = vsel %vm1455, %v1503, 0.0
      %1526 = vadd.xlane.f32.xlu0 %v1525
      %v1527 = vpop.xlane.xlu0 %1526
      %v1529 = vsel %vm1455, %v1489, 0
      %v1532 = vsel %vm1455, %v1491, 0
      %1534 = vmatprep.subr.mxu0 0.0
      %1535 = vmatpush1.msra.mxu0 0.0
      %1536 = vmatprep.subr.mxu0 0.0
      %1537 = vmatpush1.msra.mxu0 0.0
      %1538 = vmatprep.subr.mxu0 0.0
      %1539 = vmatpush1.msra.mxu0 0.0
      %1540 = vmatprep.subr.mxu0 0.0
      %1541 = vmatpush1.msra.mxu0 0.0
      %1542 = vmatprep.subr.mxu0 0.0
      %1543 = vmatpush1.msra.mxu0 0.0
      %1544 = vmatprep.subr.mxu0 0.0
      %1545 = vmatpush1.msra.mxu0 0.0
      %1546 = vmatprep.subr.mxu0 0.0
      %1547 = vmatpush1.msra.mxu0 0.0
      %1548 = vmatprep.subr.mxu0 0.0
      %1549 = vmatpush1.msra.mxu0 0.0
      %1550 = vmatprep.subr.mxu0 0.0
      %1551 = vmatpush1.msra.mxu0 0.0
      %1552 = vmatprep.subr.mxu0 0.0
      %1553 = vmatpush1.msra.mxu0 0.0
      %1554 = vmatprep.subr.mxu0 0.0
      %1555 = vmatpush1.msra.mxu0 0.0
      %1556 = vmatprep.subr.mxu0 0.0
      %1557 = vmatpush1.msra.mxu0 0.0
      %1558 = vmatprep.subr.mxu0 0.0
      %1559 = vmatpush1.msra.mxu0 0.0
      %1560 = vmatprep.subr.mxu0 0.0
      %1561 = vmatpush1.msra.mxu0 0.0
      %1562 = vmatprep.subr.mxu0 0.0
      %1563 = vmatpush1.msra.mxu0 %v1067
      %1564 = vmatprep.subr.mxu0 0.0
      %1565 = vmatpush1.msra.mxu0 %v1062
      %1566 = vmatprep.subr.mxu0 0.0
      %1567 = vmatpush2.msra.mxu0 0.0
      %1568 = vmatprep.subr.mxu0 0.0
      %1569 = vmatpush2.msra.mxu0 0.0
      %1570 = vmatprep.subr.mxu0 0.0
      %1571 = vmatpush2.msra.mxu0 0.0
      %1572 = vmatprep.subr.mxu0 0.0
      %1573 = vmatpush2.msra.mxu0 0.0
      %1574 = vmatprep.subr.mxu0 0.0
      %1575 = vmatpush2.msra.mxu0 0.0
      %1576 = vmatprep.subr.mxu0 0.0
      %1577 = vmatpush2.msra.mxu0 0.0
      %1578 = vmatprep.subr.mxu0 0.0
      %1579 = vmatpush2.msra.mxu0 0.0
      %1580 = vmatprep.subr.mxu0 0.0
      %1581 = vmatpush2.msra.mxu0 0.0
      %1582 = vmatprep.subr.mxu0 0.0
      %1583 = vmatpush2.msra.mxu0 0.0
      %1584 = vmatprep.subr.mxu0 0.0
      %1585 = vmatpush2.msra.mxu0 0.0
      %1586 = vmatprep.subr.mxu0 0.0
      %1587 = vmatpush2.msra.mxu0 0.0
      %1588 = vmatprep.subr.mxu0 0.0
      %1589 = vmatpush2.msra.mxu0 0.0
      %1590 = vmatprep.subr.mxu0 0.0
      %1591 = vmatpush2.msra.mxu0 0.0
      %1592 = vmatprep.subr.mxu0 0.0
      %1593 = vmatpush2.msra.mxu0 0.0
      %1594 = vmatprep.subr.mxu0 0.0
      %1595 = vmatpush2.msra.mxu0 0.0
      %1596 = vmatprep.subr.mxu0 0.0
      %1597 = vmatpush2.msra.mxu0 0.0
      %1598 = vmatprep.mubr.f32.mxu0 0.0
      %1599 = vmatmul.mubr.f32.gmra.mxu0 %v1529
      %v1600 = vpop.f32.mrf.mxu0
      %v1601 = vadd.f32 0.0, %v1600
      %v1602 = vpop.f32.mrf.mxu0
      %1603 = vmatprep.mubr.f32.mxu0 0.0
      %1604 = vmatmul.mubr.f32.gmra.mxu0 %v1532
      %v1605 = vpop.f32.mrf.mxu0
      %v1606 = vadd.f32 0.0, %v1605
      %v1607 = vpop.f32.mrf.mxu0
      %1608 = vdwg.mxu0
      %v1610 = vsel %vm1455, %v1493, 0
      %v1613 = vsel %vm1455, %v1495, 0
      %1615 = vmatprep.subr.mxu0 0.0
      %1616 = vmatpush1.msra.mxu0 0.0
      %1617 = vmatprep.subr.mxu0 0.0
      %1618 = vmatpush1.msra.mxu0 0.0
      %1619 = vmatprep.subr.mxu0 0.0
      %1620 = vmatpush1.msra.mxu0 0.0
      %1621 = vmatprep.subr.mxu0 0.0
      %1622 = vmatpush1.msra.mxu0 0.0
      %1623 = vmatprep.subr.mxu0 0.0
      %1624 = vmatpush1.msra.mxu0 0.0
      %1625 = vmatprep.subr.mxu0 0.0
      %1626 = vmatpush1.msra.mxu0 0.0
      %1627 = vmatprep.subr.mxu0 0.0
      %1628 = vmatpush1.msra.mxu0 0.0
      %1629 = vmatprep.subr.mxu0 0.0
      %1630 = vmatpush1.msra.mxu0 0.0
      %1631 = vmatprep.subr.mxu0 0.0
      %1632 = vmatpush1.msra.mxu0 0.0
      %1633 = vmatprep.subr.mxu0 0.0
      %1634 = vmatpush1.msra.mxu0 0.0
      %1635 = vmatprep.subr.mxu0 0.0
      %1636 = vmatpush1.msra.mxu0 0.0
      %1637 = vmatprep.subr.mxu0 0.0
      %1638 = vmatpush1.msra.mxu0 0.0
      %1639 = vmatprep.subr.mxu0 0.0
      %1640 = vmatpush1.msra.mxu0 0.0
      %1641 = vmatprep.subr.mxu0 0.0
      %1642 = vmatpush1.msra.mxu0 0.0
      %1643 = vmatprep.subr.mxu0 0.0
      %1644 = vmatpush1.msra.mxu0 %v1077
      %1645 = vmatprep.subr.mxu0 0.0
      %1646 = vmatpush1.msra.mxu0 %v1072
      %1647 = vmatprep.subr.mxu0 0.0
      %1648 = vmatpush2.msra.mxu0 0.0
      %1649 = vmatprep.subr.mxu0 0.0
      %1650 = vmatpush2.msra.mxu0 0.0
      %1651 = vmatprep.subr.mxu0 0.0
      %1652 = vmatpush2.msra.mxu0 0.0
      %1653 = vmatprep.subr.mxu0 0.0
      %1654 = vmatpush2.msra.mxu0 0.0
      %1655 = vmatprep.subr.mxu0 0.0
      %1656 = vmatpush2.msra.mxu0 0.0
      %1657 = vmatprep.subr.mxu0 0.0
      %1658 = vmatpush2.msra.mxu0 0.0
      %1659 = vmatprep.subr.mxu0 0.0
      %1660 = vmatpush2.msra.mxu0 0.0
      %1661 = vmatprep.subr.mxu0 0.0
      %1662 = vmatpush2.msra.mxu0 0.0
      %1663 = vmatprep.subr.mxu0 0.0
      %1664 = vmatpush2.msra.mxu0 0.0
      %1665 = vmatprep.subr.mxu0 0.0
      %1666 = vmatpush2.msra.mxu0 0.0
      %1667 = vmatprep.subr.mxu0 0.0
      %1668 = vmatpush2.msra.mxu0 0.0
      %1669 = vmatprep.subr.mxu0 0.0
      %1670 = vmatpush2.msra.mxu0 0.0
      %1671 = vmatprep.subr.mxu0 0.0
      %1672 = vmatpush2.msra.mxu0 0.0
      %1673 = vmatprep.subr.mxu0 0.0
      %1674 = vmatpush2.msra.mxu0 0.0
      %1675 = vmatprep.subr.mxu0 0.0
      %1676 = vmatpush2.msra.mxu0 0.0
      %1677 = vmatprep.subr.mxu0 0.0
      %1678 = vmatpush2.msra.mxu0 0.0
      %1679 = vmatprep.mubr.f32.mxu0 0.0
      %1680 = vmatmul.mubr.f32.gmra.mxu0 %v1610
      %v1681 = vpop.f32.mrf.mxu0
      %v1682 = vadd.f32 0.0, %v1681
      %v1683 = vpop.f32.mrf.mxu0
      %1684 = vmatprep.mubr.f32.mxu0 0.0
      %1685 = vmatmul.mubr.f32.gmra.mxu0 %v1613
      %v1686 = vpop.f32.mrf.mxu0
      %v1687 = vadd.f32 0.0, %v1686
      %v1688 = vpop.f32.mrf.mxu0
      %1689 = vdwg.mxu0
      %v1691 = vsel %vm1455, %v1497, 0
      %v1694 = vsel %vm1455, %v1499, 0
      %1696 = vmatprep.subr.mxu0 0.0
      %1697 = vmatpush1.msra.mxu0 0.0
      %1698 = vmatprep.subr.mxu0 0.0
      %1699 = vmatpush1.msra.mxu0 0.0
      %1700 = vmatprep.subr.mxu0 0.0
      %1701 = vmatpush1.msra.mxu0 0.0
      %1702 = vmatprep.subr.mxu0 0.0
      %1703 = vmatpush1.msra.mxu0 0.0
      %1704 = vmatprep.subr.mxu0 0.0
      %1705 = vmatpush1.msra.mxu0 0.0
      %1706 = vmatprep.subr.mxu0 0.0
      %1707 = vmatpush1.msra.mxu0 0.0
      %1708 = vmatprep.subr.mxu0 0.0
      %1709 = vmatpush1.msra.mxu0 0.0
      %1710 = vmatprep.subr.mxu0 0.0
      %1711 = vmatpush1.msra.mxu0 0.0
      %1712 = vmatprep.subr.mxu0 0.0
      %1713 = vmatpush1.msra.mxu0 0.0
      %1714 = vmatprep.subr.mxu0 0.0
      %1715 = vmatpush1.msra.mxu0 0.0
      %1716 = vmatprep.subr.mxu0 0.0
      %1717 = vmatpush1.msra.mxu0 0.0
      %1718 = vmatprep.subr.mxu0 0.0
      %1719 = vmatpush1.msra.mxu0 0.0
      %1720 = vmatprep.subr.mxu0 0.0
      %1721 = vmatpush1.msra.mxu0 0.0
      %1722 = vmatprep.subr.mxu0 0.0
      %1723 = vmatpush1.msra.mxu0 0.0
      %1724 = vmatprep.subr.mxu0 0.0
      %1725 = vmatpush1.msra.mxu0 %v1087
      %1726 = vmatprep.subr.mxu0 0.0
      %1727 = vmatpush1.msra.mxu0 %v1082
      %1728 = vmatprep.subr.mxu0 0.0
      %1729 = vmatpush2.msra.mxu0 0.0
      %1730 = vmatprep.subr.mxu0 0.0
      %1731 = vmatpush2.msra.mxu0 0.0
      %1732 = vmatprep.subr.mxu0 0.0
      %1733 = vmatpush2.msra.mxu0 0.0
      %1734 = vmatprep.subr.mxu0 0.0
      %1735 = vmatpush2.msra.mxu0 0.0
      %1736 = vmatprep.subr.mxu0 0.0
      %1737 = vmatpush2.msra.mxu0 0.0
      %1738 = vmatprep.subr.mxu0 0.0
      %1739 = vmatpush2.msra.mxu0 0.0
      %1740 = vmatprep.subr.mxu0 0.0
      %1741 = vmatpush2.msra.mxu0 0.0
      %1742 = vmatprep.subr.mxu0 0.0
      %1743 = vmatpush2.msra.mxu0 0.0
      %1744 = vmatprep.subr.mxu0 0.0
      %1745 = vmatpush2.msra.mxu0 0.0
      %1746 = vmatprep.subr.mxu0 0.0
      %1747 = vmatpush2.msra.mxu0 0.0
      %1748 = vmatprep.subr.mxu0 0.0
      %1749 = vmatpush2.msra.mxu0 0.0
      %1750 = vmatprep.subr.mxu0 0.0
      %1751 = vmatpush2.msra.mxu0 0.0
      %1752 = vmatprep.subr.mxu0 0.0
      %1753 = vmatpush2.msra.mxu0 0.0
      %1754 = vmatprep.subr.mxu0 0.0
      %1755 = vmatpush2.msra.mxu0 0.0
      %1756 = vmatprep.subr.mxu0 0.0
      %1757 = vmatpush2.msra.mxu0 0.0
      %1758 = vmatprep.subr.mxu0 0.0
      %1759 = vmatpush2.msra.mxu0 0.0
      %1760 = vmatprep.mubr.f32.mxu0 0.0
      %1761 = vmatmul.mubr.f32.gmra.mxu0 %v1691
      %v1762 = vpop.f32.mrf.mxu0
      %v1763 = vadd.f32 0.0, %v1762
      %v1764 = vpop.f32.mrf.mxu0
      %1765 = vmatprep.mubr.f32.mxu0 0.0
      %1766 = vmatmul.mubr.f32.gmra.mxu0 %v1694
      %v1767 = vpop.f32.mrf.mxu0
      %v1768 = vadd.f32 0.0, %v1767
      %v1769 = vpop.f32.mrf.mxu0
      %1770 = vdwg.mxu0
      %v1772 = vsel %vm1455, %v1501, 0
      %v1775 = vsel %vm1455, %v1503, 0
      %1777 = vmatprep.subr.mxu0 0.0
      %1778 = vmatpush1.msra.mxu0 0.0
      %1779 = vmatprep.subr.mxu0 0.0
      %1780 = vmatpush1.msra.mxu0 0.0
      %1781 = vmatprep.subr.mxu0 0.0
      %1782 = vmatpush1.msra.mxu0 0.0
      %1783 = vmatprep.subr.mxu0 0.0
      %1784 = vmatpush1.msra.mxu0 0.0
      %1785 = vmatprep.subr.mxu0 0.0
      %1786 = vmatpush1.msra.mxu0 0.0
      %1787 = vmatprep.subr.mxu0 0.0
      %1788 = vmatpush1.msra.mxu0 0.0
      %1789 = vmatprep.subr.mxu0 0.0
      %1790 = vmatpush1.msra.mxu0 0.0
      %1791 = vmatprep.subr.mxu0 0.0
      %1792 = vmatpush1.msra.mxu0 0.0
      %1793 = vmatprep.subr.mxu0 0.0
      %1794 = vmatpush1.msra.mxu0 0.0
      %1795 = vmatprep.subr.mxu0 0.0
      %1796 = vmatpush1.msra.mxu0 0.0
      %1797 = vmatprep.subr.mxu0 0.0
      %1798 = vmatpush1.msra.mxu0 0.0
      %1799 = vmatprep.subr.mxu0 0.0
      %1800 = vmatpush1.msra.mxu0 0.0
      %1801 = vmatprep.subr.mxu0 0.0
      %1802 = vmatpush1.msra.mxu0 0.0
      %1803 = vmatprep.subr.mxu0 0.0
      %1804 = vmatpush1.msra.mxu0 0.0
      %1805 = vmatprep.subr.mxu0 0.0
      %1806 = vmatpush1.msra.mxu0 %v1097
      %1807 = vmatprep.subr.mxu0 0.0
      %1808 = vmatpush1.msra.mxu0 %v1092
      %1809 = vmatprep.subr.mxu0 0.0
      %1810 = vmatpush2.msra.mxu0 0.0
      %1811 = vmatprep.subr.mxu0 0.0
      %1812 = vmatpush2.msra.mxu0 0.0
      %1813 = vmatprep.subr.mxu0 0.0
      %1814 = vmatpush2.msra.mxu0 0.0
      %1815 = vmatprep.subr.mxu0 0.0
      %1816 = vmatpush2.msra.mxu0 0.0
      %1817 = vmatprep.subr.mxu0 0.0
      %1818 = vmatpush2.msra.mxu0 0.0
      %1819 = vmatprep.subr.mxu0 0.0
      %1820 = vmatpush2.msra.mxu0 0.0
      %1821 = vmatprep.subr.mxu0 0.0
      %1822 = vmatpush2.msra.mxu0 0.0
      %1823 = vmatprep.subr.mxu0 0.0
      %1824 = vmatpush2.msra.mxu0 0.0
      %1825 = vmatprep.subr.mxu0 0.0
      %1826 = vmatpush2.msra.mxu0 0.0
      %1827 = vmatprep.subr.mxu0 0.0
      %1828 = vmatpush2.msra.mxu0 0.0
      %1829 = vmatprep.subr.mxu0 0.0
      %1830 = vmatpush2.msra.mxu0 0.0
      %1831 = vmatprep.subr.mxu0 0.0
      %1832 = vmatpush2.msra.mxu0 0.0
      %1833 = vmatprep.subr.mxu0 0.0
      %1834 = vmatpush2.msra.mxu0 0.0
      %1835 = vmatprep.subr.mxu0 0.0
      %1836 = vmatpush2.msra.mxu0 0.0
      %1837 = vmatprep.subr.mxu0 0.0
      %1838 = vmatpush2.msra.mxu0 0.0
      %1839 = vmatprep.subr.mxu0 0.0
      %1840 = vmatpush2.msra.mxu0 0.0
      %1841 = vmatprep.mubr.f32.mxu0 0.0
      %1842 = vmatmul.mubr.f32.gmra.mxu0 %v1772
      %v1843 = vpop.f32.mrf.mxu0
      %v1844 = vadd.f32 0.0, %v1843
      %v1845 = vpop.f32.mrf.mxu0
      %1846 = vmatprep.mubr.f32.mxu0 0.0
      %1847 = vmatmul.mubr.f32.gmra.mxu0 %v1775
      %v1848 = vpop.f32.mrf.mxu0
      %v1849 = vadd.f32 0.0, %v1848
      %v1850 = vpop.f32.mrf.mxu0
      %1851 = vdwg.mxu0
      %v1852 = vrcp.pop %v1506
      %v1853 = vrcp.pop %v1509
      %v1854 = vrcp.pop %v1512
      %v1855 = vrcp.pop %v1515
      %v1856 = vrcp.pop %v1518
      %v1857 = vrcp.pop %v1521
      %v1858 = vrcp.pop %v1524
      %v1859 = vrcp.pop %v1527
      %v1860 = vmul.f32 %v1601, %v1852
      %v1861 = vmul.f32 %v1606, %v1853
      %v1862 = vmul.f32 %v1682, %v1854
      %v1863 = vmul.f32 %v1687, %v1855
      %v1864 = vmul.f32 %v1763, %v1856
      %v1865 = vmul.f32 %v1768, %v1857
      %v1866 = vmul.f32 %v1844, %v1858
      %v1867 = vmul.f32 %v1849, %v1859
      %s1868 = scalar_lea.vmem %s9, 16
      %v1869 = vld [vmem:[%s1868] sm:$0xff]
      %v1870 = vld [vmem:[%s1868 + $0x8] sm:$0xff]
      %1871 = vrot.lane.b32.xlu0 %v830, 120
      %v1872 = vpop.permute.xlu0 %1871
      %1873 = vrot.lane.b32.xlu0 %v835, 120
      %v1874 = vpop.permute.xlu0 %1873
      %1875 = vrot.lane.b32.xlu0 %v946, 120
      %v1876 = vpop.permute.xlu0 %1875
      %1877 = vrot.lane.b32.xlu0 %v951, 120
      %v1878 = vpop.permute.xlu0 %1877
      %v1879 = vsel %vm1106, %v1872, 0
      %v1881 = vsel %vm1106, %v1874, 0
      %v1883 = vsel %vm1106, %v1876, 0
      %v1885 = vsel %vm1106, %v1878, 0
      %1887 = vmatprep.subr.mxu0 0.0
      %1888 = vmatpush1.xpose.msra.mxu0 0.0
      %1889 = vmatprep.subr.mxu0 0.0
      %1890 = vmatpush1.xpose.msra.mxu0 0.0
      %1891 = vmatprep.subr.mxu0 0.0
      %1892 = vmatpush1.xpose.msra.mxu0 0.0
      %1893 = vmatprep.subr.mxu0 0.0
      %1894 = vmatpush1.xpose.msra.mxu0 0.0
      %1895 = vmatprep.subr.mxu0 0.0
      %1896 = vmatpush1.xpose.msra.mxu0 0.0
      %1897 = vmatprep.subr.mxu0 0.0
      %1898 = vmatpush1.xpose.msra.mxu0 0.0
      %1899 = vmatprep.subr.mxu0 0.0
      %1900 = vmatpush1.xpose.msra.mxu0 0.0
      %1901 = vmatprep.subr.mxu0 0.0
      %1902 = vmatpush1.xpose.msra.mxu0 0.0
      %1903 = vmatprep.subr.mxu0 0.0
      %1904 = vmatpush1.xpose.msra.mxu0 0.0
      %1905 = vmatprep.subr.mxu0 0.0
      %1906 = vmatpush1.xpose.msra.mxu0 0.0
      %1907 = vmatprep.subr.mxu0 0.0
      %1908 = vmatpush1.xpose.msra.mxu0 0.0
      %1909 = vmatprep.subr.mxu0 0.0
      %1910 = vmatpush1.xpose.msra.mxu0 0.0
      %1911 = vmatprep.subr.mxu0 0.0
      %1912 = vmatpush1.xpose.msra.mxu0 0.0
      %1913 = vmatprep.subr.mxu0 0.0
      %1914 = vmatpush1.xpose.msra.mxu0 0.0
      %1915 = vmatprep.subr.mxu0 0.0
      %1916 = vmatpush1.xpose.msra.mxu0 %v1885
      %1917 = vmatprep.subr.mxu0 0.0
      %1918 = vmatpush1.xpose.msra.mxu0 %v1883
      %1919 = vmatprep.subr.mxu0 0.0
      %1920 = vmatpush2.xpose.msra.mxu0 0.0
      %1921 = vmatprep.subr.mxu0 0.0
      %1922 = vmatpush2.xpose.msra.mxu0 0.0
      %1923 = vmatprep.subr.mxu0 0.0
      %1924 = vmatpush2.xpose.msra.mxu0 0.0
      %1925 = vmatprep.subr.mxu0 0.0
      %1926 = vmatpush2.xpose.msra.mxu0 0.0
      %1927 = vmatprep.subr.mxu0 0.0
      %1928 = vmatpush2.xpose.msra.mxu0 0.0
      %1929 = vmatprep.subr.mxu0 0.0
      %1930 = vmatpush2.xpose.msra.mxu0 0.0
      %1931 = vmatprep.subr.mxu0 0.0
      %1932 = vmatpush2.xpose.msra.mxu0 0.0
      %1933 = vmatprep.subr.mxu0 0.0
      %1934 = vmatpush2.xpose.msra.mxu0 0.0
      %1935 = vmatprep.subr.mxu0 0.0
      %1936 = vmatpush2.xpose.msra.mxu0 0.0
      %1937 = vmatprep.subr.mxu0 0.0
      %1938 = vmatpush2.xpose.msra.mxu0 0.0
      %1939 = vmatprep.subr.mxu0 0.0
      %1940 = vmatpush2.xpose.msra.mxu0 0.0
      %1941 = vmatprep.subr.mxu0 0.0
      %1942 = vmatpush2.xpose.msra.mxu0 0.0
      %1943 = vmatprep.subr.mxu0 0.0
      %1944 = vmatpush2.xpose.msra.mxu0 0.0
      %1945 = vmatprep.subr.mxu0 0.0
      %1946 = vmatpush2.xpose.msra.mxu0 0.0
      %1947 = vmatprep.subr.mxu0 0.0
      %1948 = vmatpush2.xpose.msra.mxu0 0.0
      %1949 = vmatprep.subr.mxu0 0.0
      %1950 = vmatpush2.xpose.msra.mxu0 0.0
      %1951 = vmatprep.mubr.f32.mxu0 0.0
      %1952 = vmatmul.mubr.f32.gmra.mxu0 %v1879
      %v1953 = vpop.f32.mrf.mxu0
      %v1954 = vadd.f32 %v1869, %v1953
      %v1955 = vpop.f32.mrf.mxu0
      %1956 = vmatprep.mubr.f32.mxu0 0.0
      %1957 = vmatmul.mubr.f32.gmra.mxu0 %v1881
      %v1958 = vpop.f32.mrf.mxu0
      %v1959 = vadd.f32 %v1870, %v1958
      %v1960 = vpop.f32.mrf.mxu0
      %1961 = vdwg.mxu0
      %1962 = vrot.lane.b32.xlu0 %v840, 120
      %v1963 = vpop.permute.xlu0 %1962
      %1964 = vrot.lane.b32.xlu0 %v845, 120
      %v1965 = vpop.permute.xlu0 %1964
      %1966 = vrot.lane.b32.xlu0 %v956, 120
      %v1967 = vpop.permute.xlu0 %1966
      %1968 = vrot.lane.b32.xlu0 %v961, 120
      %v1969 = vpop.permute.xlu0 %1968
      %v1970 = vsel %vm1106, %v1963, 0
      %v1972 = vsel %vm1106, %v1965, 0
      %v1974 = vsel %vm1106, %v1967, 0
      %v1976 = vsel %vm1106, %v1969, 0
      %1978 = vmatprep.subr.mxu0 0.0
      %1979 = vmatpush1.xpose.msra.mxu0 0.0
      %1980 = vmatprep.subr.mxu0 0.0
      %1981 = vmatpush1.xpose.msra.mxu0 0.0
      %1982 = vmatprep.subr.mxu0 0.0
      %1983 = vmatpush1.xpose.msra.mxu0 0.0
      %1984 = vmatprep.subr.mxu0 0.0
      %1985 = vmatpush1.xpose.msra.mxu0 0.0
      %1986 = vmatprep.subr.mxu0 0.0
      %1987 = vmatpush1.xpose.msra.mxu0 0.0
      %1988 = vmatprep.subr.mxu0 0.0
      %1989 = vmatpush1.xpose.msra.mxu0 0.0
      %1990 = vmatprep.subr.mxu0 0.0
      %1991 = vmatpush1.xpose.msra.mxu0 0.0
      %1992 = vmatprep.subr.mxu0 0.0
      %1993 = vmatpush1.xpose.msra.mxu0 0.0
      %1994 = vmatprep.subr.mxu0 0.0
      %1995 = vmatpush1.xpose.msra.mxu0 0.0
      %1996 = vmatprep.subr.mxu0 0.0
      %1997 = vmatpush1.xpose.msra.mxu0 0.0
      %1998 = vmatprep.subr.mxu0 0.0
      %1999 = vmatpush1.xpose.msra.mxu0 0.0
      %2000 = vmatprep.subr.mxu0 0.0
      %2001 = vmatpush1.xpose.msra.mxu0 0.0
      %2002 = vmatprep.subr.mxu0 0.0
      %2003 = vmatpush1.xpose.msra.mxu0 0.0
      %2004 = vmatprep.subr.mxu0 0.0
      %2005 = vmatpush1.xpose.msra.mxu0 0.0
      %2006 = vmatprep.subr.mxu0 0.0
      %2007 = vmatpush1.xpose.msra.mxu0 %v1976
      %2008 = vmatprep.subr.mxu0 0.0
      %2009 = vmatpush1.xpose.msra.mxu0 %v1974
      %2010 = vmatprep.subr.mxu0 0.0
      %2011 = vmatpush2.xpose.msra.mxu0 0.0
      %2012 = vmatprep.subr.mxu0 0.0
      %2013 = vmatpush2.xpose.msra.mxu0 0.0
      %2014 = vmatprep.subr.mxu0 0.0
      %2015 = vmatpush2.xpose.msra.mxu0 0.0
      %2016 = vmatprep.subr.mxu0 0.0
      %2017 = vmatpush2.xpose.msra.mxu0 0.0
      %2018 = vmatprep.subr.mxu0 0.0
      %2019 = vmatpush2.xpose.msra.mxu0 0.0
      %2020 = vmatprep.subr.mxu0 0.0
      %2021 = vmatpush2.xpose.msra.mxu0 0.0
      %2022 = vmatprep.subr.mxu0 0.0
      %2023 = vmatpush2.xpose.msra.mxu0 0.0
      %2024 = vmatprep.subr.mxu0 0.0
      %2025 = vmatpush2.xpose.msra.mxu0 0.0
      %2026 = vmatprep.subr.mxu0 0.0
      %2027 = vmatpush2.xpose.msra.mxu0 0.0
      %2028 = vmatprep.subr.mxu0 0.0
      %2029 = vmatpush2.xpose.msra.mxu0 0.0
      %2030 = vmatprep.subr.mxu0 0.0
      %2031 = vmatpush2.xpose.msra.mxu0 0.0
      %2032 = vmatprep.subr.mxu0 0.0
      %2033 = vmatpush2.xpose.msra.mxu0 0.0
      %2034 = vmatprep.subr.mxu0 0.0
      %2035 = vmatpush2.xpose.msra.mxu0 0.0
      %2036 = vmatprep.subr.mxu0 0.0
      %2037 = vmatpush2.xpose.msra.mxu0 0.0
      %2038 = vmatprep.subr.mxu0 0.0
      %2039 = vmatpush2.xpose.msra.mxu0 0.0
      %2040 = vmatprep.subr.mxu0 0.0
      %2041 = vmatpush2.xpose.msra.mxu0 0.0
      %2042 = vmatprep.mubr.f32.mxu0 0.0
      %2043 = vmatmul.mubr.f32.gmra.mxu0 %v1970
      %v2044 = vpop.f32.mrf.mxu0
      %v2045 = vadd.f32 %v1869, %v2044
      %v2046 = vpop.f32.mrf.mxu0
      %2047 = vmatprep.mubr.f32.mxu0 0.0
      %2048 = vmatmul.mubr.f32.gmra.mxu0 %v1972
      %v2049 = vpop.f32.mrf.mxu0
      %v2050 = vadd.f32 %v1870, %v2049
      %v2051 = vpop.f32.mrf.mxu0
      %2052 = vdwg.mxu0
      %2053 = vrot.lane.b32.xlu0 %v850, 120
      %v2054 = vpop.permute.xlu0 %2053
      %2055 = vrot.lane.b32.xlu0 %v855, 120
      %v2056 = vpop.permute.xlu0 %2055
      %2057 = vrot.lane.b32.xlu0 %v966, 120
      %v2058 = vpop.permute.xlu0 %2057
      %2059 = vrot.lane.b32.xlu0 %v971, 120
      %v2060 = vpop.permute.xlu0 %2059
      %v2061 = vsel %vm1106, %v2054, 0
      %v2063 = vsel %vm1106, %v2056, 0
      %v2065 = vsel %vm1106, %v2058, 0
      %v2067 = vsel %vm1106, %v2060, 0
      %2069 = vmatprep.subr.mxu0 0.0
      %2070 = vmatpush1.xpose.msra.mxu0 0.0
      %2071 = vmatprep.subr.mxu0 0.0
      %2072 = vmatpush1.xpose.msra.mxu0 0.0
      %2073 = vmatprep.subr.mxu0 0.0
      %2074 = vmatpush1.xpose.msra.mxu0 0.0
      %2075 = vmatprep.subr.mxu0 0.0
      %2076 = vmatpush1.xpose.msra.mxu0 0.0
      %2077 = vmatprep.subr.mxu0 0.0
      %2078 = vmatpush1.xpose.msra.mxu0 0.0
      %2079 = vmatprep.subr.mxu0 0.0
      %2080 = vmatpush1.xpose.msra.mxu0 0.0
      %2081 = vmatprep.subr.mxu0 0.0
      %2082 = vmatpush1.xpose.msra.mxu0 0.0
      %2083 = vmatprep.subr.mxu0 0.0
      %2084 = vmatpush1.xpose.msra.mxu0 0.0
      %2085 = vmatprep.subr.mxu0 0.0
      %2086 = vmatpush1.xpose.msra.mxu0 0.0
      %2087 = vmatprep.subr.mxu0 0.0
      %2088 = vmatpush1.xpose.msra.mxu0 0.0
      %2089 = vmatprep.subr.mxu0 0.0
      %2090 = vmatpush1.xpose.msra.mxu0 0.0
      %2091 = vmatprep.subr.mxu0 0.0
      %2092 = vmatpush1.xpose.msra.mxu0 0.0
      %2093 = vmatprep.subr.mxu0 0.0
      %2094 = vmatpush1.xpose.msra.mxu0 0.0
      %2095 = vmatprep.subr.mxu0 0.0
      %2096 = vmatpush1.xpose.msra.mxu0 0.0
      %2097 = vmatprep.subr.mxu0 0.0
      %2098 = vmatpush1.xpose.msra.mxu0 %v2067
      %2099 = vmatprep.subr.mxu0 0.0
      %2100 = vmatpush1.xpose.msra.mxu0 %v2065
      %2101 = vmatprep.subr.mxu0 0.0
      %2102 = vmatpush2.xpose.msra.mxu0 0.0
      %2103 = vmatprep.subr.mxu0 0.0
      %2104 = vmatpush2.xpose.msra.mxu0 0.0
      %2105 = vmatprep.subr.mxu0 0.0
      %2106 = vmatpush2.xpose.msra.mxu0 0.0
      %2107 = vmatprep.subr.mxu0 0.0
      %2108 = vmatpush2.xpose.msra.mxu0 0.0
      %2109 = vmatprep.subr.mxu0 0.0
      %2110 = vmatpush2.xpose.msra.mxu0 0.0
      %2111 = vmatprep.subr.mxu0 0.0
      %2112 = vmatpush2.xpose.msra.mxu0 0.0
      %2113 = vmatprep.subr.mxu0 0.0
      %2114 = vmatpush2.xpose.msra.mxu0 0.0
      %2115 = vmatprep.subr.mxu0 0.0
      %2116 = vmatpush2.xpose.msra.mxu0 0.0
      %2117 = vmatprep.subr.mxu0 0.0
      %2118 = vmatpush2.xpose.msra.mxu0 0.0
      %2119 = vmatprep.subr.mxu0 0.0
      %2120 = vmatpush2.xpose.msra.mxu0 0.0
      %2121 = vmatprep.subr.mxu0 0.0
      %2122 = vmatpush2.xpose.msra.mxu0 0.0
      %2123 = vmatprep.subr.mxu0 0.0
      %2124 = vmatpush2.xpose.msra.mxu0 0.0
      %2125 = vmatprep.subr.mxu0 0.0
      %2126 = vmatpush2.xpose.msra.mxu0 0.0
      %2127 = vmatprep.subr.mxu0 0.0
      %2128 = vmatpush2.xpose.msra.mxu0 0.0
      %2129 = vmatprep.subr.mxu0 0.0
      %2130 = vmatpush2.xpose.msra.mxu0 0.0
      %2131 = vmatprep.subr.mxu0 0.0
      %2132 = vmatpush2.xpose.msra.mxu0 0.0
      %2133 = vmatprep.mubr.f32.mxu0 0.0
      %2134 = vmatmul.mubr.f32.gmra.mxu0 %v2061
      %v2135 = vpop.f32.mrf.mxu0
      %v2136 = vadd.f32 %v1869, %v2135
      %v2137 = vpop.f32.mrf.mxu0
      %2138 = vmatprep.mubr.f32.mxu0 0.0
      %2139 = vmatmul.mubr.f32.gmra.mxu0 %v2063
      %v2140 = vpop.f32.mrf.mxu0
      %v2141 = vadd.f32 %v1870, %v2140
      %v2142 = vpop.f32.mrf.mxu0
      %2143 = vdwg.mxu0
      %2144 = vrot.lane.b32.xlu0 %v860, 120
      %v2145 = vpop.permute.xlu0 %2144
      %2146 = vrot.lane.b32.xlu0 %v865, 120
      %v2147 = vpop.permute.xlu0 %2146
      %2148 = vrot.lane.b32.xlu0 %v976, 120
      %v2149 = vpop.permute.xlu0 %2148
      %2150 = vrot.lane.b32.xlu0 %v981, 120
      %v2151 = vpop.permute.xlu0 %2150
      %v2152 = vsel %vm1106, %v2145, 0
      %v2154 = vsel %vm1106, %v2147, 0
      %v2156 = vsel %vm1106, %v2149, 0
      %v2158 = vsel %vm1106, %v2151, 0
      %2160 = vmatprep.subr.mxu0 0.0
      %2161 = vmatpush1.xpose.msra.mxu0 0.0
      %2162 = vmatprep.subr.mxu0 0.0
      %2163 = vmatpush1.xpose.msra.mxu0 0.0
      %2164 = vmatprep.subr.mxu0 0.0
      %2165 = vmatpush1.xpose.msra.mxu0 0.0
      %2166 = vmatprep.subr.mxu0 0.0
      %2167 = vmatpush1.xpose.msra.mxu0 0.0
      %2168 = vmatprep.subr.mxu0 0.0
      %2169 = vmatpush1.xpose.msra.mxu0 0.0
      %2170 = vmatprep.subr.mxu0 0.0
      %2171 = vmatpush1.xpose.msra.mxu0 0.0
      %2172 = vmatprep.subr.mxu0 0.0
      %2173 = vmatpush1.xpose.msra.mxu0 0.0
      %2174 = vmatprep.subr.mxu0 0.0
      %2175 = vmatpush1.xpose.msra.mxu0 0.0
      %2176 = vmatprep.subr.mxu0 0.0
      %2177 = vmatpush1.xpose.msra.mxu0 0.0
      %2178 = vmatprep.subr.mxu0 0.0
      %2179 = vmatpush1.xpose.msra.mxu0 0.0
      %2180 = vmatprep.subr.mxu0 0.0
      %2181 = vmatpush1.xpose.msra.mxu0 0.0
      %2182 = vmatprep.subr.mxu0 0.0
      %2183 = vmatpush1.xpose.msra.mxu0 0.0
      %2184 = vmatprep.subr.mxu0 0.0
      %2185 = vmatpush1.xpose.msra.mxu0 0.0
      %2186 = vmatprep.subr.mxu0 0.0
      %2187 = vmatpush1.xpose.msra.mxu0 0.0
      %2188 = vmatprep.subr.mxu0 0.0
      %2189 = vmatpush1.xpose.msra.mxu0 %v2158
      %2190 = vmatprep.subr.mxu0 0.0
      %2191 = vmatpush1.xpose.msra.mxu0 %v2156
      %2192 = vmatprep.subr.mxu0 0.0
      %2193 = vmatpush2.xpose.msra.mxu0 0.0
      %2194 = vmatprep.subr.mxu0 0.0
      %2195 = vmatpush2.xpose.msra.mxu0 0.0
      %2196 = vmatprep.subr.mxu0 0.0
      %2197 = vmatpush2.xpose.msra.mxu0 0.0
      %2198 = vmatprep.subr.mxu0 0.0
      %2199 = vmatpush2.xpose.msra.mxu0 0.0
      %2200 = vmatprep.subr.mxu0 0.0
      %2201 = vmatpush2.xpose.msra.mxu0 0.0
      %2202 = vmatprep.subr.mxu0 0.0
      %2203 = vmatpush2.xpose.msra.mxu0 0.0
      %2204 = vmatprep.subr.mxu0 0.0
      %2205 = vmatpush2.xpose.msra.mxu0 0.0
      %2206 = vmatprep.subr.mxu0 0.0
      %2207 = vmatpush2.xpose.msra.mxu0 0.0
      %2208 = vmatprep.subr.mxu0 0.0
      %2209 = vmatpush2.xpose.msra.mxu0 0.0
      %2210 = vmatprep.subr.mxu0 0.0
      %2211 = vmatpush2.xpose.msra.mxu0 0.0
      %2212 = vmatprep.subr.mxu0 0.0
      %2213 = vmatpush2.xpose.msra.mxu0 0.0
      %2214 = vmatprep.subr.mxu0 0.0
      %2215 = vmatpush2.xpose.msra.mxu0 0.0
      %2216 = vmatprep.subr.mxu0 0.0
      %2217 = vmatpush2.xpose.msra.mxu0 0.0
      %2218 = vmatprep.subr.mxu0 0.0
      %2219 = vmatpush2.xpose.msra.mxu0 0.0
      %2220 = vmatprep.subr.mxu0 0.0
      %2221 = vmatpush2.xpose.msra.mxu0 0.0
      %2222 = vmatprep.subr.mxu0 0.0
      %2223 = vmatpush2.xpose.msra.mxu0 0.0
      %2224 = vmatprep.mubr.f32.mxu0 0.0
      %2225 = vmatmul.mubr.f32.gmra.mxu0 %v2152
      %v2226 = vpop.f32.mrf.mxu0
      %v2227 = vadd.f32 %v1869, %v2226
      %v2228 = vpop.f32.mrf.mxu0
      %2229 = vmatprep.mubr.f32.mxu0 0.0
      %2230 = vmatmul.mubr.f32.gmra.mxu0 %v2154
      %v2231 = vpop.f32.mrf.mxu0
      %v2232 = vadd.f32 %v1870, %v2231
      %v2233 = vpop.f32.mrf.mxu0
      %2234 = vdwg.mxu0
      %v2235 = vsel %vm1455, %v1954, -inf
      %2236 = vmax.xlane.f32.xlu0 %v2235
      %v2237 = vpop.xlane.xlu0 %2236
      %v2238 = vsel %vm1455, %v1959, -inf
      %2239 = vmax.xlane.f32.xlu0 %v2238
      %v2240 = vpop.xlane.xlu0 %2239
      %v2241 = vsel %vm1455, %v2045, -inf
      %2242 = vmax.xlane.f32.xlu0 %v2241
      %v2243 = vpop.xlane.xlu0 %2242
      %v2244 = vsel %vm1455, %v2050, -inf
      %2245 = vmax.xlane.f32.xlu0 %v2244
      %v2246 = vpop.xlane.xlu0 %2245
      %v2247 = vsel %vm1455, %v2136, -inf
      %2248 = vmax.xlane.f32.xlu0 %v2247
      %v2249 = vpop.xlane.xlu0 %2248
      %v2250 = vsel %vm1455, %v2141, -inf
      %2251 = vmax.xlane.f32.xlu0 %v2250
      %v2252 = vpop.xlane.xlu0 %2251
      %v2253 = vsel %vm1455, %v2227, -inf
      %2254 = vmax.xlane.f32.xlu0 %v2253
      %v2255 = vpop.xlane.xlu0 %2254
      %v2256 = vsel %vm1455, %v2232, -inf
      %2257 = vmax.xlane.f32.xlu0 %v2256
      %v2258 = vpop.xlane.xlu0 %2257
      %v2259 = vsub.f32 %v1954, %v2237
      %v2260 = vsub.f32 %v1959, %v2240
      %v2261 = vsub.f32 %v2045, %v2243
      %v2262 = vsub.f32 %v2050, %v2246
      %v2263 = vsub.f32 %v2136, %v2249
      %v2264 = vsub.f32 %v2141, %v2252
      %v2265 = vsub.f32 %v2227, %v2255
      %v2266 = vsub.f32 %v2232, %v2258
      %v2267 = vmul.f32 %v2259, 1.442695
      %v2268 = vpow.pop %v2267
      %v2269 = vmul.f32 %v2260, 1.442695
      %v2270 = vpow.pop %v2269
      %v2271 = vmul.f32 %v2261, 1.442695
      %v2272 = vpow.pop %v2271
      %v2273 = vmul.f32 %v2262, 1.442695
      %v2274 = vpow.pop %v2273
      %v2275 = vmul.f32 %v2263, 1.442695
      %v2276 = vpow.pop %v2275
      %v2277 = vmul.f32 %v2264, 1.442695
      %v2278 = vpow.pop %v2277
      %v2279 = vmul.f32 %v2265, 1.442695
      %v2280 = vpow.pop %v2279
      %v2281 = vmul.f32 %v2266, 1.442695
      %v2282 = vpow.pop %v2281
      %v2283 = vsel %vm1455, %v2268, 0.0
      %2284 = vadd.xlane.f32.xlu0 %v2283
      %v2285 = vpop.xlane.xlu0 %2284
      %v2286 = vsel %vm1455, %v2270, 0.0
      %2287 = vadd.xlane.f32.xlu0 %v2286
      %v2288 = vpop.xlane.xlu0 %2287
      %v2289 = vsel %vm1455, %v2272, 0.0
      %2290 = vadd.xlane.f32.xlu0 %v2289
      %v2291 = vpop.xlane.xlu0 %2290
      %v2292 = vsel %vm1455, %v2274, 0.0
      %2293 = vadd.xlane.f32.xlu0 %v2292
      %v2294 = vpop.xlane.xlu0 %2293
      %v2295 = vsel %vm1455, %v2276, 0.0
      %2296 = vadd.xlane.f32.xlu0 %v2295
      %v2297 = vpop.xlane.xlu0 %2296
      %v2298 = vsel %vm1455, %v2278, 0.0
      %2299 = vadd.xlane.f32.xlu0 %v2298
      %v2300 = vpop.xlane.xlu0 %2299
      %v2301 = vsel %vm1455, %v2280, 0.0
      %2302 = vadd.xlane.f32.xlu0 %v2301
      %v2303 = vpop.xlane.xlu0 %2302
      %v2304 = vsel %vm1455, %v2282, 0.0
      %2305 = vadd.xlane.f32.xlu0 %v2304
      %v2306 = vpop.xlane.xlu0 %2305
      %2309 = vrot.lane.b32.xlu0 %v1062, 120
      %v2310 = vpop.permute.xlu0 %2309
      %2311 = vrot.lane.b32.xlu0 %v1067, 120
      %v2312 = vpop.permute.xlu0 %2311
      %v2316 = vsel %vm1455, %v2268, 0
      %v2319 = vsel %vm1455, %v2270, 0
      %2321 = vmatprep.subr.mxu0 0.0
      %2322 = vmatpush1.msra.mxu0 0.0
      %2323 = vmatprep.subr.mxu0 0.0
      %2324 = vmatpush1.msra.mxu0 0.0
      %2325 = vmatprep.subr.mxu0 0.0
      %2326 = vmatpush1.msra.mxu0 0.0
      %2327 = vmatprep.subr.mxu0 0.0
      %2328 = vmatpush1.msra.mxu0 0.0
      %2329 = vmatprep.subr.mxu0 0.0
      %2330 = vmatpush1.msra.mxu0 0.0
      %2331 = vmatprep.subr.mxu0 0.0
      %2332 = vmatpush1.msra.mxu0 0.0
      %2333 = vmatprep.subr.mxu0 0.0
      %2334 = vmatpush1.msra.mxu0 0.0
      %2335 = vmatprep.subr.mxu0 0.0
      %2336 = vmatpush1.msra.mxu0 0.0
      %2337 = vmatprep.subr.mxu0 0.0
      %2338 = vmatpush1.msra.mxu0 0.0
      %2339 = vmatprep.subr.mxu0 0.0
      %2340 = vmatpush1.msra.mxu0 0.0
      %2341 = vmatprep.subr.mxu0 0.0
      %2342 = vmatpush1.msra.mxu0 0.0
      %2343 = vmatprep.subr.mxu0 0.0
      %2344 = vmatpush1.msra.mxu0 0.0
      %2345 = vmatprep.subr.mxu0 0.0
      %2346 = vmatpush1.msra.mxu0 0.0
      %2347 = vmatprep.subr.mxu0 0.0
      %2348 = vmatpush1.msra.mxu0 0.0
      %2349 = vmatprep.subr.mxu0 0.0
      %2350 = vmatpush1.msra.mxu0 %v2312
      %2351 = vmatprep.subr.mxu0 0.0
      %2352 = vmatpush1.msra.mxu0 %v2310
      %2353 = vmatprep.subr.mxu0 0.0
      %2354 = vmatpush2.msra.mxu0 0.0
      %2355 = vmatprep.subr.mxu0 0.0
      %2356 = vmatpush2.msra.mxu0 0.0
      %2357 = vmatprep.subr.mxu0 0.0
      %2358 = vmatpush2.msra.mxu0 0.0
      %2359 = vmatprep.subr.mxu0 0.0
      %2360 = vmatpush2.msra.mxu0 0.0
      %2361 = vmatprep.subr.mxu0 0.0
      %2362 = vmatpush2.msra.mxu0 0.0
      %2363 = vmatprep.subr.mxu0 0.0
      %2364 = vmatpush2.msra.mxu0 0.0
      %2365 = vmatprep.subr.mxu0 0.0
      %2366 = vmatpush2.msra.mxu0 0.0
      %2367 = vmatprep.subr.mxu0 0.0
      %2368 = vmatpush2.msra.mxu0 0.0
      %2369 = vmatprep.subr.mxu0 0.0
      %2370 = vmatpush2.msra.mxu0 0.0
      %2371 = vmatprep.subr.mxu0 0.0
      %2372 = vmatpush2.msra.mxu0 0.0
      %2373 = vmatprep.subr.mxu0 0.0
      %2374 = vmatpush2.msra.mxu0 0.0
      %2375 = vmatprep.subr.mxu0 0.0
      %2376 = vmatpush2.msra.mxu0 0.0
      %2377 = vmatprep.subr.mxu0 0.0
      %2378 = vmatpush2.msra.mxu0 0.0
      %2379 = vmatprep.subr.mxu0 0.0
      %2380 = vmatpush2.msra.mxu0 0.0
      %2381 = vmatprep.subr.mxu0 0.0
      %2382 = vmatpush2.msra.mxu0 0.0
      %2383 = vmatprep.subr.mxu0 0.0
      %2384 = vmatpush2.msra.mxu0 0.0
      %2385 = vmatprep.mubr.f32.mxu0 0.0
      %2386 = vmatmul.mubr.f32.gmra.mxu0 %v2316
      %v2387 = vpop.f32.mrf.mxu0
      %v2388 = vadd.f32 0.0, %v2387
      %v2389 = vpop.f32.mrf.mxu0
      %2390 = vmatprep.mubr.f32.mxu0 0.0
      %2391 = vmatmul.mubr.f32.gmra.mxu0 %v2319
      %v2392 = vpop.f32.mrf.mxu0
      %v2393 = vadd.f32 0.0, %v2392
      %v2394 = vpop.f32.mrf.mxu0
      %2395 = vdwg.mxu0
      %2398 = vrot.lane.b32.xlu0 %v1072, 120
      %v2399 = vpop.permute.xlu0 %2398
      %2400 = vrot.lane.b32.xlu0 %v1077, 120
      %v2401 = vpop.permute.xlu0 %2400
      %v2405 = vsel %vm1455, %v2272, 0
      %v2408 = vsel %vm1455, %v2274, 0
      %2410 = vmatprep.subr.mxu0 0.0
      %2411 = vmatpush1.msra.mxu0 0.0
      %2412 = vmatprep.subr.mxu0 0.0
      %2413 = vmatpush1.msra.mxu0 0.0
      %2414 = vmatprep.subr.mxu0 0.0
      %2415 = vmatpush1.msra.mxu0 0.0
      %2416 = vmatprep.subr.mxu0 0.0
      %2417 = vmatpush1.msra.mxu0 0.0
      %2418 = vmatprep.subr.mxu0 0.0
      %2419 = vmatpush1.msra.mxu0 0.0
      %2420 = vmatprep.subr.mxu0 0.0
      %2421 = vmatpush1.msra.mxu0 0.0
      %2422 = vmatprep.subr.mxu0 0.0
      %2423 = vmatpush1.msra.mxu0 0.0
      %2424 = vmatprep.subr.mxu0 0.0
      %2425 = vmatpush1.msra.mxu0 0.0
      %2426 = vmatprep.subr.mxu0 0.0
      %2427 = vmatpush1.msra.mxu0 0.0
      %2428 = vmatprep.subr.mxu0 0.0
      %2429 = vmatpush1.msra.mxu0 0.0
      %2430 = vmatprep.subr.mxu0 0.0
      %2431 = vmatpush1.msra.mxu0 0.0
      %2432 = vmatprep.subr.mxu0 0.0
      %2433 = vmatpush1.msra.mxu0 0.0
      %2434 = vmatprep.subr.mxu0 0.0
      %2435 = vmatpush1.msra.mxu0 0.0
      %2436 = vmatprep.subr.mxu0 0.0
      %2437 = vmatpush1.msra.mxu0 0.0
      %2438 = vmatprep.subr.mxu0 0.0
      %2439 = vmatpush1.msra.mxu0 %v2401
      %2440 = vmatprep.subr.mxu0 0.0
      %2441 = vmatpush1.msra.mxu0 %v2399
      %2442 = vmatprep.subr.mxu0 0.0
      %2443 = vmatpush2.msra.mxu0 0.0
      %2444 = vmatprep.subr.mxu0 0.0
      %2445 = vmatpush2.msra.mxu0 0.0
      %2446 = vmatprep.subr.mxu0 0.0
      %2447 = vmatpush2.msra.mxu0 0.0
      %2448 = vmatprep.subr.mxu0 0.0
      %2449 = vmatpush2.msra.mxu0 0.0
      %2450 = vmatprep.subr.mxu0 0.0
      %2451 = vmatpush2.msra.mxu0 0.0
      %2452 = vmatprep.subr.mxu0 0.0
      %2453 = vmatpush2.msra.mxu0 0.0
      %2454 = vmatprep.subr.mxu0 0.0
      %2455 = vmatpush2.msra.mxu0 0.0
      %2456 = vmatprep.subr.mxu0 0.0
      %2457 = vmatpush2.msra.mxu0 0.0
      %2458 = vmatprep.subr.mxu0 0.0
      %2459 = vmatpush2.msra.mxu0 0.0
      %2460 = vmatprep.subr.mxu0 0.0
      %2461 = vmatpush2.msra.mxu0 0.0
      %2462 = vmatprep.subr.mxu0 0.0
      %2463 = vmatpush2.msra.mxu0 0.0
      %2464 = vmatprep.subr.mxu0 0.0
      %2465 = vmatpush2.msra.mxu0 0.0
      %2466 = vmatprep.subr.mxu0 0.0
      %2467 = vmatpush2.msra.mxu0 0.0
      %2468 = vmatprep.subr.mxu0 0.0
      %2469 = vmatpush2.msra.mxu0 0.0
      %2470 = vmatprep.subr.mxu0 0.0
      %2471 = vmatpush2.msra.mxu0 0.0
      %2472 = vmatprep.subr.mxu0 0.0
      %2473 = vmatpush2.msra.mxu0 0.0
      %2474 = vmatprep.mubr.f32.mxu0 0.0
      %2475 = vmatmul.mubr.f32.gmra.mxu0 %v2405
      %v2476 = vpop.f32.mrf.mxu0
      %v2477 = vadd.f32 0.0, %v2476
      %v2478 = vpop.f32.mrf.mxu0
      %2479 = vmatprep.mubr.f32.mxu0 0.0
      %2480 = vmatmul.mubr.f32.gmra.mxu0 %v2408
      %v2481 = vpop.f32.mrf.mxu0
      %v2482 = vadd.f32 0.0, %v2481
      %v2483 = vpop.f32.mrf.mxu0
      %2484 = vdwg.mxu0
      %2487 = vrot.lane.b32.xlu0 %v1082, 120
      %v2488 = vpop.permute.xlu0 %2487
      %2489 = vrot.lane.b32.xlu0 %v1087, 120
      %v2490 = vpop.permute.xlu0 %2489
      %v2494 = vsel %vm1455, %v2276, 0
      %v2497 = vsel %vm1455, %v2278, 0
      %2499 = vmatprep.subr.mxu0 0.0
      %2500 = vmatpush1.msra.mxu0 0.0
      %2501 = vmatprep.subr.mxu0 0.0
      %2502 = vmatpush1.msra.mxu0 0.0
      %2503 = vmatprep.subr.mxu0 0.0
      %2504 = vmatpush1.msra.mxu0 0.0
      %2505 = vmatprep.subr.mxu0 0.0
      %2506 = vmatpush1.msra.mxu0 0.0
      %2507 = vmatprep.subr.mxu0 0.0
      %2508 = vmatpush1.msra.mxu0 0.0
      %2509 = vmatprep.subr.mxu0 0.0
      %2510 = vmatpush1.msra.mxu0 0.0
      %2511 = vmatprep.subr.mxu0 0.0
      %2512 = vmatpush1.msra.mxu0 0.0
      %2513 = vmatprep.subr.mxu0 0.0
      %2514 = vmatpush1.msra.mxu0 0.0
      %2515 = vmatprep.subr.mxu0 0.0
      %2516 = vmatpush1.msra.mxu0 0.0
      %2517 = vmatprep.subr.mxu0 0.0
      %2518 = vmatpush1.msra.mxu0 0.0
      %2519 = vmatprep.subr.mxu0 0.0
      %2520 = vmatpush1.msra.mxu0 0.0
      %2521 = vmatprep.subr.mxu0 0.0
      %2522 = vmatpush1.msra.mxu0 0.0
      %2523 = vmatprep.subr.mxu0 0.0
      %2524 = vmatpush1.msra.mxu0 0.0
      %2525 = vmatprep.subr.mxu0 0.0
      %2526 = vmatpush1.msra.mxu0 0.0
      %2527 = vmatprep.subr.mxu0 0.0
      %2528 = vmatpush1.msra.mxu0 %v2490
      %2529 = vmatprep.subr.mxu0 0.0
      %2530 = vmatpush1.msra.mxu0 %v2488
      %2531 = vmatprep.subr.mxu0 0.0
      %2532 = vmatpush2.msra.mxu0 0.0
      %2533 = vmatprep.subr.mxu0 0.0
      %2534 = vmatpush2.msra.mxu0 0.0
      %2535 = vmatprep.subr.mxu0 0.0
      %2536 = vmatpush2.msra.mxu0 0.0
      %2537 = vmatprep.subr.mxu0 0.0
      %2538 = vmatpush2.msra.mxu0 0.0
      %2539 = vmatprep.subr.mxu0 0.0
      %2540 = vmatpush2.msra.mxu0 0.0
      %2541 = vmatprep.subr.mxu0 0.0
      %2542 = vmatpush2.msra.mxu0 0.0
      %2543 = vmatprep.subr.mxu0 0.0
      %2544 = vmatpush2.msra.mxu0 0.0
      %2545 = vmatprep.subr.mxu0 0.0
      %2546 = vmatpush2.msra.mxu0 0.0
      %2547 = vmatprep.subr.mxu0 0.0
      %2548 = vmatpush2.msra.mxu0 0.0
      %2549 = vmatprep.subr.mxu0 0.0
      %2550 = vmatpush2.msra.mxu0 0.0
      %2551 = vmatprep.subr.mxu0 0.0
      %2552 = vmatpush2.msra.mxu0 0.0
      %2553 = vmatprep.subr.mxu0 0.0
      %2554 = vmatpush2.msra.mxu0 0.0
      %2555 = vmatprep.subr.mxu0 0.0
      %2556 = vmatpush2.msra.mxu0 0.0
      %2557 = vmatprep.subr.mxu0 0.0
      %2558 = vmatpush2.msra.mxu0 0.0
      %2559 = vmatprep.subr.mxu0 0.0
      %2560 = vmatpush2.msra.mxu0 0.0
      %2561 = vmatprep.subr.mxu0 0.0
      %2562 = vmatpush2.msra.mxu0 0.0
      %2563 = vmatprep.mubr.f32.mxu0 0.0
      %2564 = vmatmul.mubr.f32.gmra.mxu0 %v2494
      %v2565 = vpop.f32.mrf.mxu0
      %v2566 = vadd.f32 0.0, %v2565
      %v2567 = vpop.f32.mrf.mxu0
      %2568 = vmatprep.mubr.f32.mxu0 0.0
      %2569 = vmatmul.mubr.f32.gmra.mxu0 %v2497
      %v2570 = vpop.f32.mrf.mxu0
      %v2571 = vadd.f32 0.0, %v2570
      %v2572 = vpop.f32.mrf.mxu0
      %2573 = vdwg.mxu0
      %2576 = vrot.lane.b32.xlu0 %v1092, 120
      %v2577 = vpop.permute.xlu0 %2576
      %2578 = vrot.lane.b32.xlu0 %v1097, 120
      %v2579 = vpop.permute.xlu0 %2578
      %v2583 = vsel %vm1455, %v2280, 0
      %v2586 = vsel %vm1455, %v2282, 0
      %2588 = vmatprep.subr.mxu0 0.0
      %2589 = vmatpush1.msra.mxu0 0.0
      %2590 = vmatprep.subr.mxu0 0.0
      %2591 = vmatpush1.msra.mxu0 0.0
      %2592 = vmatprep.subr.mxu0 0.0
      %2593 = vmatpush1.msra.mxu0 0.0
      %2594 = vmatprep.subr.mxu0 0.0
      %2595 = vmatpush1.msra.mxu0 0.0
      %2596 = vmatprep.subr.mxu0 0.0
      %2597 = vmatpush1.msra.mxu0 0.0
      %2598 = vmatprep.subr.mxu0 0.0
      %2599 = vmatpush1.msra.mxu0 0.0
      %2600 = vmatprep.subr.mxu0 0.0
      %2601 = vmatpush1.msra.mxu0 0.0
      %2602 = vmatprep.subr.mxu0 0.0
      %2603 = vmatpush1.msra.mxu0 0.0
      %2604 = vmatprep.subr.mxu0 0.0
      %2605 = vmatpush1.msra.mxu0 0.0
      %2606 = vmatprep.subr.mxu0 0.0
      %2607 = vmatpush1.msra.mxu0 0.0
      %2608 = vmatprep.subr.mxu0 0.0
      %2609 = vmatpush1.msra.mxu0 0.0
      %2610 = vmatprep.subr.mxu0 0.0
      %2611 = vmatpush1.msra.mxu0 0.0
      %2612 = vmatprep.subr.mxu0 0.0
      %2613 = vmatpush1.msra.mxu0 0.0
      %2614 = vmatprep.subr.mxu0 0.0
      %2615 = vmatpush1.msra.mxu0 0.0
      %2616 = vmatprep.subr.mxu0 0.0
      %2617 = vmatpush1.msra.mxu0 %v2579
      %2618 = vmatprep.subr.mxu0 0.0
      %2619 = vmatpush1.msra.mxu0 %v2577
      %2620 = vmatprep.subr.mxu0 0.0
      %2621 = vmatpush2.msra.mxu0 0.0
      %2622 = vmatprep.subr.mxu0 0.0
      %2623 = vmatpush2.msra.mxu0 0.0
      %2624 = vmatprep.subr.mxu0 0.0
      %2625 = vmatpush2.msra.mxu0 0.0
      %2626 = vmatprep.subr.mxu0 0.0
      %2627 = vmatpush2.msra.mxu0 0.0
      %2628 = vmatprep.subr.mxu0 0.0
      %2629 = vmatpush2.msra.mxu0 0.0
      %2630 = vmatprep.subr.mxu0 0.0
      %2631 = vmatpush2.msra.mxu0 0.0
      %2632 = vmatprep.subr.mxu0 0.0
      %2633 = vmatpush2.msra.mxu0 0.0
      %2634 = vmatprep.subr.mxu0 0.0
      %2635 = vmatpush2.msra.mxu0 0.0
      %2636 = vmatprep.subr.mxu0 0.0
      %2637 = vmatpush2.msra.mxu0 0.0
      %2638 = vmatprep.subr.mxu0 0.0
      %2639 = vmatpush2.msra.mxu0 0.0
      %2640 = vmatprep.subr.mxu0 0.0
      %2641 = vmatpush2.msra.mxu0 0.0
      %2642 = vmatprep.subr.mxu0 0.0
      %2643 = vmatpush2.msra.mxu0 0.0
      %2644 = vmatprep.subr.mxu0 0.0
      %2645 = vmatpush2.msra.mxu0 0.0
      %2646 = vmatprep.subr.mxu0 0.0
      %2647 = vmatpush2.msra.mxu0 0.0
      %2648 = vmatprep.subr.mxu0 0.0
      %2649 = vmatpush2.msra.mxu0 0.0
      %2650 = vmatprep.subr.mxu0 0.0
      %2651 = vmatpush2.msra.mxu0 0.0
      %2652 = vmatprep.mubr.f32.mxu0 0.0
      %2653 = vmatmul.mubr.f32.gmra.mxu0 %v2583
      %v2654 = vpop.f32.mrf.mxu0
      %v2655 = vadd.f32 0.0, %v2654
      %v2656 = vpop.f32.mrf.mxu0
      %2657 = vmatprep.mubr.f32.mxu0 0.0
      %2658 = vmatmul.mubr.f32.gmra.mxu0 %v2586
      %v2659 = vpop.f32.mrf.mxu0
      %v2660 = vadd.f32 0.0, %v2659
      %v2661 = vpop.f32.mrf.mxu0
      %2662 = vdwg.mxu0
      %v2663 = vrcp.pop %v2285
      %v2664 = vrcp.pop %v2288
      %v2665 = vrcp.pop %v2291
      %v2666 = vrcp.pop %v2294
      %v2667 = vrcp.pop %v2297
      %v2668 = vrcp.pop %v2300
      %v2669 = vrcp.pop %v2303
      %v2670 = vrcp.pop %v2306
      %v2671 = vmul.f32 %v2388, %v2663
      %v2672 = vmul.f32 %v2393, %v2664
      %v2673 = vmul.f32 %v2477, %v2665
      %v2674 = vmul.f32 %v2482, %v2666
      %v2675 = vmul.f32 %v2566, %v2667
      %v2676 = vmul.f32 %v2571, %v2668
      %v2677 = vmul.f32 %v2655, %v2669
      %v2678 = vmul.f32 %v2660, %v2670
      %v2680 = vsel %vm1106, %v2671, 0
      %v2683 = vsel %vm1106, %v2672, 0
      %v2686 = vsel %vm1106, %v2673, 0
      %v2689 = vsel %vm1106, %v2674, 0
      %v2692 = vsel %vm1106, %v2675, 0
      %v2695 = vsel %vm1106, %v2676, 0
      %v2698 = vsel %vm1106, %v2677, 0
      %v2701 = vsel %vm1106, %v2678, 0
      %2703 = vmatprep.subr.mxu0 0.0
      %2704 = vmatpush1.msra.mxu0 0.0
      %2705 = vmatprep.subr.mxu0 0.0
      %2706 = vmatpush1.msra.mxu0 0.0
      %2707 = vmatprep.subr.mxu0 0.0
      %2708 = vmatpush1.msra.mxu0 0.0
      %2709 = vmatprep.subr.mxu0 0.0
      %2710 = vmatpush1.msra.mxu0 0.0
      %2711 = vmatprep.subr.mxu0 0.0
      %2712 = vmatpush1.msra.mxu0 0.0
      %2713 = vmatprep.subr.mxu0 0.0
      %2714 = vmatpush1.msra.mxu0 0.0
      %2715 = vmatprep.subr.mxu0 0.0
      %2716 = vmatpush1.msra.mxu0 0.0
      %2717 = vmatprep.subr.mxu0 0.0
      %2718 = vmatpush1.msra.mxu0 0.0
      %2719 = vmatprep.subr.mxu0 0.0
      %2720 = vmatpush1.msra.mxu0 0.0
      %2721 = vmatprep.subr.mxu0 0.0
      %2722 = vmatpush1.msra.mxu0 0.0
      %2723 = vmatprep.subr.mxu0 0.0
      %2724 = vmatpush1.msra.mxu0 0.0
      %2725 = vmatprep.subr.mxu0 0.0
      %2726 = vmatpush1.msra.mxu0 0.0
      %2727 = vmatprep.subr.mxu0 0.0
      %2728 = vmatpush1.msra.mxu0 0.0
      %2729 = vmatprep.subr.mxu0 0.0
      %2730 = vmatpush1.msra.mxu0 0.0
      %2731 = vmatprep.subr.mxu0 0.0
      %2732 = vmatpush1.msra.mxu0 0.0
      %2733 = vmatprep.subr.mxu0 0.0
      %2734 = vmatpush1.msra.mxu0 %v1101
      %2735 = vmatprep.subr.mxu0 0.0
      %2736 = vmatpush2.msra.mxu0 0.0
      %2737 = vmatprep.subr.mxu0 0.0
      %2738 = vmatpush2.msra.mxu0 0.0
      %2739 = vmatprep.subr.mxu0 0.0
      %2740 = vmatpush2.msra.mxu0 0.0
      %2741 = vmatprep.subr.mxu0 0.0
      %2742 = vmatpush2.msra.mxu0 0.0
      %2743 = vmatprep.subr.mxu0 0.0
      %2744 = vmatpush2.msra.mxu0 0.0
      %2745 = vmatprep.subr.mxu0 0.0
      %2746 = vmatpush2.msra.mxu0 0.0
      %2747 = vmatprep.subr.mxu0 0.0
      %2748 = vmatpush2.msra.mxu0 0.0
      %2749 = vmatprep.subr.mxu0 0.0
      %2750 = vmatpush2.msra.mxu0 0.0
      %2751 = vmatprep.subr.mxu0 0.0
      %2752 = vmatpush2.msra.mxu0 0.0
      %2753 = vmatprep.subr.mxu0 0.0
      %2754 = vmatpush2.msra.mxu0 0.0
      %2755 = vmatprep.subr.mxu0 0.0
      %2756 = vmatpush2.msra.mxu0 0.0
      %2757 = vmatprep.subr.mxu0 0.0
      %2758 = vmatpush2.msra.mxu0 0.0
      %2759 = vmatprep.subr.mxu0 0.0
      %2760 = vmatpush2.msra.mxu0 0.0
      %2761 = vmatprep.subr.mxu0 0.0
      %2762 = vmatpush2.msra.mxu0 0.0
      %2763 = vmatprep.subr.mxu0 0.0
      %2764 = vmatpush2.msra.mxu0 0.0
      %2765 = vmatprep.subr.mxu0 0.0
      %2766 = vmatpush2.msra.mxu0 0.0
      %2767 = vmatprep.mubr.f32.mxu0 0.0
      %2768 = vmatmul.mubr.f32.gmra.mxu0 %v2680
      %v2769 = vpop.f32.mrf.mxu0
      %v2770 = vadd.f32 0.0, %v2769
      %v2771 = vpop.f32.mrf.mxu0
      %2772 = vmatprep.mubr.f32.mxu0 0.0
      %2773 = vmatmul.mubr.f32.gmra.mxu0 %v2683
      %v2774 = vpop.f32.mrf.mxu0
      %v2775 = vadd.f32 0.0, %v2774
      %v2776 = vpop.f32.mrf.mxu0
      %2777 = vmatprep.mubr.f32.mxu0 0.0
      %2778 = vmatmul.mubr.f32.gmra.mxu0 %v2686
      %v2779 = vpop.f32.mrf.mxu0
      %v2780 = vadd.f32 0.0, %v2779
      %v2781 = vpop.f32.mrf.mxu0
      %2782 = vmatprep.mubr.f32.mxu0 0.0
      %2783 = vmatmul.mubr.f32.gmra.mxu0 %v2689
      %v2784 = vpop.f32.mrf.mxu0
      %v2785 = vadd.f32 0.0, %v2784
      %v2786 = vpop.f32.mrf.mxu0
      %2787 = vmatprep.mubr.f32.mxu0 0.0
      %2788 = vmatmul.mubr.f32.gmra.mxu0 %v2692
      %v2789 = vpop.f32.mrf.mxu0
      %v2790 = vadd.f32 0.0, %v2789
      %v2791 = vpop.f32.mrf.mxu0
      %2792 = vmatprep.mubr.f32.mxu0 0.0
      %2793 = vmatmul.mubr.f32.gmra.mxu0 %v2695
      %v2794 = vpop.f32.mrf.mxu0
      %v2795 = vadd.f32 0.0, %v2794
      %v2796 = vpop.f32.mrf.mxu0
      %2797 = vmatprep.mubr.f32.mxu0 0.0
      %2798 = vmatmul.mubr.f32.gmra.mxu0 %v2698
      %v2799 = vpop.f32.mrf.mxu0
      %v2800 = vadd.f32 0.0, %v2799
      %v2801 = vpop.f32.mrf.mxu0
      %2802 = vmatprep.mubr.f32.mxu0 0.0
      %2803 = vmatmul.mubr.f32.gmra.mxu0 %v2701
      %v2804 = vpop.f32.mrf.mxu0
      %v2805 = vadd.f32 0.0, %v2804
      %v2806 = vpop.f32.mrf.mxu0
      %2807 = vdwg.mxu0
      %v2809 = vsel %vm1106, %v1860, 0
      %v2812 = vsel %vm1106, %v1861, 0
      %v2815 = vsel %vm1106, %v1862, 0
      %v2818 = vsel %vm1106, %v1863, 0
      %v2821 = vsel %vm1106, %v1864, 0
      %v2824 = vsel %vm1106, %v1865, 0
      %v2827 = vsel %vm1106, %v1866, 0
      %v2830 = vsel %vm1106, %v1867, 0
      %2832 = vmatprep.subr.mxu0 0.0
      %2833 = vmatpush1.msra.mxu0 0.0
      %2834 = vmatprep.subr.mxu0 0.0
      %2835 = vmatpush1.msra.mxu0 0.0
      %2836 = vmatprep.subr.mxu0 0.0
      %2837 = vmatpush1.msra.mxu0 0.0
      %2838 = vmatprep.subr.mxu0 0.0
      %2839 = vmatpush1.msra.mxu0 0.0
      %2840 = vmatprep.subr.mxu0 0.0
      %2841 = vmatpush1.msra.mxu0 0.0
      %2842 = vmatprep.subr.mxu0 0.0
      %2843 = vmatpush1.msra.mxu0 0.0
      %2844 = vmatprep.subr.mxu0 0.0
      %2845 = vmatpush1.msra.mxu0 0.0
      %2846 = vmatprep.subr.mxu0 0.0
      %2847 = vmatpush1.msra.mxu0 0.0
      %2848 = vmatprep.subr.mxu0 0.0
      %2849 = vmatpush1.msra.mxu0 0.0
      %2850 = vmatprep.subr.mxu0 0.0
      %2851 = vmatpush1.msra.mxu0 0.0
      %2852 = vmatprep.subr.mxu0 0.0
      %2853 = vmatpush1.msra.mxu0 0.0
      %2854 = vmatprep.subr.mxu0 0.0
      %2855 = vmatpush1.msra.mxu0 0.0
      %2856 = vmatprep.subr.mxu0 0.0
      %2857 = vmatpush1.msra.mxu0 0.0
      %2858 = vmatprep.subr.mxu0 0.0
      %2859 = vmatpush1.msra.mxu0 0.0
      %2860 = vmatprep.subr.mxu0 0.0
      %2861 = vmatpush1.msra.mxu0 0.0
      %2862 = vmatprep.subr.mxu0 0.0
      %2863 = vmatpush1.msra.mxu0 %v1100
      %2864 = vmatprep.subr.mxu0 0.0
      %2865 = vmatpush2.msra.mxu0 0.0
      %2866 = vmatprep.subr.mxu0 0.0
      %2867 = vmatpush2.msra.mxu0 0.0
      %2868 = vmatprep.subr.mxu0 0.0
      %2869 = vmatpush2.msra.mxu0 0.0
      %2870 = vmatprep.subr.mxu0 0.0
      %2871 = vmatpush2.msra.mxu0 0.0
      %2872 = vmatprep.subr.mxu0 0.0
      %2873 = vmatpush2.msra.mxu0 0.0
      %2874 = vmatprep.subr.mxu0 0.0
      %2875 = vmatpush2.msra.mxu0 0.0
      %2876 = vmatprep.subr.mxu0 0.0
      %2877 = vmatpush2.msra.mxu0 0.0
      %2878 = vmatprep.subr.mxu0 0.0
      %2879 = vmatpush2.msra.mxu0 0.0
      %2880 = vmatprep.subr.mxu0 0.0
      %2881 = vmatpush2.msra.mxu0 0.0
      %2882 = vmatprep.subr.mxu0 0.0
      %2883 = vmatpush2.msra.mxu0 0.0
      %2884 = vmatprep.subr.mxu0 0.0
      %2885 = vmatpush2.msra.mxu0 0.0
      %2886 = vmatprep.subr.mxu0 0.0
      %2887 = vmatpush2.msra.mxu0 0.0
      %2888 = vmatprep.subr.mxu0 0.0
      %2889 = vmatpush2.msra.mxu0 0.0
      %2890 = vmatprep.subr.mxu0 0.0
      %2891 = vmatpush2.msra.mxu0 0.0
      %2892 = vmatprep.subr.mxu0 0.0
      %2893 = vmatpush2.msra.mxu0 0.0
      %2894 = vmatprep.subr.mxu0 0.0
      %2895 = vmatpush2.msra.mxu0 0.0
      %2896 = vmatprep.mubr.f32.mxu0 0.0
      %2897 = vmatmul.mubr.f32.gmra.mxu0 %v2809
      %v2898 = vpop.f32.mrf.mxu0
      %v2899 = vadd.f32 %v2770, %v2898
      %v2900 = vpop.f32.mrf.mxu0
      %2901 = vmatprep.mubr.f32.mxu0 0.0
      %2902 = vmatmul.mubr.f32.gmra.mxu0 %v2812
      %v2903 = vpop.f32.mrf.mxu0
      %v2904 = vadd.f32 %v2775, %v2903
      %v2905 = vpop.f32.mrf.mxu0
      %2906 = vmatprep.mubr.f32.mxu0 0.0
      %2907 = vmatmul.mubr.f32.gmra.mxu0 %v2815
      %v2908 = vpop.f32.mrf.mxu0
      %v2909 = vadd.f32 %v2780, %v2908
      %v2910 = vpop.f32.mrf.mxu0
      %2911 = vmatprep.mubr.f32.mxu0 0.0
      %2912 = vmatmul.mubr.f32.gmra.mxu0 %v2818
      %v2913 = vpop.f32.mrf.mxu0
      %v2914 = vadd.f32 %v2785, %v2913
      %v2915 = vpop.f32.mrf.mxu0
      %2916 = vmatprep.mubr.f32.mxu0 0.0
      %2917 = vmatmul.mubr.f32.gmra.mxu0 %v2821
      %v2918 = vpop.f32.mrf.mxu0
      %v2919 = vadd.f32 %v2790, %v2918
      %v2920 = vpop.f32.mrf.mxu0
      %2921 = vmatprep.mubr.f32.mxu0 0.0
      %2922 = vmatmul.mubr.f32.gmra.mxu0 %v2824
      %v2923 = vpop.f32.mrf.mxu0
      %v2924 = vadd.f32 %v2795, %v2923
      %v2925 = vpop.f32.mrf.mxu0
      %2926 = vmatprep.mubr.f32.mxu0 0.0
      %2927 = vmatmul.mubr.f32.gmra.mxu0 %v2827
      %v2928 = vpop.f32.mrf.mxu0
      %v2929 = vadd.f32 %v2800, %v2928
      %v2930 = vpop.f32.mrf.mxu0
      %2931 = vmatprep.mubr.f32.mxu0 0.0
      %2932 = vmatmul.mubr.f32.gmra.mxu0 %v2830
      %v2933 = vpop.f32.mrf.mxu0
      %v2934 = vadd.f32 %v2805, %v2933
      %v2935 = vpop.f32.mrf.mxu0
      %2936 = vdwg.mxu0
      %s2937 = scalar_lea.vmem %s9, 32
      %v2938 = vld [vmem:[%s2937] sm:$0xff]
      %v2939 = vld [vmem:[%s2937 + $0x8] sm:$0xff]
      %2940 = vrot.lane.b32.xlu0 %v830, 112
      %v2941 = vpop.permute.xlu0 %2940
      %2942 = vrot.lane.b32.xlu0 %v835, 112
      %v2943 = vpop.permute.xlu0 %2942
      %2944 = vrot.lane.b32.xlu0 %v946, 112
      %v2945 = vpop.permute.xlu0 %2944
      %2946 = vrot.lane.b32.xlu0 %v951, 112
      %v2947 = vpop.permute.xlu0 %2946
      %v2948 = vsel %vm1106, %v2941, 0
      %v2950 = vsel %vm1106, %v2943, 0
      %v2952 = vsel %vm1106, %v2945, 0
      %v2954 = vsel %vm1106, %v2947, 0
      %2956 = vmatprep.subr.mxu0 0.0
      %2957 = vmatpush1.xpose.msra.mxu0 0.0
      %2958 = vmatprep.subr.mxu0 0.0
      %2959 = vmatpush1.xpose.msra.mxu0 0.0
      %2960 = vmatprep.subr.mxu0 0.0
      %2961 = vmatpush1.xpose.msra.mxu0 0.0
      %2962 = vmatprep.subr.mxu0 0.0
      %2963 = vmatpush1.xpose.msra.mxu0 0.0
      %2964 = vmatprep.subr.mxu0 0.0
      %2965 = vmatpush1.xpose.msra.mxu0 0.0
      %2966 = vmatprep.subr.mxu0 0.0
      %2967 = vmatpush1.xpose.msra.mxu0 0.0
      %2968 = vmatprep.subr.mxu0 0.0
      %2969 = vmatpush1.xpose.msra.mxu0 0.0
      %2970 = vmatprep.subr.mxu0 0.0
      %2971 = vmatpush1.xpose.msra.mxu0 0.0
      %2972 = vmatprep.subr.mxu0 0.0
      %2973 = vmatpush1.xpose.msra.mxu0 0.0
      %2974 = vmatprep.subr.mxu0 0.0
      %2975 = vmatpush1.xpose.msra.mxu0 0.0
      %2976 = vmatprep.subr.mxu0 0.0
      %2977 = vmatpush1.xpose.msra.mxu0 0.0
      %2978 = vmatprep.subr.mxu0 0.0
      %2979 = vmatpush1.xpose.msra.mxu0 0.0
      %2980 = vmatprep.subr.mxu0 0.0
      %2981 = vmatpush1.xpose.msra.mxu0 0.0
      %2982 = vmatprep.subr.mxu0 0.0
      %2983 = vmatpush1.xpose.msra.mxu0 0.0
      %2984 = vmatprep.subr.mxu0 0.0
      %2985 = vmatpush1.xpose.msra.mxu0 %v2954
      %2986 = vmatprep.subr.mxu0 0.0
      %2987 = vmatpush1.xpose.msra.mxu0 %v2952
      %2988 = vmatprep.subr.mxu0 0.0
      %2989 = vmatpush2.xpose.msra.mxu0 0.0
      %2990 = vmatprep.subr.mxu0 0.0
      %2991 = vmatpush2.xpose.msra.mxu0 0.0
      %2992 = vmatprep.subr.mxu0 0.0
      %2993 = vmatpush2.xpose.msra.mxu0 0.0
      %2994 = vmatprep.subr.mxu0 0.0
      %2995 = vmatpush2.xpose.msra.mxu0 0.0
      %2996 = vmatprep.subr.mxu0 0.0
      %2997 = vmatpush2.xpose.msra.mxu0 0.0
      %2998 = vmatprep.subr.mxu0 0.0
      %2999 = vmatpush2.xpose.msra.mxu0 0.0
      %3000 = vmatprep.subr.mxu0 0.0
      %3001 = vmatpush2.xpose.msra.mxu0 0.0
      %3002 = vmatprep.subr.mxu0 0.0
      %3003 = vmatpush2.xpose.msra.mxu0 0.0
      %3004 = vmatprep.subr.mxu0 0.0
      %3005 = vmatpush2.xpose.msra.mxu0 0.0
      %3006 = vmatprep.subr.mxu0 0.0
      %3007 = vmatpush2.xpose.msra.mxu0 0.0
      %3008 = vmatprep.subr.mxu0 0.0
      %3009 = vmatpush2.xpose.msra.mxu0 0.0
      %3010 = vmatprep.subr.mxu0 0.0
      %3011 = vmatpush2.xpose.msra.mxu0 0.0
      %3012 = vmatprep.subr.mxu0 0.0
      %3013 = vmatpush2.xpose.msra.mxu0 0.0
      %3014 = vmatprep.subr.mxu0 0.0
      %3015 = vmatpush2.xpose.msra.mxu0 0.0
      %3016 = vmatprep.subr.mxu0 0.0
      %3017 = vmatpush2.xpose.msra.mxu0 0.0
      %3018 = vmatprep.subr.mxu0 0.0
      %3019 = vmatpush2.xpose.msra.mxu0 0.0
      %3020 = vmatprep.mubr.f32.mxu0 0.0
      %3021 = vmatmul.mubr.f32.gmra.mxu0 %v2948
      %v3022 = vpop.f32.mrf.mxu0
      %v3023 = vadd.f32 %v2938, %v3022
      %v3024 = vpop.f32.mrf.mxu0
      %3025 = vmatprep.mubr.f32.mxu0 0.0
      %3026 = vmatmul.mubr.f32.gmra.mxu0 %v2950
      %v3027 = vpop.f32.mrf.mxu0
      %v3028 = vadd.f32 %v2939, %v3027
      %v3029 = vpop.f32.mrf.mxu0
      %3030 = vdwg.mxu0
      %3031 = vrot.lane.b32.xlu0 %v840, 112
      %v3032 = vpop.permute.xlu0 %3031
      %3033 = vrot.lane.b32.xlu0 %v845, 112
      %v3034 = vpop.permute.xlu0 %3033
      %3035 = vrot.lane.b32.xlu0 %v956, 112
      %v3036 = vpop.permute.xlu0 %3035
      %3037 = vrot.lane.b32.xlu0 %v961, 112
      %v3038 = vpop.permute.xlu0 %3037
      %v3039 = vsel %vm1106, %v3032, 0
      %v3041 = vsel %vm1106, %v3034, 0
      %v3043 = vsel %vm1106, %v3036, 0
      %v3045 = vsel %vm1106, %v3038, 0
      %3047 = vmatprep.subr.mxu0 0.0
      %3048 = vmatpush1.xpose.msra.mxu0 0.0
      %3049 = vmatprep.subr.mxu0 0.0
      %3050 = vmatpush1.xpose.msra.mxu0 0.0
      %3051 = vmatprep.subr.mxu0 0.0
      %3052 = vmatpush1.xpose.msra.mxu0 0.0
      %3053 = vmatprep.subr.mxu0 0.0
      %3054 = vmatpush1.xpose.msra.mxu0 0.0
      %3055 = vmatprep.subr.mxu0 0.0
      %3056 = vmatpush1.xpose.msra.mxu0 0.0
      %3057 = vmatprep.subr.mxu0 0.0
      %3058 = vmatpush1.xpose.msra.mxu0 0.0
      %3059 = vmatprep.subr.mxu0 0.0
      %3060 = vmatpush1.xpose.msra.mxu0 0.0
      %3061 = vmatprep.subr.mxu0 0.0
      %3062 = vmatpush1.xpose.msra.mxu0 0.0
      %3063 = vmatprep.subr.mxu0 0.0
      %3064 = vmatpush1.xpose.msra.mxu0 0.0
      %3065 = vmatprep.subr.mxu0 0.0
      %3066 = vmatpush1.xpose.msra.mxu0 0.0
      %3067 = vmatprep.subr.mxu0 0.0
      %3068 = vmatpush1.xpose.msra.mxu0 0.0
      %3069 = vmatprep.subr.mxu0 0.0
      %3070 = vmatpush1.xpose.msra.mxu0 0.0
      %3071 = vmatprep.subr.mxu0 0.0
      %3072 = vmatpush1.xpose.msra.mxu0 0.0
      %3073 = vmatprep.subr.mxu0 0.0
      %3074 = vmatpush1.xpose.msra.mxu0 0.0
      %3075 = vmatprep.subr.mxu0 0.0
      %3076 = vmatpush1.xpose.msra.mxu0 %v3045
      %3077 = vmatprep.subr.mxu0 0.0
      %3078 = vmatpush1.xpose.msra.mxu0 %v3043
      %3079 = vmatprep.subr.mxu0 0.0
      %3080 = vmatpush2.xpose.msra.mxu0 0.0
      %3081 = vmatprep.subr.mxu0 0.0
      %3082 = vmatpush2.xpose.msra.mxu0 0.0
      %3083 = vmatprep.subr.mxu0 0.0
      %3084 = vmatpush2.xpose.msra.mxu0 0.0
      %3085 = vmatprep.subr.mxu0 0.0
      %3086 = vmatpush2.xpose.msra.mxu0 0.0
      %3087 = vmatprep.subr.mxu0 0.0
      %3088 = vmatpush2.xpose.msra.mxu0 0.0
      %3089 = vmatprep.subr.mxu0 0.0
      %3090 = vmatpush2.xpose.msra.mxu0 0.0
      %3091 = vmatprep.subr.mxu0 0.0
      %3092 = vmatpush2.xpose.msra.mxu0 0.0
      %3093 = vmatprep.subr.mxu0 0.0
      %3094 = vmatpush2.xpose.msra.mxu0 0.0
      %3095 = vmatprep.subr.mxu0 0.0
      %3096 = vmatpush2.xpose.msra.mxu0 0.0
      %3097 = vmatprep.subr.mxu0 0.0
      %3098 = vmatpush2.xpose.msra.mxu0 0.0
      %3099 = vmatprep.subr.mxu0 0.0
      %3100 = vmatpush2.xpose.msra.mxu0 0.0
      %3101 = vmatprep.subr.mxu0 0.0
      %3102 = vmatpush2.xpose.msra.mxu0 0.0
      %3103 = vmatprep.subr.mxu0 0.0
      %3104 = vmatpush2.xpose.msra.mxu0 0.0
      %3105 = vmatprep.subr.mxu0 0.0
      %3106 = vmatpush2.xpose.msra.mxu0 0.0
      %3107 = vmatprep.subr.mxu0 0.0
      %3108 = vmatpush2.xpose.msra.mxu0 0.0
      %3109 = vmatprep.subr.mxu0 0.0
      %3110 = vmatpush2.xpose.msra.mxu0 0.0
      %3111 = vmatprep.mubr.f32.mxu0 0.0
      %3112 = vmatmul.mubr.f32.gmra.mxu0 %v3039
      %v3113 = vpop.f32.mrf.mxu0
      %v3114 = vadd.f32 %v2938, %v3113
      %v3115 = vpop.f32.mrf.mxu0
      %3116 = vmatprep.mubr.f32.mxu0 0.0
      %3117 = vmatmul.mubr.f32.gmra.mxu0 %v3041
      %v3118 = vpop.f32.mrf.mxu0
      %v3119 = vadd.f32 %v2939, %v3118
      %v3120 = vpop.f32.mrf.mxu0
      %3121 = vdwg.mxu0
      %3122 = vrot.lane.b32.xlu0 %v850, 112
      %v3123 = vpop.permute.xlu0 %3122
      %3124 = vrot.lane.b32.xlu0 %v855, 112
      %v3125 = vpop.permute.xlu0 %3124
      %3126 = vrot.lane.b32.xlu0 %v966, 112
      %v3127 = vpop.permute.xlu0 %3126
      %3128 = vrot.lane.b32.xlu0 %v971, 112
      %v3129 = vpop.permute.xlu0 %3128
      %v3130 = vsel %vm1106, %v3123, 0
      %v3132 = vsel %vm1106, %v3125, 0
      %v3134 = vsel %vm1106, %v3127, 0
      %v3136 = vsel %vm1106, %v3129, 0
      %3138 = vmatprep.subr.mxu0 0.0
      %3139 = vmatpush1.xpose.msra.mxu0 0.0
      %3140 = vmatprep.subr.mxu0 0.0
      %3141 = vmatpush1.xpose.msra.mxu0 0.0
      %3142 = vmatprep.subr.mxu0 0.0
      %3143 = vmatpush1.xpose.msra.mxu0 0.0
      %3144 = vmatprep.subr.mxu0 0.0
      %3145 = vmatpush1.xpose.msra.mxu0 0.0
      %3146 = vmatprep.subr.mxu0 0.0
      %3147 = vmatpush1.xpose.msra.mxu0 0.0
      %3148 = vmatprep.subr.mxu0 0.0
      %3149 = vmatpush1.xpose.msra.mxu0 0.0
      %3150 = vmatprep.subr.mxu0 0.0
      %3151 = vmatpush1.xpose.msra.mxu0 0.0
      %3152 = vmatprep.subr.mxu0 0.0
      %3153 = vmatpush1.xpose.msra.mxu0 0.0
      %3154 = vmatprep.subr.mxu0 0.0
      %3155 = vmatpush1.xpose.msra.mxu0 0.0
      %3156 = vmatprep.subr.mxu0 0.0
      %3157 = vmatpush1.xpose.msra.mxu0 0.0
      %3158 = vmatprep.subr.mxu0 0.0
      %3159 = vmatpush1.xpose.msra.mxu0 0.0
      %3160 = vmatprep.subr.mxu0 0.0
      %3161 = vmatpush1.xpose.msra.mxu0 0.0
      %3162 = vmatprep.subr.mxu0 0.0
      %3163 = vmatpush1.xpose.msra.mxu0 0.0
      %3164 = vmatprep.subr.mxu0 0.0
      %3165 = vmatpush1.xpose.msra.mxu0 0.0
      %3166 = vmatprep.subr.mxu0 0.0
      %3167 = vmatpush1.xpose.msra.mxu0 %v3136
      %3168 = vmatprep.subr.mxu0 0.0
      %3169 = vmatpush1.xpose.msra.mxu0 %v3134
      %3170 = vmatprep.subr.mxu0 0.0
      %3171 = vmatpush2.xpose.msra.mxu0 0.0
      %3172 = vmatprep.subr.mxu0 0.0
      %3173 = vmatpush2.xpose.msra.mxu0 0.0
      %3174 = vmatprep.subr.mxu0 0.0
      %3175 = vmatpush2.xpose.msra.mxu0 0.0
      %3176 = vmatprep.subr.mxu0 0.0
      %3177 = vmatpush2.xpose.msra.mxu0 0.0
      %3178 = vmatprep.subr.mxu0 0.0
      %3179 = vmatpush2.xpose.msra.mxu0 0.0
      %3180 = vmatprep.subr.mxu0 0.0
      %3181 = vmatpush2.xpose.msra.mxu0 0.0
      %3182 = vmatprep.subr.mxu0 0.0
      %3183 = vmatpush2.xpose.msra.mxu0 0.0
      %3184 = vmatprep.subr.mxu0 0.0
      %3185 = vmatpush2.xpose.msra.mxu0 0.0
      %3186 = vmatprep.subr.mxu0 0.0
      %3187 = vmatpush2.xpose.msra.mxu0 0.0
      %3188 = vmatprep.subr.mxu0 0.0
      %3189 = vmatpush2.xpose.msra.mxu0 0.0
      %3190 = vmatprep.subr.mxu0 0.0
      %3191 = vmatpush2.xpose.msra.mxu0 0.0
      %3192 = vmatprep.subr.mxu0 0.0
      %3193 = vmatpush2.xpose.msra.mxu0 0.0
      %3194 = vmatprep.subr.mxu0 0.0
      %3195 = vmatpush2.xpose.msra.mxu0 0.0
      %3196 = vmatprep.subr.mxu0 0.0
      %3197 = vmatpush2.xpose.msra.mxu0 0.0
      %3198 = vmatprep.subr.mxu0 0.0
      %3199 = vmatpush2.xpose.msra.mxu0 0.0
      %3200 = vmatprep.subr.mxu0 0.0
      %3201 = vmatpush2.xpose.msra.mxu0 0.0
      %3202 = vmatprep.mubr.f32.mxu0 0.0
      %3203 = vmatmul.mubr.f32.gmra.mxu0 %v3130
      %v3204 = vpop.f32.mrf.mxu0
      %v3205 = vadd.f32 %v2938, %v3204
      %v3206 = vpop.f32.mrf.mxu0
      %3207 = vmatprep.mubr.f32.mxu0 0.0
      %3208 = vmatmul.mubr.f32.gmra.mxu0 %v3132
      %v3209 = vpop.f32.mrf.mxu0
      %v3210 = vadd.f32 %v2939, %v3209
      %v3211 = vpop.f32.mrf.mxu0
      %3212 = vdwg.mxu0
      %3213 = vrot.lane.b32.xlu0 %v860, 112
      %v3214 = vpop.permute.xlu0 %3213
      %3215 = vrot.lane.b32.xlu0 %v865, 112
      %v3216 = vpop.permute.xlu0 %3215
      %3217 = vrot.lane.b32.xlu0 %v976, 112
      %v3218 = vpop.permute.xlu0 %3217
      %3219 = vrot.lane.b32.xlu0 %v981, 112
      %v3220 = vpop.permute.xlu0 %3219
      %v3221 = vsel %vm1106, %v3214, 0
      %v3223 = vsel %vm1106, %v3216, 0
      %v3225 = vsel %vm1106, %v3218, 0
      %v3227 = vsel %vm1106, %v3220, 0
      %3229 = vmatprep.subr.mxu0 0.0
      %3230 = vmatpush1.xpose.msra.mxu0 0.0
      %3231 = vmatprep.subr.mxu0 0.0
      %3232 = vmatpush1.xpose.msra.mxu0 0.0
      %3233 = vmatprep.subr.mxu0 0.0
      %3234 = vmatpush1.xpose.msra.mxu0 0.0
      %3235 = vmatprep.subr.mxu0 0.0
      %3236 = vmatpush1.xpose.msra.mxu0 0.0
      %3237 = vmatprep.subr.mxu0 0.0
      %3238 = vmatpush1.xpose.msra.mxu0 0.0
      %3239 = vmatprep.subr.mxu0 0.0
      %3240 = vmatpush1.xpose.msra.mxu0 0.0
      %3241 = vmatprep.subr.mxu0 0.0
      %3242 = vmatpush1.xpose.msra.mxu0 0.0
      %3243 = vmatprep.subr.mxu0 0.0
      %3244 = vmatpush1.xpose.msra.mxu0 0.0
      %3245 = vmatprep.subr.mxu0 0.0
      %3246 = vmatpush1.xpose.msra.mxu0 0.0
      %3247 = vmatprep.subr.mxu0 0.0
      %3248 = vmatpush1.xpose.msra.mxu0 0.0
      %3249 = vmatprep.subr.mxu0 0.0
      %3250 = vmatpush1.xpose.msra.mxu0 0.0
      %3251 = vmatprep.subr.mxu0 0.0
      %3252 = vmatpush1.xpose.msra.mxu0 0.0
      %3253 = vmatprep.subr.mxu0 0.0
      %3254 = vmatpush1.xpose.msra.mxu0 0.0
      %3255 = vmatprep.subr.mxu0 0.0
      %3256 = vmatpush1.xpose.msra.mxu0 0.0
      %3257 = vmatprep.subr.mxu0 0.0
      %3258 = vmatpush1.xpose.msra.mxu0 %v3227
      %3259 = vmatprep.subr.mxu0 0.0
      %3260 = vmatpush1.xpose.msra.mxu0 %v3225
      %3261 = vmatprep.subr.mxu0 0.0
      %3262 = vmatpush2.xpose.msra.mxu0 0.0
      %3263 = vmatprep.subr.mxu0 0.0
      %3264 = vmatpush2.xpose.msra.mxu0 0.0
      %3265 = vmatprep.subr.mxu0 0.0
      %3266 = vmatpush2.xpose.msra.mxu0 0.0
      %3267 = vmatprep.subr.mxu0 0.0
      %3268 = vmatpush2.xpose.msra.mxu0 0.0
      %3269 = vmatprep.subr.mxu0 0.0
      %3270 = vmatpush2.xpose.msra.mxu0 0.0
      %3271 = vmatprep.subr.mxu0 0.0
      %3272 = vmatpush2.xpose.msra.mxu0 0.0
      %3273 = vmatprep.subr.mxu0 0.0
      %3274 = vmatpush2.xpose.msra.mxu0 0.0
      %3275 = vmatprep.subr.mxu0 0.0
      %3276 = vmatpush2.xpose.msra.mxu0 0.0
      %3277 = vmatprep.subr.mxu0 0.0
      %3278 = vmatpush2.xpose.msra.mxu0 0.0
      %3279 = vmatprep.subr.mxu0 0.0
      %3280 = vmatpush2.xpose.msra.mxu0 0.0
      %3281 = vmatprep.subr.mxu0 0.0
      %3282 = vmatpush2.xpose.msra.mxu0 0.0
      %3283 = vmatprep.subr.mxu0 0.0
      %3284 = vmatpush2.xpose.msra.mxu0 0.0
      %3285 = vmatprep.subr.mxu0 0.0
      %3286 = vmatpush2.xpose.msra.mxu0 0.0
      %3287 = vmatprep.subr.mxu0 0.0
      %3288 = vmatpush2.xpose.msra.mxu0 0.0
      %3289 = vmatprep.subr.mxu0 0.0
      %3290 = vmatpush2.xpose.msra.mxu0 0.0
      %3291 = vmatprep.subr.mxu0 0.0
      %3292 = vmatpush2.xpose.msra.mxu0 0.0
      %3293 = vmatprep.mubr.f32.mxu0 0.0
      %3294 = vmatmul.mubr.f32.gmra.mxu0 %v3221
      %v3295 = vpop.f32.mrf.mxu0
      %v3296 = vadd.f32 %v2938, %v3295
      %v3297 = vpop.f32.mrf.mxu0
      %3298 = vmatprep.mubr.f32.mxu0 0.0
      %3299 = vmatmul.mubr.f32.gmra.mxu0 %v3223
      %v3300 = vpop.f32.mrf.mxu0
      %v3301 = vadd.f32 %v2939, %v3300
      %v3302 = vpop.f32.mrf.mxu0
      %3303 = vdwg.mxu0
      %v3304 = vsel %vm1455, %v3023, -inf
      %3305 = vmax.xlane.f32.xlu0 %v3304
      %v3306 = vpop.xlane.xlu0 %3305
      %v3307 = vsel %vm1455, %v3028, -inf
      %3308 = vmax.xlane.f32.xlu0 %v3307
      %v3309 = vpop.xlane.xlu0 %3308
      %v3310 = vsel %vm1455, %v3114, -inf
      %3311 = vmax.xlane.f32.xlu0 %v3310
      %v3312 = vpop.xlane.xlu0 %3311
      %v3313 = vsel %vm1455, %v3119, -inf
      %3314 = vmax.xlane.f32.xlu0 %v3313
      %v3315 = vpop.xlane.xlu0 %3314
      %v3316 = vsel %vm1455, %v3205, -inf
      %3317 = vmax.xlane.f32.xlu0 %v3316
      %v3318 = vpop.xlane.xlu0 %3317
      %v3319 = vsel %vm1455, %v3210, -inf
      %3320 = vmax.xlane.f32.xlu0 %v3319
      %v3321 = vpop.xlane.xlu0 %3320
      %v3322 = vsel %vm1455, %v3296, -inf
      %3323 = vmax.xlane.f32.xlu0 %v3322
      %v3324 = vpop.xlane.xlu0 %3323
      %v3325 = vsel %vm1455, %v3301, -inf
      %3326 = vmax.xlane.f32.xlu0 %v3325
      %v3327 = vpop.xlane.xlu0 %3326
      %v3328 = vsub.f32 %v3023, %v3306
      %v3329 = vsub.f32 %v3028, %v3309
      %v3330 = vsub.f32 %v3114, %v3312
      %v3331 = vsub.f32 %v3119, %v3315
      %v3332 = vsub.f32 %v3205, %v3318
      %v3333 = vsub.f32 %v3210, %v3321
      %v3334 = vsub.f32 %v3296, %v3324
      %v3335 = vsub.f32 %v3301, %v3327
      %v3336 = vmul.f32 %v3328, 1.442695
      %v3337 = vpow.pop %v3336
      %v3338 = vmul.f32 %v3329, 1.442695
      %v3339 = vpow.pop %v3338
      %v3340 = vmul.f32 %v3330, 1.442695
      %v3341 = vpow.pop %v3340
      %v3342 = vmul.f32 %v3331, 1.442695
      %v3343 = vpow.pop %v3342
      %v3344 = vmul.f32 %v3332, 1.442695
      %v3345 = vpow.pop %v3344
      %v3346 = vmul.f32 %v3333, 1.442695
      %v3347 = vpow.pop %v3346
      %v3348 = vmul.f32 %v3334, 1.442695
      %v3349 = vpow.pop %v3348
      %v3350 = vmul.f32 %v3335, 1.442695
      %v3351 = vpow.pop %v3350
      %v3352 = vsel %vm1455, %v3337, 0.0
      %3353 = vadd.xlane.f32.xlu0 %v3352
      %v3354 = vpop.xlane.xlu0 %3353
      %v3355 = vsel %vm1455, %v3339, 0.0
      %3356 = vadd.xlane.f32.xlu0 %v3355
      %v3357 = vpop.xlane.xlu0 %3356
      %v3358 = vsel %vm1455, %v3341, 0.0
      %3359 = vadd.xlane.f32.xlu0 %v3358
      %v3360 = vpop.xlane.xlu0 %3359
      %v3361 = vsel %vm1455, %v3343, 0.0
      %3362 = vadd.xlane.f32.xlu0 %v3361
      %v3363 = vpop.xlane.xlu0 %3362
      %v3364 = vsel %vm1455, %v3345, 0.0
      %3365 = vadd.xlane.f32.xlu0 %v3364
      %v3366 = vpop.xlane.xlu0 %3365
      %v3367 = vsel %vm1455, %v3347, 0.0
      %3368 = vadd.xlane.f32.xlu0 %v3367
      %v3369 = vpop.xlane.xlu0 %3368
      %v3370 = vsel %vm1455, %v3349, 0.0
      %3371 = vadd.xlane.f32.xlu0 %v3370
      %v3372 = vpop.xlane.xlu0 %3371
      %v3373 = vsel %vm1455, %v3351, 0.0
      %3374 = vadd.xlane.f32.xlu0 %v3373
      %v3375 = vpop.xlane.xlu0 %3374
      %3376 = vrot.lane.b32.xlu0 %v1062, 112
      %v3377 = vpop.permute.xlu0 %3376
      %3378 = vrot.lane.b32.xlu0 %v1067, 112
      %v3379 = vpop.permute.xlu0 %3378
      %v3383 = vsel %vm1455, %v3337, 0
      %v3386 = vsel %vm1455, %v3339, 0
      %3388 = vmatprep.subr.mxu0 0.0
      %3389 = vmatpush1.msra.mxu0 0.0
      %3390 = vmatprep.subr.mxu0 0.0
      %3391 = vmatpush1.msra.mxu0 0.0
      %3392 = vmatprep.subr.mxu0 0.0
      %3393 = vmatpush1.msra.mxu0 0.0
      %3394 = vmatprep.subr.mxu0 0.0
      %3395 = vmatpush1.msra.mxu0 0.0
      %3396 = vmatprep.subr.mxu0 0.0
      %3397 = vmatpush1.msra.mxu0 0.0
      %3398 = vmatprep.subr.mxu0 0.0
      %3399 = vmatpush1.msra.mxu0 0.0
      %3400 = vmatprep.subr.mxu0 0.0
      %3401 = vmatpush1.msra.mxu0 0.0
      %3402 = vmatprep.subr.mxu0 0.0
      %3403 = vmatpush1.msra.mxu0 0.0
      %3404 = vmatprep.subr.mxu0 0.0
      %3405 = vmatpush1.msra.mxu0 0.0
      %3406 = vmatprep.subr.mxu0 0.0
      %3407 = vmatpush1.msra.mxu0 0.0
      %3408 = vmatprep.subr.mxu0 0.0
      %3409 = vmatpush1.msra.mxu0 0.0
      %3410 = vmatprep.subr.mxu0 0.0
      %3411 = vmatpush1.msra.mxu0 0.0
      %3412 = vmatprep.subr.mxu0 0.0
      %3413 = vmatpush1.msra.mxu0 0.0
      %3414 = vmatprep.subr.mxu0 0.0
      %3415 = vmatpush1.msra.mxu0 0.0
      %3416 = vmatprep.subr.mxu0 0.0
      %3417 = vmatpush1.msra.mxu0 %v3379
      %3418 = vmatprep.subr.mxu0 0.0
      %3419 = vmatpush1.msra.mxu0 %v3377
      %3420 = vmatprep.subr.mxu0 0.0
      %3421 = vmatpush2.msra.mxu0 0.0
      %3422 = vmatprep.subr.mxu0 0.0
      %3423 = vmatpush2.msra.mxu0 0.0
      %3424 = vmatprep.subr.mxu0 0.0
      %3425 = vmatpush2.msra.mxu0 0.0
      %3426 = vmatprep.subr.mxu0 0.0
      %3427 = vmatpush2.msra.mxu0 0.0
      %3428 = vmatprep.subr.mxu0 0.0
      %3429 = vmatpush2.msra.mxu0 0.0
      %3430 = vmatprep.subr.mxu0 0.0
      %3431 = vmatpush2.msra.mxu0 0.0
      %3432 = vmatprep.subr.mxu0 0.0
      %3433 = vmatpush2.msra.mxu0 0.0
      %3434 = vmatprep.subr.mxu0 0.0
      %3435 = vmatpush2.msra.mxu0 0.0
      %3436 = vmatprep.subr.mxu0 0.0
      %3437 = vmatpush2.msra.mxu0 0.0
      %3438 = vmatprep.subr.mxu0 0.0
      %3439 = vmatpush2.msra.mxu0 0.0
      %3440 = vmatprep.subr.mxu0 0.0
      %3441 = vmatpush2.msra.mxu0 0.0
      %3442 = vmatprep.subr.mxu0 0.0
      %3443 = vmatpush2.msra.mxu0 0.0
      %3444 = vmatprep.subr.mxu0 0.0
      %3445 = vmatpush2.msra.mxu0 0.0
      %3446 = vmatprep.subr.mxu0 0.0
      %3447 = vmatpush2.msra.mxu0 0.0
      %3448 = vmatprep.subr.mxu0 0.0
      %3449 = vmatpush2.msra.mxu0 0.0
      %3450 = vmatprep.subr.mxu0 0.0
      %3451 = vmatpush2.msra.mxu0 0.0
      %3452 = vmatprep.mubr.f32.mxu0 0.0
      %3453 = vmatmul.mubr.f32.gmra.mxu0 %v3383
      %v3454 = vpop.f32.mrf.mxu0
      %v3455 = vadd.f32 0.0, %v3454
      %v3456 = vpop.f32.mrf.mxu0
      %3457 = vmatprep.mubr.f32.mxu0 0.0
      %3458 = vmatmul.mubr.f32.gmra.mxu0 %v3386
      %v3459 = vpop.f32.mrf.mxu0
      %v3460 = vadd.f32 0.0, %v3459
      %v3461 = vpop.f32.mrf.mxu0
      %3462 = vdwg.mxu0
      %3463 = vrot.lane.b32.xlu0 %v1072, 112
      %v3464 = vpop.permute.xlu0 %3463
      %3465 = vrot.lane.b32.xlu0 %v1077, 112
      %v3466 = vpop.permute.xlu0 %3465
      %v3470 = vsel %vm1455, %v3341, 0
      %v3473 = vsel %vm1455, %v3343, 0
      %3475 = vmatprep.subr.mxu0 0.0
      %3476 = vmatpush1.msra.mxu0 0.0
      %3477 = vmatprep.subr.mxu0 0.0
      %3478 = vmatpush1.msra.mxu0 0.0
      %3479 = vmatprep.subr.mxu0 0.0
      %3480 = vmatpush1.msra.mxu0 0.0
      %3481 = vmatprep.subr.mxu0 0.0
      %3482 = vmatpush1.msra.mxu0 0.0
      %3483 = vmatprep.subr.mxu0 0.0
      %3484 = vmatpush1.msra.mxu0 0.0
      %3485 = vmatprep.subr.mxu0 0.0
      %3486 = vmatpush1.msra.mxu0 0.0
      %3487 = vmatprep.subr.mxu0 0.0
      %3488 = vmatpush1.msra.mxu0 0.0
      %3489 = vmatprep.subr.mxu0 0.0
      %3490 = vmatpush1.msra.mxu0 0.0
      %3491 = vmatprep.subr.mxu0 0.0
      %3492 = vmatpush1.msra.mxu0 0.0
      %3493 = vmatprep.subr.mxu0 0.0
      %3494 = vmatpush1.msra.mxu0 0.0
      %3495 = vmatprep.subr.mxu0 0.0
      %3496 = vmatpush1.msra.mxu0 0.0
      %3497 = vmatprep.subr.mxu0 0.0
      %3498 = vmatpush1.msra.mxu0 0.0
      %3499 = vmatprep.subr.mxu0 0.0
      %3500 = vmatpush1.msra.mxu0 0.0
      %3501 = vmatprep.subr.mxu0 0.0
      %3502 = vmatpush1.msra.mxu0 0.0
      %3503 = vmatprep.subr.mxu0 0.0
      %3504 = vmatpush1.msra.mxu0 %v3466
      %3505 = vmatprep.subr.mxu0 0.0
      %3506 = vmatpush1.msra.mxu0 %v3464
      %3507 = vmatprep.subr.mxu0 0.0
      %3508 = vmatpush2.msra.mxu0 0.0
      %3509 = vmatprep.subr.mxu0 0.0
      %3510 = vmatpush2.msra.mxu0 0.0
      %3511 = vmatprep.subr.mxu0 0.0
      %3512 = vmatpush2.msra.mxu0 0.0
      %3513 = vmatprep.subr.mxu0 0.0
      %3514 = vmatpush2.msra.mxu0 0.0
      %3515 = vmatprep.subr.mxu0 0.0
      %3516 = vmatpush2.msra.mxu0 0.0
      %3517 = vmatprep.subr.mxu0 0.0
      %3518 = vmatpush2.msra.mxu0 0.0
      %3519 = vmatprep.subr.mxu0 0.0
      %3520 = vmatpush2.msra.mxu0 0.0
      %3521 = vmatprep.subr.mxu0 0.0
      %3522 = vmatpush2.msra.mxu0 0.0
      %3523 = vmatprep.subr.mxu0 0.0
      %3524 = vmatpush2.msra.mxu0 0.0
      %3525 = vmatprep.subr.mxu0 0.0
      %3526 = vmatpush2.msra.mxu0 0.0
      %3527 = vmatprep.subr.mxu0 0.0
      %3528 = vmatpush2.msra.mxu0 0.0
      %3529 = vmatprep.subr.mxu0 0.0
      %3530 = vmatpush2.msra.mxu0 0.0
      %3531 = vmatprep.subr.mxu0 0.0
      %3532 = vmatpush2.msra.mxu0 0.0
      %3533 = vmatprep.subr.mxu0 0.0
      %3534 = vmatpush2.msra.mxu0 0.0
      %3535 = vmatprep.subr.mxu0 0.0
      %3536 = vmatpush2.msra.mxu0 0.0
      %3537 = vmatprep.subr.mxu0 0.0
      %3538 = vmatpush2.msra.mxu0 0.0
      %3539 = vmatprep.mubr.f32.mxu0 0.0
      %3540 = vmatmul.mubr.f32.gmra.mxu0 %v3470
      %v3541 = vpop.f32.mrf.mxu0
      %v3542 = vadd.f32 0.0, %v3541
      %v3543 = vpop.f32.mrf.mxu0
      %3544 = vmatprep.mubr.f32.mxu0 0.0
      %3545 = vmatmul.mubr.f32.gmra.mxu0 %v3473
      %v3546 = vpop.f32.mrf.mxu0
      %v3547 = vadd.f32 0.0, %v3546
      %v3548 = vpop.f32.mrf.mxu0
      %3549 = vdwg.mxu0
      %3550 = vrot.lane.b32.xlu0 %v1082, 112
      %v3551 = vpop.permute.xlu0 %3550
      %3552 = vrot.lane.b32.xlu0 %v1087, 112
      %v3553 = vpop.permute.xlu0 %3552
      %v3557 = vsel %vm1455, %v3345, 0
      %v3560 = vsel %vm1455, %v3347, 0
      %3562 = vmatprep.subr.mxu0 0.0
      %3563 = vmatpush1.msra.mxu0 0.0
      %3564 = vmatprep.subr.mxu0 0.0
      %3565 = vmatpush1.msra.mxu0 0.0
      %3566 = vmatprep.subr.mxu0 0.0
      %3567 = vmatpush1.msra.mxu0 0.0
      %3568 = vmatprep.subr.mxu0 0.0
      %3569 = vmatpush1.msra.mxu0 0.0
      %3570 = vmatprep.subr.mxu0 0.0
      %3571 = vmatpush1.msra.mxu0 0.0
      %3572 = vmatprep.subr.mxu0 0.0
      %3573 = vmatpush1.msra.mxu0 0.0
      %3574 = vmatprep.subr.mxu0 0.0
      %3575 = vmatpush1.msra.mxu0 0.0
      %3576 = vmatprep.subr.mxu0 0.0
      %3577 = vmatpush1.msra.mxu0 0.0
      %3578 = vmatprep.subr.mxu0 0.0
      %3579 = vmatpush1.msra.mxu0 0.0
      %3580 = vmatprep.subr.mxu0 0.0
      %3581 = vmatpush1.msra.mxu0 0.0
      %3582 = vmatprep.subr.mxu0 0.0
      %3583 = vmatpush1.msra.mxu0 0.0
      %3584 = vmatprep.subr.mxu0 0.0
      %3585 = vmatpush1.msra.mxu0 0.0
      %3586 = vmatprep.subr.mxu0 0.0
      %3587 = vmatpush1.msra.mxu0 0.0
      %3588 = vmatprep.subr.mxu0 0.0
      %3589 = vmatpush1.msra.mxu0 0.0
      %3590 = vmatprep.subr.mxu0 0.0
      %3591 = vmatpush1.msra.mxu0 %v3553
      %3592 = vmatprep.subr.mxu0 0.0
      %3593 = vmatpush1.msra.mxu0 %v3551
      %3594 = vmatprep.subr.mxu0 0.0
      %3595 = vmatpush2.msra.mxu0 0.0
      %3596 = vmatprep.subr.mxu0 0.0
      %3597 = vmatpush2.msra.mxu0 0.0
      %3598 = vmatprep.subr.mxu0 0.0
      %3599 = vmatpush2.msra.mxu0 0.0
      %3600 = vmatprep.subr.mxu0 0.0
      %3601 = vmatpush2.msra.mxu0 0.0
      %3602 = vmatprep.subr.mxu0 0.0
      %3603 = vmatpush2.msra.mxu0 0.0
      %3604 = vmatprep.subr.mxu0 0.0
      %3605 = vmatpush2.msra.mxu0 0.0
      %3606 = vmatprep.subr.mxu0 0.0
      %3607 = vmatpush2.msra.mxu0 0.0
      %3608 = vmatprep.subr.mxu0 0.0
      %3609 = vmatpush2.msra.mxu0 0.0
      %3610 = vmatprep.subr.mxu0 0.0
      %3611 = vmatpush2.msra.mxu0 0.0
      %3612 = vmatprep.subr.mxu0 0.0
      %3613 = vmatpush2.msra.mxu0 0.0
      %3614 = vmatprep.subr.mxu0 0.0
      %3615 = vmatpush2.msra.mxu0 0.0
      %3616 = vmatprep.subr.mxu0 0.0
      %3617 = vmatpush2.msra.mxu0 0.0
      %3618 = vmatprep.subr.mxu0 0.0
      %3619 = vmatpush2.msra.mxu0 0.0
      %3620 = vmatprep.subr.mxu0 0.0
      %3621 = vmatpush2.msra.mxu0 0.0
      %3622 = vmatprep.subr.mxu0 0.0
      %3623 = vmatpush2.msra.mxu0 0.0
      %3624 = vmatprep.subr.mxu0 0.0
      %3625 = vmatpush2.msra.mxu0 0.0
      %3626 = vmatprep.mubr.f32.mxu0 0.0
      %3627 = vmatmul.mubr.f32.gmra.mxu0 %v3557
      %v3628 = vpop.f32.mrf.mxu0
      %v3629 = vadd.f32 0.0, %v3628
      %v3630 = vpop.f32.mrf.mxu0
      %3631 = vmatprep.mubr.f32.mxu0 0.0
      %3632 = vmatmul.mubr.f32.gmra.mxu0 %v3560
      %v3633 = vpop.f32.mrf.mxu0
      %v3634 = vadd.f32 0.0, %v3633
      %v3635 = vpop.f32.mrf.mxu0
      %3636 = vdwg.mxu0
      %3637 = vrot.lane.b32.xlu0 %v1092, 112
      %v3638 = vpop.permute.xlu0 %3637
      %3639 = vrot.lane.b32.xlu0 %v1097, 112
      %v3640 = vpop.permute.xlu0 %3639
      %v3644 = vsel %vm1455, %v3349, 0
      %v3647 = vsel %vm1455, %v3351, 0
      %3649 = vmatprep.subr.mxu0 0.0
      %3650 = vmatpush1.msra.mxu0 0.0
      %3651 = vmatprep.subr.mxu0 0.0
      %3652 = vmatpush1.msra.mxu0 0.0
      %3653 = vmatprep.subr.mxu0 0.0
      %3654 = vmatpush1.msra.mxu0 0.0
      %3655 = vmatprep.subr.mxu0 0.0
      %3656 = vmatpush1.msra.mxu0 0.0
      %3657 = vmatprep.subr.mxu0 0.0
      %3658 = vmatpush1.msra.mxu0 0.0
      %3659 = vmatprep.subr.mxu0 0.0
      %3660 = vmatpush1.msra.mxu0 0.0
      %3661 = vmatprep.subr.mxu0 0.0
      %3662 = vmatpush1.msra.mxu0 0.0
      %3663 = vmatprep.subr.mxu0 0.0
      %3664 = vmatpush1.msra.mxu0 0.0
      %3665 = vmatprep.subr.mxu0 0.0
      %3666 = vmatpush1.msra.mxu0 0.0
      %3667 = vmatprep.subr.mxu0 0.0
      %3668 = vmatpush1.msra.mxu0 0.0
      %3669 = vmatprep.subr.mxu0 0.0
      %3670 = vmatpush1.msra.mxu0 0.0
      %3671 = vmatprep.subr.mxu0 0.0
      %3672 = vmatpush1.msra.mxu0 0.0
      %3673 = vmatprep.subr.mxu0 0.0
      %3674 = vmatpush1.msra.mxu0 0.0
      %3675 = vmatprep.subr.mxu0 0.0
      %3676 = vmatpush1.msra.mxu0 0.0
      %3677 = vmatprep.subr.mxu0 0.0
      %3678 = vmatpush1.msra.mxu0 %v3640
      %3679 = vmatprep.subr.mxu0 0.0
      %3680 = vmatpush1.msra.mxu0 %v3638
      %3681 = vmatprep.subr.mxu0 0.0
      %3682 = vmatpush2.msra.mxu0 0.0
      %3683 = vmatprep.subr.mxu0 0.0
      %3684 = vmatpush2.msra.mxu0 0.0
      %3685 = vmatprep.subr.mxu0 0.0
      %3686 = vmatpush2.msra.mxu0 0.0
      %3687 = vmatprep.subr.mxu0 0.0
      %3688 = vmatpush2.msra.mxu0 0.0
      %3689 = vmatprep.subr.mxu0 0.0
      %3690 = vmatpush2.msra.mxu0 0.0
      %3691 = vmatprep.subr.mxu0 0.0
      %3692 = vmatpush2.msra.mxu0 0.0
      %3693 = vmatprep.subr.mxu0 0.0
      %3694 = vmatpush2.msra.mxu0 0.0
      %3695 = vmatprep.subr.mxu0 0.0
      %3696 = vmatpush2.msra.mxu0 0.0
      %3697 = vmatprep.subr.mxu0 0.0
      %3698 = vmatpush2.msra.mxu0 0.0
      %3699 = vmatprep.subr.mxu0 0.0
      %3700 = vmatpush2.msra.mxu0 0.0
      %3701 = vmatprep.subr.mxu0 0.0
      %3702 = vmatpush2.msra.mxu0 0.0
      %3703 = vmatprep.subr.mxu0 0.0
      %3704 = vmatpush2.msra.mxu0 0.0
      %3705 = vmatprep.subr.mxu0 0.0
      %3706 = vmatpush2.msra.mxu0 0.0
      %3707 = vmatprep.subr.mxu0 0.0
      %3708 = vmatpush2.msra.mxu0 0.0
      %3709 = vmatprep.subr.mxu0 0.0
      %3710 = vmatpush2.msra.mxu0 0.0
      %3711 = vmatprep.subr.mxu0 0.0
      %3712 = vmatpush2.msra.mxu0 0.0
      %3713 = vmatprep.mubr.f32.mxu0 0.0
      %3714 = vmatmul.mubr.f32.gmra.mxu0 %v3644
      %v3715 = vpop.f32.mrf.mxu0
      %v3716 = vadd.f32 0.0, %v3715
      %v3717 = vpop.f32.mrf.mxu0
      %3718 = vmatprep.mubr.f32.mxu0 0.0
      %3719 = vmatmul.mubr.f32.gmra.mxu0 %v3647
      %v3720 = vpop.f32.mrf.mxu0
      %v3721 = vadd.f32 0.0, %v3720
      %v3722 = vpop.f32.mrf.mxu0
      %3723 = vdwg.mxu0
      %v3724 = vrcp.pop %v3354
      %v3725 = vrcp.pop %v3357
      %v3726 = vrcp.pop %v3360
      %v3727 = vrcp.pop %v3363
      %v3728 = vrcp.pop %v3366
      %v3729 = vrcp.pop %v3369
      %v3730 = vrcp.pop %v3372
      %v3731 = vrcp.pop %v3375
      %v3732 = vmul.f32 %v3455, %v3724
      %v3733 = vmul.f32 %v3460, %v3725
      %v3734 = vmul.f32 %v3542, %v3726
      %v3735 = vmul.f32 %v3547, %v3727
      %v3736 = vmul.f32 %v3629, %v3728
      %v3737 = vmul.f32 %v3634, %v3729
      %v3738 = vmul.f32 %v3716, %v3730
      %v3739 = vmul.f32 %v3721, %v3731
      %v3741 = vsel %vm1106, %v3732, 0
      %v3744 = vsel %vm1106, %v3733, 0
      %v3747 = vsel %vm1106, %v3734, 0
      %v3750 = vsel %vm1106, %v3735, 0
      %v3753 = vsel %vm1106, %v3736, 0
      %v3756 = vsel %vm1106, %v3737, 0
      %v3759 = vsel %vm1106, %v3738, 0
      %v3762 = vsel %vm1106, %v3739, 0
      %3764 = vmatprep.subr.mxu0 0.0
      %3765 = vmatpush1.msra.mxu0 0.0
      %3766 = vmatprep.subr.mxu0 0.0
      %3767 = vmatpush1.msra.mxu0 0.0
      %3768 = vmatprep.subr.mxu0 0.0
      %3769 = vmatpush1.msra.mxu0 0.0
      %3770 = vmatprep.subr.mxu0 0.0
      %3771 = vmatpush1.msra.mxu0 0.0
      %3772 = vmatprep.subr.mxu0 0.0
      %3773 = vmatpush1.msra.mxu0 0.0
      %3774 = vmatprep.subr.mxu0 0.0
      %3775 = vmatpush1.msra.mxu0 0.0
      %3776 = vmatprep.subr.mxu0 0.0
      %3777 = vmatpush1.msra.mxu0 0.0
      %3778 = vmatprep.subr.mxu0 0.0
      %3779 = vmatpush1.msra.mxu0 0.0
      %3780 = vmatprep.subr.mxu0 0.0
      %3781 = vmatpush1.msra.mxu0 0.0
      %3782 = vmatprep.subr.mxu0 0.0
      %3783 = vmatpush1.msra.mxu0 0.0
      %3784 = vmatprep.subr.mxu0 0.0
      %3785 = vmatpush1.msra.mxu0 0.0
      %3786 = vmatprep.subr.mxu0 0.0
      %3787 = vmatpush1.msra.mxu0 0.0
      %3788 = vmatprep.subr.mxu0 0.0
      %3789 = vmatpush1.msra.mxu0 0.0
      %3790 = vmatprep.subr.mxu0 0.0
      %3791 = vmatpush1.msra.mxu0 0.0
      %3792 = vmatprep.subr.mxu0 0.0
      %3793 = vmatpush1.msra.mxu0 0.0
      %3794 = vmatprep.subr.mxu0 0.0
      %3795 = vmatpush1.msra.mxu0 %v1102
      %3796 = vmatprep.subr.mxu0 0.0
      %3797 = vmatpush2.msra.mxu0 0.0
      %3798 = vmatprep.subr.mxu0 0.0
      %3799 = vmatpush2.msra.mxu0 0.0
      %3800 = vmatprep.subr.mxu0 0.0
      %3801 = vmatpush2.msra.mxu0 0.0
      %3802 = vmatprep.subr.mxu0 0.0
      %3803 = vmatpush2.msra.mxu0 0.0
      %3804 = vmatprep.subr.mxu0 0.0
      %3805 = vmatpush2.msra.mxu0 0.0
      %3806 = vmatprep.subr.mxu0 0.0
      %3807 = vmatpush2.msra.mxu0 0.0
      %3808 = vmatprep.subr.mxu0 0.0
      %3809 = vmatpush2.msra.mxu0 0.0
      %3810 = vmatprep.subr.mxu0 0.0
      %3811 = vmatpush2.msra.mxu0 0.0
      %3812 = vmatprep.subr.mxu0 0.0
      %3813 = vmatpush2.msra.mxu0 0.0
      %3814 = vmatprep.subr.mxu0 0.0
      %3815 = vmatpush2.msra.mxu0 0.0
      %3816 = vmatprep.subr.mxu0 0.0
      %3817 = vmatpush2.msra.mxu0 0.0
      %3818 = vmatprep.subr.mxu0 0.0
      %3819 = vmatpush2.msra.mxu0 0.0
      %3820 = vmatprep.subr.mxu0 0.0
      %3821 = vmatpush2.msra.mxu0 0.0
      %3822 = vmatprep.subr.mxu0 0.0
      %3823 = vmatpush2.msra.mxu0 0.0
      %3824 = vmatprep.subr.mxu0 0.0
      %3825 = vmatpush2.msra.mxu0 0.0
      %3826 = vmatprep.subr.mxu0 0.0
      %3827 = vmatpush2.msra.mxu0 0.0
      %3828 = vmatprep.mubr.f32.mxu0 0.0
      %3829 = vmatmul.mubr.f32.gmra.mxu0 %v3741
      %v3830 = vpop.f32.mrf.mxu0
      %v3831 = vadd.f32 0.0, %v3830
      %v3832 = vpop.f32.mrf.mxu0
      %3833 = vmatprep.mubr.f32.mxu0 0.0
      %3834 = vmatmul.mubr.f32.gmra.mxu0 %v3744
      %v3835 = vpop.f32.mrf.mxu0
      %v3836 = vadd.f32 0.0, %v3835
      %v3837 = vpop.f32.mrf.mxu0
      %3838 = vmatprep.mubr.f32.mxu0 0.0
      %3839 = vmatmul.mubr.f32.gmra.mxu0 %v3747
      %v3840 = vpop.f32.mrf.mxu0
      %v3841 = vadd.f32 0.0, %v3840
      %v3842 = vpop.f32.mrf.mxu0
      %3843 = vmatprep.mubr.f32.mxu0 0.0
      %3844 = vmatmul.mubr.f32.gmra.mxu0 %v3750
      %v3845 = vpop.f32.mrf.mxu0
      %v3846 = vadd.f32 0.0, %v3845
      %v3847 = vpop.f32.mrf.mxu0
      %3848 = vmatprep.mubr.f32.mxu0 0.0
      %3849 = vmatmul.mubr.f32.gmra.mxu0 %v3753
      %v3850 = vpop.f32.mrf.mxu0
      %v3851 = vadd.f32 0.0, %v3850
      %v3852 = vpop.f32.mrf.mxu0
      %3853 = vmatprep.mubr.f32.mxu0 0.0
      %3854 = vmatmul.mubr.f32.gmra.mxu0 %v3756
      %v3855 = vpop.f32.mrf.mxu0
      %v3856 = vadd.f32 0.0, %v3855
      %v3857 = vpop.f32.mrf.mxu0
      %3858 = vmatprep.mubr.f32.mxu0 0.0
      %3859 = vmatmul.mubr.f32.gmra.mxu0 %v3759
      %v3860 = vpop.f32.mrf.mxu0
      %v3861 = vadd.f32 0.0, %v3860
      %v3862 = vpop.f32.mrf.mxu0
      %3863 = vmatprep.mubr.f32.mxu0 0.0
      %3864 = vmatmul.mubr.f32.gmra.mxu0 %v3762
      %v3865 = vpop.f32.mrf.mxu0
      %v3866 = vadd.f32 0.0, %v3865
      %v3867 = vpop.f32.mrf.mxu0
      %3868 = vdwg.mxu0
      %v3869 = vadd.f32 %v2899, %v3831
      %v3870 = vadd.f32 %v2904, %v3836
      %v3871 = vadd.f32 %v2909, %v3841
      %v3872 = vadd.f32 %v2914, %v3846
      %v3873 = vadd.f32 %v2919, %v3851
      %v3874 = vadd.f32 %v2924, %v3856
      %v3875 = vadd.f32 %v2929, %v3861
      %v3876 = vadd.f32 %v2934, %v3866
      %s3877 = scalar_lea.vmem %s9, 48
      %v3878 = vld [vmem:[%s3877] sm:$0xff]
      %v3879 = vld [vmem:[%s3877 + $0x8] sm:$0xff]
      %3880 = vrot.lane.b32.xlu0 %v830, 104
      %v3881 = vpop.permute.xlu0 %3880
      %3882 = vrot.lane.b32.xlu0 %v835, 104
      %v3883 = vpop.permute.xlu0 %3882
      %3884 = vrot.lane.b32.xlu0 %v946, 104
      %v3885 = vpop.permute.xlu0 %3884
      %3886 = vrot.lane.b32.xlu0 %v951, 104
      %v3887 = vpop.permute.xlu0 %3886
      %v3888 = vsel %vm1106, %v3881, 0
      %v3890 = vsel %vm1106, %v3883, 0
      %v3892 = vsel %vm1106, %v3885, 0
      %v3894 = vsel %vm1106, %v3887, 0
      %3896 = vmatprep.subr.mxu0 0.0
      %3897 = vmatpush1.xpose.msra.mxu0 0.0
      %3898 = vmatprep.subr.mxu0 0.0
      %3899 = vmatpush1.xpose.msra.mxu0 0.0
      %3900 = vmatprep.subr.mxu0 0.0
      %3901 = vmatpush1.xpose.msra.mxu0 0.0
      %3902 = vmatprep.subr.mxu0 0.0
      %3903 = vmatpush1.xpose.msra.mxu0 0.0
      %3904 = vmatprep.subr.mxu0 0.0
      %3905 = vmatpush1.xpose.msra.mxu0 0.0
      %3906 = vmatprep.subr.mxu0 0.0
      %3907 = vmatpush1.xpose.msra.mxu0 0.0
      %3908 = vmatprep.subr.mxu0 0.0
      %3909 = vmatpush1.xpose.msra.mxu0 0.0
      %3910 = vmatprep.subr.mxu0 0.0
      %3911 = vmatpush1.xpose.msra.mxu0 0.0
      %3912 = vmatprep.subr.mxu0 0.0
      %3913 = vmatpush1.xpose.msra.mxu0 0.0
      %3914 = vmatprep.subr.mxu0 0.0
      %3915 = vmatpush1.xpose.msra.mxu0 0.0
      %3916 = vmatprep.subr.mxu0 0.0
      %3917 = vmatpush1.xpose.msra.mxu0 0.0
      %3918 = vmatprep.subr.mxu0 0.0
      %3919 = vmatpush1.xpose.msra.mxu0 0.0
      %3920 = vmatprep.subr.mxu0 0.0
      %3921 = vmatpush1.xpose.msra.mxu0 0.0
      %3922 = vmatprep.subr.mxu0 0.0
      %3923 = vmatpush1.xpose.msra.mxu0 0.0
      %3924 = vmatprep.subr.mxu0 0.0
      %3925 = vmatpush1.xpose.msra.mxu0 %v3894
      %3926 = vmatprep.subr.mxu0 0.0
      %3927 = vmatpush1.xpose.msra.mxu0 %v3892
      %3928 = vmatprep.subr.mxu0 0.0
      %3929 = vmatpush2.xpose.msra.mxu0 0.0
      %3930 = vmatprep.subr.mxu0 0.0
      %3931 = vmatpush2.xpose.msra.mxu0 0.0
      %3932 = vmatprep.subr.mxu0 0.0
      %3933 = vmatpush2.xpose.msra.mxu0 0.0
      %3934 = vmatprep.subr.mxu0 0.0
      %3935 = vmatpush2.xpose.msra.mxu0 0.0
      %3936 = vmatprep.subr.mxu0 0.0
      %3937 = vmatpush2.xpose.msra.mxu0 0.0
      %3938 = vmatprep.subr.mxu0 0.0
      %3939 = vmatpush2.xpose.msra.mxu0 0.0
      %3940 = vmatprep.subr.mxu0 0.0
      %3941 = vmatpush2.xpose.msra.mxu0 0.0
      %3942 = vmatprep.subr.mxu0 0.0
      %3943 = vmatpush2.xpose.msra.mxu0 0.0
      %3944 = vmatprep.subr.mxu0 0.0
      %3945 = vmatpush2.xpose.msra.mxu0 0.0
      %3946 = vmatprep.subr.mxu0 0.0
      %3947 = vmatpush2.xpose.msra.mxu0 0.0
      %3948 = vmatprep.subr.mxu0 0.0
      %3949 = vmatpush2.xpose.msra.mxu0 0.0
      %3950 = vmatprep.subr.mxu0 0.0
      %3951 = vmatpush2.xpose.msra.mxu0 0.0
      %3952 = vmatprep.subr.mxu0 0.0
      %3953 = vmatpush2.xpose.msra.mxu0 0.0
      %3954 = vmatprep.subr.mxu0 0.0
      %3955 = vmatpush2.xpose.msra.mxu0 0.0
      %3956 = vmatprep.subr.mxu0 0.0
      %3957 = vmatpush2.xpose.msra.mxu0 0.0
      %3958 = vmatprep.subr.mxu0 0.0
      %3959 = vmatpush2.xpose.msra.mxu0 0.0
      %3960 = vmatprep.mubr.f32.mxu0 0.0
      %3961 = vmatmul.mubr.f32.gmra.mxu0 %v3888
      %v3962 = vpop.f32.mrf.mxu0
      %v3963 = vadd.f32 %v3878, %v3962
      %v3964 = vpop.f32.mrf.mxu0
      %3965 = vmatprep.mubr.f32.mxu0 0.0
      %3966 = vmatmul.mubr.f32.gmra.mxu0 %v3890
      %v3967 = vpop.f32.mrf.mxu0
      %v3968 = vadd.f32 %v3879, %v3967
      %v3969 = vpop.f32.mrf.mxu0
      %3970 = vdwg.mxu0
      %3971 = vrot.lane.b32.xlu0 %v840, 104
      %v3972 = vpop.permute.xlu0 %3971
      %3973 = vrot.lane.b32.xlu0 %v845, 104
      %v3974 = vpop.permute.xlu0 %3973
      %3975 = vrot.lane.b32.xlu0 %v956, 104
      %v3976 = vpop.permute.xlu0 %3975
      %3977 = vrot.lane.b32.xlu0 %v961, 104
      %v3978 = vpop.permute.xlu0 %3977
      %v3979 = vsel %vm1106, %v3972, 0
      %v3981 = vsel %vm1106, %v3974, 0
      %v3983 = vsel %vm1106, %v3976, 0
      %v3985 = vsel %vm1106, %v3978, 0
      %3987 = vmatprep.subr.mxu0 0.0
      %3988 = vmatpush1.xpose.msra.mxu0 0.0
      %3989 = vmatprep.subr.mxu0 0.0
      %3990 = vmatpush1.xpose.msra.mxu0 0.0
      %3991 = vmatprep.subr.mxu0 0.0
      %3992 = vmatpush1.xpose.msra.mxu0 0.0
      %3993 = vmatprep.subr.mxu0 0.0
      %3994 = vmatpush1.xpose.msra.mxu0 0.0
      %3995 = vmatprep.subr.mxu0 0.0
      %3996 = vmatpush1.xpose.msra.mxu0 0.0
      %3997 = vmatprep.subr.mxu0 0.0
      %3998 = vmatpush1.xpose.msra.mxu0 0.0
      %3999 = vmatprep.subr.mxu0 0.0
      %4000 = vmatpush1.xpose.msra.mxu0 0.0
      %4001 = vmatprep.subr.mxu0 0.0
      %4002 = vmatpush1.xpose.msra.mxu0 0.0
      %4003 = vmatprep.subr.mxu0 0.0
      %4004 = vmatpush1.xpose.msra.mxu0 0.0
      %4005 = vmatprep.subr.mxu0 0.0
      %4006 = vmatpush1.xpose.msra.mxu0 0.0
      %4007 = vmatprep.subr.mxu0 0.0
      %4008 = vmatpush1.xpose.msra.mxu0 0.0
      %4009 = vmatprep.subr.mxu0 0.0
      %4010 = vmatpush1.xpose.msra.mxu0 0.0
      %4011 = vmatprep.subr.mxu0 0.0
      %4012 = vmatpush1.xpose.msra.mxu0 0.0
      %4013 = vmatprep.subr.mxu0 0.0
      %4014 = vmatpush1.xpose.msra.mxu0 0.0
      %4015 = vmatprep.subr.mxu0 0.0
      %4016 = vmatpush1.xpose.msra.mxu0 %v3985
      %4017 = vmatprep.subr.mxu0 0.0
      %4018 = vmatpush1.xpose.msra.mxu0 %v3983
      %4019 = vmatprep.subr.mxu0 0.0
      %4020 = vmatpush2.xpose.msra.mxu0 0.0
      %4021 = vmatprep.subr.mxu0 0.0
      %4022 = vmatpush2.xpose.msra.mxu0 0.0
      %4023 = vmatprep.subr.mxu0 0.0
      %4024 = vmatpush2.xpose.msra.mxu0 0.0
      %4025 = vmatprep.subr.mxu0 0.0
      %4026 = vmatpush2.xpose.msra.mxu0 0.0
      %4027 = vmatprep.subr.mxu0 0.0
      %4028 = vmatpush2.xpose.msra.mxu0 0.0
      %4029 = vmatprep.subr.mxu0 0.0
      %4030 = vmatpush2.xpose.msra.mxu0 0.0
      %4031 = vmatprep.subr.mxu0 0.0
      %4032 = vmatpush2.xpose.msra.mxu0 0.0
      %4033 = vmatprep.subr.mxu0 0.0
      %4034 = vmatpush2.xpose.msra.mxu0 0.0
      %4035 = vmatprep.subr.mxu0 0.0
      %4036 = vmatpush2.xpose.msra.mxu0 0.0
      %4037 = vmatprep.subr.mxu0 0.0
      %4038 = vmatpush2.xpose.msra.mxu0 0.0
      %4039 = vmatprep.subr.mxu0 0.0
      %4040 = vmatpush2.xpose.msra.mxu0 0.0
      %4041 = vmatprep.subr.mxu0 0.0
      %4042 = vmatpush2.xpose.msra.mxu0 0.0
      %4043 = vmatprep.subr.mxu0 0.0
      %4044 = vmatpush2.xpose.msra.mxu0 0.0
      %4045 = vmatprep.subr.mxu0 0.0
      %4046 = vmatpush2.xpose.msra.mxu0 0.0
      %4047 = vmatprep.subr.mxu0 0.0
      %4048 = vmatpush2.xpose.msra.mxu0 0.0
      %4049 = vmatprep.subr.mxu0 0.0
      %4050 = vmatpush2.xpose.msra.mxu0 0.0
      %4051 = vmatprep.mubr.f32.mxu0 0.0
      %4052 = vmatmul.mubr.f32.gmra.mxu0 %v3979
      %v4053 = vpop.f32.mrf.mxu0
      %v4054 = vadd.f32 %v3878, %v4053
      %v4055 = vpop.f32.mrf.mxu0
      %4056 = vmatprep.mubr.f32.mxu0 0.0
      %4057 = vmatmul.mubr.f32.gmra.mxu0 %v3981
      %v4058 = vpop.f32.mrf.mxu0
      %v4059 = vadd.f32 %v3879, %v4058
      %v4060 = vpop.f32.mrf.mxu0
      %4061 = vdwg.mxu0
      %4062 = vrot.lane.b32.xlu0 %v850, 104
      %v4063 = vpop.permute.xlu0 %4062
      %4064 = vrot.lane.b32.xlu0 %v855, 104
      %v4065 = vpop.permute.xlu0 %4064
      %4066 = vrot.lane.b32.xlu0 %v966, 104
      %v4067 = vpop.permute.xlu0 %4066
      %4068 = vrot.lane.b32.xlu0 %v971, 104
      %v4069 = vpop.permute.xlu0 %4068
      %v4070 = vsel %vm1106, %v4063, 0
      %v4072 = vsel %vm1106, %v4065, 0
      %v4074 = vsel %vm1106, %v4067, 0
      %v4076 = vsel %vm1106, %v4069, 0
      %4078 = vmatprep.subr.mxu0 0.0
      %4079 = vmatpush1.xpose.msra.mxu0 0.0
      %4080 = vmatprep.subr.mxu0 0.0
      %4081 = vmatpush1.xpose.msra.mxu0 0.0
      %4082 = vmatprep.subr.mxu0 0.0
      %4083 = vmatpush1.xpose.msra.mxu0 0.0
      %4084 = vmatprep.subr.mxu0 0.0
      %4085 = vmatpush1.xpose.msra.mxu0 0.0
      %4086 = vmatprep.subr.mxu0 0.0
      %4087 = vmatpush1.xpose.msra.mxu0 0.0
      %4088 = vmatprep.subr.mxu0 0.0
      %4089 = vmatpush1.xpose.msra.mxu0 0.0
      %4090 = vmatprep.subr.mxu0 0.0
      %4091 = vmatpush1.xpose.msra.mxu0 0.0
      %4092 = vmatprep.subr.mxu0 0.0
      %4093 = vmatpush1.xpose.msra.mxu0 0.0
      %4094 = vmatprep.subr.mxu0 0.0
      %4095 = vmatpush1.xpose.msra.mxu0 0.0
      %4096 = vmatprep.subr.mxu0 0.0
      %4097 = vmatpush1.xpose.msra.mxu0 0.0
      %4098 = vmatprep.subr.mxu0 0.0
      %4099 = vmatpush1.xpose.msra.mxu0 0.0
      %4100 = vmatprep.subr.mxu0 0.0
      %4101 = vmatpush1.xpose.msra.mxu0 0.0
      %4102 = vmatprep.subr.mxu0 0.0
      %4103 = vmatpush1.xpose.msra.mxu0 0.0
      %4104 = vmatprep.subr.mxu0 0.0
      %4105 = vmatpush1.xpose.msra.mxu0 0.0
      %4106 = vmatprep.subr.mxu0 0.0
      %4107 = vmatpush1.xpose.msra.mxu0 %v4076
      %4108 = vmatprep.subr.mxu0 0.0
      %4109 = vmatpush1.xpose.msra.mxu0 %v4074
      %4110 = vmatprep.subr.mxu0 0.0
      %4111 = vmatpush2.xpose.msra.mxu0 0.0
      %4112 = vmatprep.subr.mxu0 0.0
      %4113 = vmatpush2.xpose.msra.mxu0 0.0
      %4114 = vmatprep.subr.mxu0 0.0
      %4115 = vmatpush2.xpose.msra.mxu0 0.0
      %4116 = vmatprep.subr.mxu0 0.0
      %4117 = vmatpush2.xpose.msra.mxu0 0.0
      %4118 = vmatprep.subr.mxu0 0.0
      %4119 = vmatpush2.xpose.msra.mxu0 0.0
      %4120 = vmatprep.subr.mxu0 0.0
      %4121 = vmatpush2.xpose.msra.mxu0 0.0
      %4122 = vmatprep.subr.mxu0 0.0
      %4123 = vmatpush2.xpose.msra.mxu0 0.0
      %4124 = vmatprep.subr.mxu0 0.0
      %4125 = vmatpush2.xpose.msra.mxu0 0.0
      %4126 = vmatprep.subr.mxu0 0.0
      %4127 = vmatpush2.xpose.msra.mxu0 0.0
      %4128 = vmatprep.subr.mxu0 0.0
      %4129 = vmatpush2.xpose.msra.mxu0 0.0
      %4130 = vmatprep.subr.mxu0 0.0
      %4131 = vmatpush2.xpose.msra.mxu0 0.0
      %4132 = vmatprep.subr.mxu0 0.0
      %4133 = vmatpush2.xpose.msra.mxu0 0.0
      %4134 = vmatprep.subr.mxu0 0.0
      %4135 = vmatpush2.xpose.msra.mxu0 0.0
      %4136 = vmatprep.subr.mxu0 0.0
      %4137 = vmatpush2.xpose.msra.mxu0 0.0
      %4138 = vmatprep.subr.mxu0 0.0
      %4139 = vmatpush2.xpose.msra.mxu0 0.0
      %4140 = vmatprep.subr.mxu0 0.0
      %4141 = vmatpush2.xpose.msra.mxu0 0.0
      %4142 = vmatprep.mubr.f32.mxu0 0.0
      %4143 = vmatmul.mubr.f32.gmra.mxu0 %v4070
      %v4144 = vpop.f32.mrf.mxu0
      %v4145 = vadd.f32 %v3878, %v4144
      %v4146 = vpop.f32.mrf.mxu0
      %4147 = vmatprep.mubr.f32.mxu0 0.0
      %4148 = vmatmul.mubr.f32.gmra.mxu0 %v4072
      %v4149 = vpop.f32.mrf.mxu0
      %v4150 = vadd.f32 %v3879, %v4149
      %v4151 = vpop.f32.mrf.mxu0
      %4152 = vdwg.mxu0
      %4153 = vrot.lane.b32.xlu0 %v860, 104
      %v4154 = vpop.permute.xlu0 %4153
      %4155 = vrot.lane.b32.xlu0 %v865, 104
      %v4156 = vpop.permute.xlu0 %4155
      %4157 = vrot.lane.b32.xlu0 %v976, 104
      %v4158 = vpop.permute.xlu0 %4157
      %4159 = vrot.lane.b32.xlu0 %v981, 104
      %v4160 = vpop.permute.xlu0 %4159
      %v4161 = vsel %vm1106, %v4154, 0
      %v4163 = vsel %vm1106, %v4156, 0
      %v4165 = vsel %vm1106, %v4158, 0
      %v4167 = vsel %vm1106, %v4160, 0
      %4169 = vmatprep.subr.mxu0 0.0
      %4170 = vmatpush1.xpose.msra.mxu0 0.0
      %4171 = vmatprep.subr.mxu0 0.0
      %4172 = vmatpush1.xpose.msra.mxu0 0.0
      %4173 = vmatprep.subr.mxu0 0.0
      %4174 = vmatpush1.xpose.msra.mxu0 0.0
      %4175 = vmatprep.subr.mxu0 0.0
      %4176 = vmatpush1.xpose.msra.mxu0 0.0
      %4177 = vmatprep.subr.mxu0 0.0
      %4178 = vmatpush1.xpose.msra.mxu0 0.0
      %4179 = vmatprep.subr.mxu0 0.0
      %4180 = vmatpush1.xpose.msra.mxu0 0.0
      %4181 = vmatprep.subr.mxu0 0.0
      %4182 = vmatpush1.xpose.msra.mxu0 0.0
      %4183 = vmatprep.subr.mxu0 0.0
      %4184 = vmatpush1.xpose.msra.mxu0 0.0
      %4185 = vmatprep.subr.mxu0 0.0
      %4186 = vmatpush1.xpose.msra.mxu0 0.0
      %4187 = vmatprep.subr.mxu0 0.0
      %4188 = vmatpush1.xpose.msra.mxu0 0.0
      %4189 = vmatprep.subr.mxu0 0.0
      %4190 = vmatpush1.xpose.msra.mxu0 0.0
      %4191 = vmatprep.subr.mxu0 0.0
      %4192 = vmatpush1.xpose.msra.mxu0 0.0
      %4193 = vmatprep.subr.mxu0 0.0
      %4194 = vmatpush1.xpose.msra.mxu0 0.0
      %4195 = vmatprep.subr.mxu0 0.0
      %4196 = vmatpush1.xpose.msra.mxu0 0.0
      %4197 = vmatprep.subr.mxu0 0.0
      %4198 = vmatpush1.xpose.msra.mxu0 %v4167
      %4199 = vmatprep.subr.mxu0 0.0
      %4200 = vmatpush1.xpose.msra.mxu0 %v4165
      %4201 = vmatprep.subr.mxu0 0.0
      %4202 = vmatpush2.xpose.msra.mxu0 0.0
      %4203 = vmatprep.subr.mxu0 0.0
      %4204 = vmatpush2.xpose.msra.mxu0 0.0
      %4205 = vmatprep.subr.mxu0 0.0
      %4206 = vmatpush2.xpose.msra.mxu0 0.0
      %4207 = vmatprep.subr.mxu0 0.0
      %4208 = vmatpush2.xpose.msra.mxu0 0.0
      %4209 = vmatprep.subr.mxu0 0.0
      %4210 = vmatpush2.xpose.msra.mxu0 0.0
      %4211 = vmatprep.subr.mxu0 0.0
      %4212 = vmatpush2.xpose.msra.mxu0 0.0
      %4213 = vmatprep.subr.mxu0 0.0
      %4214 = vmatpush2.xpose.msra.mxu0 0.0
      %4215 = vmatprep.subr.mxu0 0.0
      %4216 = vmatpush2.xpose.msra.mxu0 0.0
      %4217 = vmatprep.subr.mxu0 0.0
      %4218 = vmatpush2.xpose.msra.mxu0 0.0
      %4219 = vmatprep.subr.mxu0 0.0
      %4220 = vmatpush2.xpose.msra.mxu0 0.0
      %4221 = vmatprep.subr.mxu0 0.0
      %4222 = vmatpush2.xpose.msra.mxu0 0.0
      %4223 = vmatprep.subr.mxu0 0.0
      %4224 = vmatpush2.xpose.msra.mxu0 0.0
      %4225 = vmatprep.subr.mxu0 0.0
      %4226 = vmatpush2.xpose.msra.mxu0 0.0
      %4227 = vmatprep.subr.mxu0 0.0
      %4228 = vmatpush2.xpose.msra.mxu0 0.0
      %4229 = vmatprep.subr.mxu0 0.0
      %4230 = vmatpush2.xpose.msra.mxu0 0.0
      %4231 = vmatprep.subr.mxu0 0.0
      %4232 = vmatpush2.xpose.msra.mxu0 0.0
      %4233 = vmatprep.mubr.f32.mxu0 0.0
      %4234 = vmatmul.mubr.f32.gmra.mxu0 %v4161
      %v4235 = vpop.f32.mrf.mxu0
      %v4236 = vadd.f32 %v3878, %v4235
      %v4237 = vpop.f32.mrf.mxu0
      %4238 = vmatprep.mubr.f32.mxu0 0.0
      %4239 = vmatmul.mubr.f32.gmra.mxu0 %v4163
      %v4240 = vpop.f32.mrf.mxu0
      %v4241 = vadd.f32 %v3879, %v4240
      %v4242 = vpop.f32.mrf.mxu0
      %4243 = vdwg.mxu0
      %v4244 = vsel %vm1455, %v3963, -inf
      %4245 = vmax.xlane.f32.xlu0 %v4244
      %v4246 = vpop.xlane.xlu0 %4245
      %v4247 = vsel %vm1455, %v3968, -inf
      %4248 = vmax.xlane.f32.xlu0 %v4247
      %v4249 = vpop.xlane.xlu0 %4248
      %v4250 = vsel %vm1455, %v4054, -inf
      %4251 = vmax.xlane.f32.xlu0 %v4250
      %v4252 = vpop.xlane.xlu0 %4251
      %v4253 = vsel %vm1455, %v4059, -inf
      %4254 = vmax.xlane.f32.xlu0 %v4253
      %v4255 = vpop.xlane.xlu0 %4254
      %v4256 = vsel %vm1455, %v4145, -inf
      %4257 = vmax.xlane.f32.xlu0 %v4256
      %v4258 = vpop.xlane.xlu0 %4257
      %v4259 = vsel %vm1455, %v4150, -inf
      %4260 = vmax.xlane.f32.xlu0 %v4259
      %v4261 = vpop.xlane.xlu0 %4260
      %v4262 = vsel %vm1455, %v4236, -inf
      %4263 = vmax.xlane.f32.xlu0 %v4262
      %v4264 = vpop.xlane.xlu0 %4263
      %v4265 = vsel %vm1455, %v4241, -inf
      %4266 = vmax.xlane.f32.xlu0 %v4265
      %v4267 = vpop.xlane.xlu0 %4266
      %v4268 = vsub.f32 %v3963, %v4246
      %v4269 = vsub.f32 %v3968, %v4249
      %v4270 = vsub.f32 %v4054, %v4252
      %v4271 = vsub.f32 %v4059, %v4255
      %v4272 = vsub.f32 %v4145, %v4258
      %v4273 = vsub.f32 %v4150, %v4261
      %v4274 = vsub.f32 %v4236, %v4264
      %v4275 = vsub.f32 %v4241, %v4267
      %v4276 = vmul.f32 %v4268, 1.442695
      %v4277 = vpow.pop %v4276
      %v4278 = vmul.f32 %v4269, 1.442695
      %v4279 = vpow.pop %v4278
      %v4280 = vmul.f32 %v4270, 1.442695
      %v4281 = vpow.pop %v4280
      %v4282 = vmul.f32 %v4271, 1.442695
      %v4283 = vpow.pop %v4282
      %v4284 = vmul.f32 %v4272, 1.442695
      %v4285 = vpow.pop %v4284
      %v4286 = vmul.f32 %v4273, 1.442695
      %v4287 = vpow.pop %v4286
      %v4288 = vmul.f32 %v4274, 1.442695
      %v4289 = vpow.pop %v4288
      %v4290 = vmul.f32 %v4275, 1.442695
      %v4291 = vpow.pop %v4290
      %v4292 = vsel %vm1455, %v4277, 0.0
      %4293 = vadd.xlane.f32.xlu0 %v4292
      %v4294 = vpop.xlane.xlu0 %4293
      %v4295 = vsel %vm1455, %v4279, 0.0
      %4296 = vadd.xlane.f32.xlu0 %v4295
      %v4297 = vpop.xlane.xlu0 %4296
      %v4298 = vsel %vm1455, %v4281, 0.0
      %4299 = vadd.xlane.f32.xlu0 %v4298
      %v4300 = vpop.xlane.xlu0 %4299
      %v4301 = vsel %vm1455, %v4283, 0.0
      %4302 = vadd.xlane.f32.xlu0 %v4301
      %v4303 = vpop.xlane.xlu0 %4302
      %v4304 = vsel %vm1455, %v4285, 0.0
      %4305 = vadd.xlane.f32.xlu0 %v4304
      %v4306 = vpop.xlane.xlu0 %4305
      %v4307 = vsel %vm1455, %v4287, 0.0
      %4308 = vadd.xlane.f32.xlu0 %v4307
      %v4309 = vpop.xlane.xlu0 %4308
      %v4310 = vsel %vm1455, %v4289, 0.0
      %4311 = vadd.xlane.f32.xlu0 %v4310
      %v4312 = vpop.xlane.xlu0 %4311
      %v4313 = vsel %vm1455, %v4291, 0.0
      %4314 = vadd.xlane.f32.xlu0 %v4313
      %v4315 = vpop.xlane.xlu0 %4314
      %4316 = vrot.lane.b32.xlu0 %v1062, 104
      %v4317 = vpop.permute.xlu0 %4316
      %4318 = vrot.lane.b32.xlu0 %v1067, 104
      %v4319 = vpop.permute.xlu0 %4318
      %v4323 = vsel %vm1455, %v4277, 0
      %v4326 = vsel %vm1455, %v4279, 0
      %4328 = vmatprep.subr.mxu0 0.0
      %4329 = vmatpush1.msra.mxu0 0.0
      %4330 = vmatprep.subr.mxu0 0.0
      %4331 = vmatpush1.msra.mxu0 0.0
      %4332 = vmatprep.subr.mxu0 0.0
      %4333 = vmatpush1.msra.mxu0 0.0
      %4334 = vmatprep.subr.mxu0 0.0
      %4335 = vmatpush1.msra.mxu0 0.0
      %4336 = vmatprep.subr.mxu0 0.0
      %4337 = vmatpush1.msra.mxu0 0.0
      %4338 = vmatprep.subr.mxu0 0.0
      %4339 = vmatpush1.msra.mxu0 0.0
      %4340 = vmatprep.subr.mxu0 0.0
      %4341 = vmatpush1.msra.mxu0 0.0
      %4342 = vmatprep.subr.mxu0 0.0
      %4343 = vmatpush1.msra.mxu0 0.0
      %4344 = vmatprep.subr.mxu0 0.0
      %4345 = vmatpush1.msra.mxu0 0.0
      %4346 = vmatprep.subr.mxu0 0.0
      %4347 = vmatpush1.msra.mxu0 0.0
      %4348 = vmatprep.subr.mxu0 0.0
      %4349 = vmatpush1.msra.mxu0 0.0
      %4350 = vmatprep.subr.mxu0 0.0
      %4351 = vmatpush1.msra.mxu0 0.0
      %4352 = vmatprep.subr.mxu0 0.0
      %4353 = vmatpush1.msra.mxu0 0.0
      %4354 = vmatprep.subr.mxu0 0.0
      %4355 = vmatpush1.msra.mxu0 0.0
      %4356 = vmatprep.subr.mxu0 0.0
      %4357 = vmatpush1.msra.mxu0 %v4319
      %4358 = vmatprep.subr.mxu0 0.0
      %4359 = vmatpush1.msra.mxu0 %v4317
      %4360 = vmatprep.subr.mxu0 0.0
      %4361 = vmatpush2.msra.mxu0 0.0
      %4362 = vmatprep.subr.mxu0 0.0
      %4363 = vmatpush2.msra.mxu0 0.0
      %4364 = vmatprep.subr.mxu0 0.0
      %4365 = vmatpush2.msra.mxu0 0.0
      %4366 = vmatprep.subr.mxu0 0.0
      %4367 = vmatpush2.msra.mxu0 0.0
      %4368 = vmatprep.subr.mxu0 0.0
      %4369 = vmatpush2.msra.mxu0 0.0
      %4370 = vmatprep.subr.mxu0 0.0
      %4371 = vmatpush2.msra.mxu0 0.0
      %4372 = vmatprep.subr.mxu0 0.0
      %4373 = vmatpush2.msra.mxu0 0.0
      %4374 = vmatprep.subr.mxu0 0.0
      %4375 = vmatpush2.msra.mxu0 0.0
      %4376 = vmatprep.subr.mxu0 0.0
      %4377 = vmatpush2.msra.mxu0 0.0
      %4378 = vmatprep.subr.mxu0 0.0
      %4379 = vmatpush2.msra.mxu0 0.0
      %4380 = vmatprep.subr.mxu0 0.0
      %4381 = vmatpush2.msra.mxu0 0.0
      %4382 = vmatprep.subr.mxu0 0.0
      %4383 = vmatpush2.msra.mxu0 0.0
      %4384 = vmatprep.subr.mxu0 0.0
      %4385 = vmatpush2.msra.mxu0 0.0
      %4386 = vmatprep.subr.mxu0 0.0
      %4387 = vmatpush2.msra.mxu0 0.0
      %4388 = vmatprep.subr.mxu0 0.0
      %4389 = vmatpush2.msra.mxu0 0.0
      %4390 = vmatprep.subr.mxu0 0.0
      %4391 = vmatpush2.msra.mxu0 0.0
      %4392 = vmatprep.mubr.f32.mxu0 0.0
      %4393 = vmatmul.mubr.f32.gmra.mxu0 %v4323
      %v4394 = vpop.f32.mrf.mxu0
      %v4395 = vadd.f32 0.0, %v4394
      %v4396 = vpop.f32.mrf.mxu0
      %4397 = vmatprep.mubr.f32.mxu0 0.0
      %4398 = vmatmul.mubr.f32.gmra.mxu0 %v4326
      %v4399 = vpop.f32.mrf.mxu0
      %v4400 = vadd.f32 0.0, %v4399
      %v4401 = vpop.f32.mrf.mxu0
      %4402 = vdwg.mxu0
      %4403 = vrot.lane.b32.xlu0 %v1072, 104
      %v4404 = vpop.permute.xlu0 %4403
      %4405 = vrot.lane.b32.xlu0 %v1077, 104
      %v4406 = vpop.permute.xlu0 %4405
      %v4410 = vsel %vm1455, %v4281, 0
      %v4413 = vsel %vm1455, %v4283, 0
      %4415 = vmatprep.subr.mxu0 0.0
      %4416 = vmatpush1.msra.mxu0 0.0
      %4417 = vmatprep.subr.mxu0 0.0
      %4418 = vmatpush1.msra.mxu0 0.0
      %4419 = vmatprep.subr.mxu0 0.0
      %4420 = vmatpush1.msra.mxu0 0.0
      %4421 = vmatprep.subr.mxu0 0.0
      %4422 = vmatpush1.msra.mxu0 0.0
      %4423 = vmatprep.subr.mxu0 0.0
      %4424 = vmatpush1.msra.mxu0 0.0
      %4425 = vmatprep.subr.mxu0 0.0
      %4426 = vmatpush1.msra.mxu0 0.0
      %4427 = vmatprep.subr.mxu0 0.0
      %4428 = vmatpush1.msra.mxu0 0.0
      %4429 = vmatprep.subr.mxu0 0.0
      %4430 = vmatpush1.msra.mxu0 0.0
      %4431 = vmatprep.subr.mxu0 0.0
      %4432 = vmatpush1.msra.mxu0 0.0
      %4433 = vmatprep.subr.mxu0 0.0
      %4434 = vmatpush1.msra.mxu0 0.0
      %4435 = vmatprep.subr.mxu0 0.0
      %4436 = vmatpush1.msra.mxu0 0.0
      %4437 = vmatprep.subr.mxu0 0.0
      %4438 = vmatpush1.msra.mxu0 0.0
      %4439 = vmatprep.subr.mxu0 0.0
      %4440 = vmatpush1.msra.mxu0 0.0
      %4441 = vmatprep.subr.mxu0 0.0
      %4442 = vmatpush1.msra.mxu0 0.0
      %4443 = vmatprep.subr.mxu0 0.0
      %4444 = vmatpush1.msra.mxu0 %v4406
      %4445 = vmatprep.subr.mxu0 0.0
      %4446 = vmatpush1.msra.mxu0 %v4404
      %4447 = vmatprep.subr.mxu0 0.0
      %4448 = vmatpush2.msra.mxu0 0.0
      %4449 = vmatprep.subr.mxu0 0.0
      %4450 = vmatpush2.msra.mxu0 0.0
      %4451 = vmatprep.subr.mxu0 0.0
      %4452 = vmatpush2.msra.mxu0 0.0
      %4453 = vmatprep.subr.mxu0 0.0
      %4454 = vmatpush2.msra.mxu0 0.0
      %4455 = vmatprep.subr.mxu0 0.0
      %4456 = vmatpush2.msra.mxu0 0.0
      %4457 = vmatprep.subr.mxu0 0.0
      %4458 = vmatpush2.msra.mxu0 0.0
      %4459 = vmatprep.subr.mxu0 0.0
      %4460 = vmatpush2.msra.mxu0 0.0
      %4461 = vmatprep.subr.mxu0 0.0
      %4462 = vmatpush2.msra.mxu0 0.0
      %4463 = vmatprep.subr.mxu0 0.0
      %4464 = vmatpush2.msra.mxu0 0.0
      %4465 = vmatprep.subr.mxu0 0.0
      %4466 = vmatpush2.msra.mxu0 0.0
      %4467 = vmatprep.subr.mxu0 0.0
      %4468 = vmatpush2.msra.mxu0 0.0
      %4469 = vmatprep.subr.mxu0 0.0
      %4470 = vmatpush2.msra.mxu0 0.0
      %4471 = vmatprep.subr.mxu0 0.0
      %4472 = vmatpush2.msra.mxu0 0.0
      %4473 = vmatprep.subr.mxu0 0.0
      %4474 = vmatpush2.msra.mxu0 0.0
      %4475 = vmatprep.subr.mxu0 0.0
      %4476 = vmatpush2.msra.mxu0 0.0
      %4477 = vmatprep.subr.mxu0 0.0
      %4478 = vmatpush2.msra.mxu0 0.0
      %4479 = vmatprep.mubr.f32.mxu0 0.0
      %4480 = vmatmul.mubr.f32.gmra.mxu0 %v4410
      %v4481 = vpop.f32.mrf.mxu0
      %v4482 = vadd.f32 0.0, %v4481
      %v4483 = vpop.f32.mrf.mxu0
      %4484 = vmatprep.mubr.f32.mxu0 0.0
      %4485 = vmatmul.mubr.f32.gmra.mxu0 %v4413
      %v4486 = vpop.f32.mrf.mxu0
      %v4487 = vadd.f32 0.0, %v4486
      %v4488 = vpop.f32.mrf.mxu0
      %4489 = vdwg.mxu0
      %4490 = vrot.lane.b32.xlu0 %v1082, 104
      %v4491 = vpop.permute.xlu0 %4490
      %4492 = vrot.lane.b32.xlu0 %v1087, 104
      %v4493 = vpop.permute.xlu0 %4492
      %v4497 = vsel %vm1455, %v4285, 0
      %v4500 = vsel %vm1455, %v4287, 0
      %4502 = vmatprep.subr.mxu0 0.0
      %4503 = vmatpush1.msra.mxu0 0.0
      %4504 = vmatprep.subr.mxu0 0.0
      %4505 = vmatpush1.msra.mxu0 0.0
      %4506 = vmatprep.subr.mxu0 0.0
      %4507 = vmatpush1.msra.mxu0 0.0
      %4508 = vmatprep.subr.mxu0 0.0
      %4509 = vmatpush1.msra.mxu0 0.0
      %4510 = vmatprep.subr.mxu0 0.0
      %4511 = vmatpush1.msra.mxu0 0.0
      %4512 = vmatprep.subr.mxu0 0.0
      %4513 = vmatpush1.msra.mxu0 0.0
      %4514 = vmatprep.subr.mxu0 0.0
      %4515 = vmatpush1.msra.mxu0 0.0
      %4516 = vmatprep.subr.mxu0 0.0
      %4517 = vmatpush1.msra.mxu0 0.0
      %4518 = vmatprep.subr.mxu0 0.0
      %4519 = vmatpush1.msra.mxu0 0.0
      %4520 = vmatprep.subr.mxu0 0.0
      %4521 = vmatpush1.msra.mxu0 0.0
      %4522 = vmatprep.subr.mxu0 0.0
      %4523 = vmatpush1.msra.mxu0 0.0
      %4524 = vmatprep.subr.mxu0 0.0
      %4525 = vmatpush1.msra.mxu0 0.0
      %4526 = vmatprep.subr.mxu0 0.0
      %4527 = vmatpush1.msra.mxu0 0.0
      %4528 = vmatprep.subr.mxu0 0.0
      %4529 = vmatpush1.msra.mxu0 0.0
      %4530 = vmatprep.subr.mxu0 0.0
      %4531 = vmatpush1.msra.mxu0 %v4493
      %4532 = vmatprep.subr.mxu0 0.0
      %4533 = vmatpush1.msra.mxu0 %v4491
      %4534 = vmatprep.subr.mxu0 0.0
      %4535 = vmatpush2.msra.mxu0 0.0
      %4536 = vmatprep.subr.mxu0 0.0
      %4537 = vmatpush2.msra.mxu0 0.0
      %4538 = vmatprep.subr.mxu0 0.0
      %4539 = vmatpush2.msra.mxu0 0.0
      %4540 = vmatprep.subr.mxu0 0.0
      %4541 = vmatpush2.msra.mxu0 0.0
      %4542 = vmatprep.subr.mxu0 0.0
      %4543 = vmatpush2.msra.mxu0 0.0
      %4544 = vmatprep.subr.mxu0 0.0
      %4545 = vmatpush2.msra.mxu0 0.0
      %4546 = vmatprep.subr.mxu0 0.0
      %4547 = vmatpush2.msra.mxu0 0.0
      %4548 = vmatprep.subr.mxu0 0.0
      %4549 = vmatpush2.msra.mxu0 0.0
      %4550 = vmatprep.subr.mxu0 0.0
      %4551 = vmatpush2.msra.mxu0 0.0
      %4552 = vmatprep.subr.mxu0 0.0
      %4553 = vmatpush2.msra.mxu0 0.0
      %4554 = vmatprep.subr.mxu0 0.0
      %4555 = vmatpush2.msra.mxu0 0.0
      %4556 = vmatprep.subr.mxu0 0.0
      %4557 = vmatpush2.msra.mxu0 0.0
      %4558 = vmatprep.subr.mxu0 0.0
      %4559 = vmatpush2.msra.mxu0 0.0
      %4560 = vmatprep.subr.mxu0 0.0
      %4561 = vmatpush2.msra.mxu0 0.0
      %4562 = vmatprep.subr.mxu0 0.0
      %4563 = vmatpush2.msra.mxu0 0.0
      %4564 = vmatprep.subr.mxu0 0.0
      %4565 = vmatpush2.msra.mxu0 0.0
      %4566 = vmatprep.mubr.f32.mxu0 0.0
      %4567 = vmatmul.mubr.f32.gmra.mxu0 %v4497
      %v4568 = vpop.f32.mrf.mxu0
      %v4569 = vadd.f32 0.0, %v4568
      %v4570 = vpop.f32.mrf.mxu0
      %4571 = vmatprep.mubr.f32.mxu0 0.0
      %4572 = vmatmul.mubr.f32.gmra.mxu0 %v4500
      %v4573 = vpop.f32.mrf.mxu0
      %v4574 = vadd.f32 0.0, %v4573
      %v4575 = vpop.f32.mrf.mxu0
      %4576 = vdwg.mxu0
      %4577 = vrot.lane.b32.xlu0 %v1092, 104
      %v4578 = vpop.permute.xlu0 %4577
      %4579 = vrot.lane.b32.xlu0 %v1097, 104
      %v4580 = vpop.permute.xlu0 %4579
      %v4584 = vsel %vm1455, %v4289, 0
      %v4587 = vsel %vm1455, %v4291, 0
      %4589 = vmatprep.subr.mxu0 0.0
      %4590 = vmatpush1.msra.mxu0 0.0
      %4591 = vmatprep.subr.mxu0 0.0
      %4592 = vmatpush1.msra.mxu0 0.0
      %4593 = vmatprep.subr.mxu0 0.0
      %4594 = vmatpush1.msra.mxu0 0.0
      %4595 = vmatprep.subr.mxu0 0.0
      %4596 = vmatpush1.msra.mxu0 0.0
      %4597 = vmatprep.subr.mxu0 0.0
      %4598 = vmatpush1.msra.mxu0 0.0
      %4599 = vmatprep.subr.mxu0 0.0
      %4600 = vmatpush1.msra.mxu0 0.0
      %4601 = vmatprep.subr.mxu0 0.0
      %4602 = vmatpush1.msra.mxu0 0.0
      %4603 = vmatprep.subr.mxu0 0.0
      %4604 = vmatpush1.msra.mxu0 0.0
      %4605 = vmatprep.subr.mxu0 0.0
      %4606 = vmatpush1.msra.mxu0 0.0
      %4607 = vmatprep.subr.mxu0 0.0
      %4608 = vmatpush1.msra.mxu0 0.0
      %4609 = vmatprep.subr.mxu0 0.0
      %4610 = vmatpush1.msra.mxu0 0.0
      %4611 = vmatprep.subr.mxu0 0.0
      %4612 = vmatpush1.msra.mxu0 0.0
      %4613 = vmatprep.subr.mxu0 0.0
      %4614 = vmatpush1.msra.mxu0 0.0
      %4615 = vmatprep.subr.mxu0 0.0
      %4616 = vmatpush1.msra.mxu0 0.0
      %4617 = vmatprep.subr.mxu0 0.0
      %4618 = vmatpush1.msra.mxu0 %v4580
      %4619 = vmatprep.subr.mxu0 0.0
      %4620 = vmatpush1.msra.mxu0 %v4578
      %4621 = vmatprep.subr.mxu0 0.0
      %4622 = vmatpush2.msra.mxu0 0.0
      %4623 = vmatprep.subr.mxu0 0.0
      %4624 = vmatpush2.msra.mxu0 0.0
      %4625 = vmatprep.subr.mxu0 0.0
      %4626 = vmatpush2.msra.mxu0 0.0
      %4627 = vmatprep.subr.mxu0 0.0
      %4628 = vmatpush2.msra.mxu0 0.0
      %4629 = vmatprep.subr.mxu0 0.0
      %4630 = vmatpush2.msra.mxu0 0.0
      %4631 = vmatprep.subr.mxu0 0.0
      %4632 = vmatpush2.msra.mxu0 0.0
      %4633 = vmatprep.subr.mxu0 0.0
      %4634 = vmatpush2.msra.mxu0 0.0
      %4635 = vmatprep.subr.mxu0 0.0
      %4636 = vmatpush2.msra.mxu0 0.0
      %4637 = vmatprep.subr.mxu0 0.0
      %4638 = vmatpush2.msra.mxu0 0.0
      %4639 = vmatprep.subr.mxu0 0.0
      %4640 = vmatpush2.msra.mxu0 0.0
      %4641 = vmatprep.subr.mxu0 0.0
      %4642 = vmatpush2.msra.mxu0 0.0
      %4643 = vmatprep.subr.mxu0 0.0
      %4644 = vmatpush2.msra.mxu0 0.0
      %4645 = vmatprep.subr.mxu0 0.0
      %4646 = vmatpush2.msra.mxu0 0.0
      %4647 = vmatprep.subr.mxu0 0.0
      %4648 = vmatpush2.msra.mxu0 0.0
      %4649 = vmatprep.subr.mxu0 0.0
      %4650 = vmatpush2.msra.mxu0 0.0
      %4651 = vmatprep.subr.mxu0 0.0
      %4652 = vmatpush2.msra.mxu0 0.0
      %4653 = vmatprep.mubr.f32.mxu0 0.0
      %4654 = vmatmul.mubr.f32.gmra.mxu0 %v4584
      %v4655 = vpop.f32.mrf.mxu0
      %v4656 = vadd.f32 0.0, %v4655
      %v4657 = vpop.f32.mrf.mxu0
      %4658 = vmatprep.mubr.f32.mxu0 0.0
      %4659 = vmatmul.mubr.f32.gmra.mxu0 %v4587
      %v4660 = vpop.f32.mrf.mxu0
      %v4661 = vadd.f32 0.0, %v4660
      %v4662 = vpop.f32.mrf.mxu0
      %4663 = vdwg.mxu0
      %v4664 = vrcp.pop %v4294
      %v4665 = vrcp.pop %v4297
      %v4666 = vrcp.pop %v4300
      %v4667 = vrcp.pop %v4303
      %v4668 = vrcp.pop %v4306
      %v4669 = vrcp.pop %v4309
      %v4670 = vrcp.pop %v4312
      %v4671 = vrcp.pop %v4315
      %v4672 = vmul.f32 %v4395, %v4664
      %v4673 = vmul.f32 %v4400, %v4665
      %v4674 = vmul.f32 %v4482, %v4666
      %v4675 = vmul.f32 %v4487, %v4667
      %v4676 = vmul.f32 %v4569, %v4668
      %v4677 = vmul.f32 %v4574, %v4669
      %v4678 = vmul.f32 %v4656, %v4670
      %v4679 = vmul.f32 %v4661, %v4671
      %v4681 = vsel %vm1106, %v4672, 0
      %v4684 = vsel %vm1106, %v4673, 0
      %v4687 = vsel %vm1106, %v4674, 0
      %v4690 = vsel %vm1106, %v4675, 0
      %v4693 = vsel %vm1106, %v4676, 0
      %v4696 = vsel %vm1106, %v4677, 0
      %v4699 = vsel %vm1106, %v4678, 0
      %v4702 = vsel %vm1106, %v4679, 0
      %4704 = vmatprep.subr.mxu0 0.0
      %4705 = vmatpush1.msra.mxu0 0.0
      %4706 = vmatprep.subr.mxu0 0.0
      %4707 = vmatpush1.msra.mxu0 0.0
      %4708 = vmatprep.subr.mxu0 0.0
      %4709 = vmatpush1.msra.mxu0 0.0
      %4710 = vmatprep.subr.mxu0 0.0
      %4711 = vmatpush1.msra.mxu0 0.0
      %4712 = vmatprep.subr.mxu0 0.0
      %4713 = vmatpush1.msra.mxu0 0.0
      %4714 = vmatprep.subr.mxu0 0.0
      %4715 = vmatpush1.msra.mxu0 0.0
      %4716 = vmatprep.subr.mxu0 0.0
      %4717 = vmatpush1.msra.mxu0 0.0
      %4718 = vmatprep.subr.mxu0 0.0
      %4719 = vmatpush1.msra.mxu0 0.0
      %4720 = vmatprep.subr.mxu0 0.0
      %4721 = vmatpush1.msra.mxu0 0.0
      %4722 = vmatprep.subr.mxu0 0.0
      %4723 = vmatpush1.msra.mxu0 0.0
      %4724 = vmatprep.subr.mxu0 0.0
      %4725 = vmatpush1.msra.mxu0 0.0
      %4726 = vmatprep.subr.mxu0 0.0
      %4727 = vmatpush1.msra.mxu0 0.0
      %4728 = vmatprep.subr.mxu0 0.0
      %4729 = vmatpush1.msra.mxu0 0.0
      %4730 = vmatprep.subr.mxu0 0.0
      %4731 = vmatpush1.msra.mxu0 0.0
      %4732 = vmatprep.subr.mxu0 0.0
      %4733 = vmatpush1.msra.mxu0 0.0
      %4734 = vmatprep.subr.mxu0 0.0
      %4735 = vmatpush1.msra.mxu0 %v1103
      %4736 = vmatprep.subr.mxu0 0.0
      %4737 = vmatpush2.msra.mxu0 0.0
      %4738 = vmatprep.subr.mxu0 0.0
      %4739 = vmatpush2.msra.mxu0 0.0
      %4740 = vmatprep.subr.mxu0 0.0
      %4741 = vmatpush2.msra.mxu0 0.0
      %4742 = vmatprep.subr.mxu0 0.0
      %4743 = vmatpush2.msra.mxu0 0.0
      %4744 = vmatprep.subr.mxu0 0.0
      %4745 = vmatpush2.msra.mxu0 0.0
      %4746 = vmatprep.subr.mxu0 0.0
      %4747 = vmatpush2.msra.mxu0 0.0
      %4748 = vmatprep.subr.mxu0 0.0
      %4749 = vmatpush2.msra.mxu0 0.0
      %4750 = vmatprep.subr.mxu0 0.0
      %4751 = vmatpush2.msra.mxu0 0.0
      %4752 = vmatprep.subr.mxu0 0.0
      %4753 = vmatpush2.msra.mxu0 0.0
      %4754 = vmatprep.subr.mxu0 0.0
      %4755 = vmatpush2.msra.mxu0 0.0
      %4756 = vmatprep.subr.mxu0 0.0
      %4757 = vmatpush2.msra.mxu0 0.0
      %4758 = vmatprep.subr.mxu0 0.0
      %4759 = vmatpush2.msra.mxu0 0.0
      %4760 = vmatprep.subr.mxu0 0.0
      %4761 = vmatpush2.msra.mxu0 0.0
      %4762 = vmatprep.subr.mxu0 0.0
      %4763 = vmatpush2.msra.mxu0 0.0
      %4764 = vmatprep.subr.mxu0 0.0
      %4765 = vmatpush2.msra.mxu0 0.0
      %4766 = vmatprep.subr.mxu0 0.0
      %4767 = vmatpush2.msra.mxu0 0.0
      %4768 = vmatprep.mubr.f32.mxu0 0.0
      %4769 = vmatmul.mubr.f32.gmra.mxu0 %v4681
      %v4770 = vpop.f32.mrf.mxu0
      %v4771 = vadd.f32 0.0, %v4770
      %v4772 = vpop.f32.mrf.mxu0
      %4773 = vmatprep.mubr.f32.mxu0 0.0
      %4774 = vmatmul.mubr.f32.gmra.mxu0 %v4684
      %v4775 = vpop.f32.mrf.mxu0
      %v4776 = vadd.f32 0.0, %v4775
      %v4777 = vpop.f32.mrf.mxu0
      %4778 = vmatprep.mubr.f32.mxu0 0.0
      %4779 = vmatmul.mubr.f32.gmra.mxu0 %v4687
      %v4780 = vpop.f32.mrf.mxu0
      %v4781 = vadd.f32 0.0, %v4780
      %v4782 = vpop.f32.mrf.mxu0
      %4783 = vmatprep.mubr.f32.mxu0 0.0
      %4784 = vmatmul.mubr.f32.gmra.mxu0 %v4690
      %v4785 = vpop.f32.mrf.mxu0
      %v4786 = vadd.f32 0.0, %v4785
      %v4787 = vpop.f32.mrf.mxu0
      %4788 = vmatprep.mubr.f32.mxu0 0.0
      %4789 = vmatmul.mubr.f32.gmra.mxu0 %v4693
      %v4790 = vpop.f32.mrf.mxu0
      %v4791 = vadd.f32 0.0, %v4790
      %v4792 = vpop.f32.mrf.mxu0
      %4793 = vmatprep.mubr.f32.mxu0 0.0
      %4794 = vmatmul.mubr.f32.gmra.mxu0 %v4696
      %v4795 = vpop.f32.mrf.mxu0
      %v4796 = vadd.f32 0.0, %v4795
      %v4797 = vpop.f32.mrf.mxu0
      %4798 = vmatprep.mubr.f32.mxu0 0.0
      %4799 = vmatmul.mubr.f32.gmra.mxu0 %v4699
      %v4800 = vpop.f32.mrf.mxu0
      %v4801 = vadd.f32 0.0, %v4800
      %v4802 = vpop.f32.mrf.mxu0
      %4803 = vmatprep.mubr.f32.mxu0 0.0
      %4804 = vmatmul.mubr.f32.gmra.mxu0 %v4702
      %v4805 = vpop.f32.mrf.mxu0
      %v4806 = vadd.f32 0.0, %v4805
      %v4807 = vpop.f32.mrf.mxu0
      %4808 = vdwg.mxu0
      %v4809 = vadd.f32 %v3869, %v4771
      %v4810 = vadd.f32 %v3870, %v4776
      %v4811 = vadd.f32 %v3871, %v4781
      %v4812 = vadd.f32 %v3872, %v4786
      %v4813 = vadd.f32 %v3873, %v4791
      %v4814 = vadd.f32 %v3874, %v4796
      %v4815 = vadd.f32 %v3875, %v4801
      %v4816 = vadd.f32 %v3876, %v4806
      %v4817 = vadd.f32 %v584, %v4809
      %v4818 = vadd.f32 %v585, %v4810
      %v4819 = vadd.f32 %v586, %v4811
      %v4820 = vadd.f32 %v587, %v4812
      %v4821 = vadd.f32 %v588, %v4813
      %v4822 = vadd.f32 %v589, %v4814
      %v4823 = vadd.f32 %v590, %v4815
      %v4824 = vadd.f32 %v591, %v4816
      %v4825 = vld [vmem:[%s11] sm:$0x1]
      %v4827 = vlaneseq
      %v4828 = vshrl.u32 %v4827, 7
      %v4829 = vsub.s32 0, %v4828
      %v4830 = vrot.slane %v4825, %v4829
      %v4832 = vadd.f32 %v4817, %v4830
      %v4833 = vadd.f32 %v4818, %v4830
      %v4834 = vadd.f32 %v4819, %v4830
      %v4835 = vadd.f32 %v4820, %v4830
      %v4836 = vadd.f32 %v4821, %v4830
      %v4837 = vadd.f32 %v4822, %v4830
      %v4838 = vadd.f32 %v4823, %v4830
      %v4839 = vadd.f32 %v4824, %v4830
      %v4840 = vld [vmem:[%s12] sm:$0x1]
      %v4841 = vld [vmem:[%s13] sm:$0x1]
      %v4842 = vsel %vm594, %v4832, 0.0
      %4843 = vadd.xlane.f32.xlu0 %v4842
      %v4844 = vpop.xlane.xlu0 %4843
      %v4845 = vsel %vm594, %v4833, 0.0
      %4846 = vadd.xlane.f32.xlu0 %v4845
      %v4847 = vpop.xlane.xlu0 %4846
      %v4848 = vsel %vm594, %v4834, 0.0
      %4849 = vadd.xlane.f32.xlu0 %v4848
      %v4850 = vpop.xlane.xlu0 %4849
      %v4851 = vsel %vm594, %v4835, 0.0
      %4852 = vadd.xlane.f32.xlu0 %v4851
      %v4853 = vpop.xlane.xlu0 %4852
      %v4854 = vsel %vm594, %v4836, 0.0
      %4855 = vadd.xlane.f32.xlu0 %v4854
      %v4856 = vpop.xlane.xlu0 %4855
      %v4857 = vsel %vm594, %v4837, 0.0
      %4858 = vadd.xlane.f32.xlu0 %v4857
      %v4859 = vpop.xlane.xlu0 %4858
      %v4860 = vsel %vm594, %v4838, 0.0
      %4861 = vadd.xlane.f32.xlu0 %v4860
      %v4862 = vpop.xlane.xlu0 %4861
      %v4863 = vsel %vm594, %v4839, 0.0
      %4864 = vadd.xlane.f32.xlu0 %v4863
      %v4865 = vpop.xlane.xlu0 %4864
      %v4866 = vmul.f32 %v4844, %v619
      %v4867 = vmul.f32 %v4847, %v619
      %v4868 = vmul.f32 %v4850, %v619
      %v4869 = vmul.f32 %v4853, %v619
      %v4870 = vmul.f32 %v4856, %v619
      %v4871 = vmul.f32 %v4859, %v619
      %v4872 = vmul.f32 %v4862, %v619
      %v4873 = vmul.f32 %v4865, %v619
      %v4874 = vsub.f32 %v4832, %v4866
      %v4875 = vsub.f32 %v4833, %v4867
      %v4876 = vsub.f32 %v4834, %v4868
      %v4877 = vsub.f32 %v4835, %v4869
      %v4878 = vsub.f32 %v4836, %v4870
      %v4879 = vsub.f32 %v4837, %v4871
      %v4880 = vsub.f32 %v4838, %v4872
      %v4881 = vsub.f32 %v4839, %v4873
      %v4882 = vmul.f32 %v4874, %v4874
      %v4883 = vmul.f32 %v4875, %v4875
      %v4884 = vmul.f32 %v4876, %v4876
      %v4885 = vmul.f32 %v4877, %v4877
      %v4886 = vmul.f32 %v4878, %v4878
      %v4887 = vmul.f32 %v4879, %v4879
      %v4888 = vmul.f32 %v4880, %v4880
      %v4889 = vmul.f32 %v4881, %v4881
      %v4890 = vsel %vm594, %v4882, 0.0
      %4891 = vadd.xlane.f32.xlu0 %v4890
      %v4892 = vpop.xlane.xlu0 %4891
      %v4893 = vsel %vm594, %v4883, 0.0
      %4894 = vadd.xlane.f32.xlu0 %v4893
      %v4895 = vpop.xlane.xlu0 %4894
      %v4896 = vsel %vm594, %v4884, 0.0
      %4897 = vadd.xlane.f32.xlu0 %v4896
      %v4898 = vpop.xlane.xlu0 %4897
      %v4899 = vsel %vm594, %v4885, 0.0
      %4900 = vadd.xlane.f32.xlu0 %v4899
      %v4901 = vpop.xlane.xlu0 %4900
      %v4902 = vsel %vm594, %v4886, 0.0
      %4903 = vadd.xlane.f32.xlu0 %v4902
      %v4904 = vpop.xlane.xlu0 %4903
      %v4905 = vsel %vm594, %v4887, 0.0
      %4906 = vadd.xlane.f32.xlu0 %v4905
      %v4907 = vpop.xlane.xlu0 %4906
      %v4908 = vsel %vm594, %v4888, 0.0
      %4909 = vadd.xlane.f32.xlu0 %v4908
      %v4910 = vpop.xlane.xlu0 %4909
      %v4911 = vsel %vm594, %v4889, 0.0
      %4912 = vadd.xlane.f32.xlu0 %v4911
      %v4913 = vpop.xlane.xlu0 %4912
      %v4914 = vmul.f32 %v4892, %v619
      %v4915 = vmul.f32 %v4895, %v619
      %v4916 = vmul.f32 %v4898, %v619
      %v4917 = vmul.f32 %v4901, %v619
      %v4918 = vmul.f32 %v4904, %v619
      %v4919 = vmul.f32 %v4907, %v619
      %v4920 = vmul.f32 %v4910, %v619
      %v4921 = vmul.f32 %v4913, %v619
      %v4922 = vadd.f32 %v4914, 1e-05
      %v4923 = vadd.f32 %v4915, 1e-05
      %v4924 = vadd.f32 %v4916, 1e-05
      %v4925 = vadd.f32 %v4917, 1e-05
      %v4926 = vadd.f32 %v4918, 1e-05
      %v4927 = vadd.f32 %v4919, 1e-05
      %v4928 = vadd.f32 %v4920, 1e-05
      %v4929 = vadd.f32 %v4921, 1e-05
      %v4930 = vrsqrt.pop %v4922
      %v4931 = vrsqrt.pop %v4923
      %v4932 = vrsqrt.pop %v4924
      %v4933 = vrsqrt.pop %v4925
      %v4934 = vrsqrt.pop %v4926
      %v4935 = vrsqrt.pop %v4927
      %v4936 = vrsqrt.pop %v4928
      %v4937 = vrsqrt.pop %v4929
      %v4938 = vmul.f32 %v4874, %v4930
      %v4939 = vmul.f32 %v4875, %v4931
      %v4940 = vmul.f32 %v4876, %v4932
      %v4941 = vmul.f32 %v4877, %v4933
      %v4942 = vmul.f32 %v4878, %v4934
      %v4943 = vmul.f32 %v4879, %v4935
      %v4944 = vmul.f32 %v4880, %v4936
      %v4945 = vmul.f32 %v4881, %v4937
      %v4947 = vlaneseq
      %v4948 = vshrl.u32 %v4947, 7
      %v4949 = vsub.s32 0, %v4948
      %v4950 = vrot.slane %v4840, %v4949
      %v4952 = vmul.f32 %v4938, %v4950
      %v4953 = vmul.f32 %v4939, %v4950
      %v4954 = vmul.f32 %v4940, %v4950
      %v4955 = vmul.f32 %v4941, %v4950
      %v4956 = vmul.f32 %v4942, %v4950
      %v4957 = vmul.f32 %v4943, %v4950
      %v4958 = vmul.f32 %v4944, %v4950
      %v4959 = vmul.f32 %v4945, %v4950
      %v4961 = vlaneseq
      %v4962 = vshrl.u32 %v4961, 7
      %v4963 = vsub.s32 0, %v4962
      %v4964 = vrot.slane %v4841, %v4963
      %v4966 = vadd.f32 %v4952, %v4964
      %v4967 = vadd.f32 %v4953, %v4964
      %v4968 = vadd.f32 %v4954, %v4964
      %v4969 = vadd.f32 %v4955, %v4964
      %v4970 = vadd.f32 %v4956, %v4964
      %v4971 = vadd.f32 %v4957, %v4964
      %v4972 = vadd.f32 %v4958, %v4964
      %v4973 = vadd.f32 %v4959, %v4964
      %v4974 = vld [vmem:[%s14] sm:$0xff]
      %v4975 = vld [vmem:[%s14 + $0x8] sm:$0xff]
      %v4976 = vld [vmem:[%s14 + $0x10] sm:$0xff]
      %v4977 = vld [vmem:[%s14 + $0x18] sm:$0xff]
      %v4978 = vld [vmem:[%s15] sm:$0x1]
      %v4980 = vlaneseq
      %v4981 = vshrl.u32 %v4980, 7
      %v4982 = vsub.s32 0, %v4981
      %v4983 = vrot.slane %v4978, %v4982
      %v4986 = vsel %vm594, %v4966, 0
      %v4989 = vsel %vm594, %v4967, 0
      %v4992 = vsel %vm594, %v4968, 0
      %v4995 = vsel %vm594, %v4969, 0
      %v4998 = vsel %vm594, %v4970, 0
      %v5001 = vsel %vm594, %v4971, 0
      %v5004 = vsel %vm594, %v4972, 0
      %v5007 = vsel %vm594, %v4973, 0
      %5009 = vmatprep.subr.mxu0 0.0
      %5010 = vmatpush1.msra.mxu0 0.0
      %5011 = vmatprep.subr.mxu0 0.0
      %5012 = vmatpush1.msra.mxu0 0.0
      %5013 = vmatprep.subr.mxu0 0.0
      %5014 = vmatpush1.msra.mxu0 0.0
      %5015 = vmatprep.subr.mxu0 0.0
      %5016 = vmatpush1.msra.mxu0 0.0
      %5017 = vmatprep.subr.mxu0 0.0
      %5018 = vmatpush1.msra.mxu0 0.0
      %5019 = vmatprep.subr.mxu0 0.0
      %5020 = vmatpush1.msra.mxu0 0.0
      %5021 = vmatprep.subr.mxu0 0.0
      %5022 = vmatpush1.msra.mxu0 0.0
      %5023 = vmatprep.subr.mxu0 0.0
      %5024 = vmatpush1.msra.mxu0 0.0
      %5025 = vmatprep.subr.mxu0 0.0
      %5026 = vmatpush1.msra.mxu0 0.0
      %5027 = vmatprep.subr.mxu0 0.0
      %5028 = vmatpush1.msra.mxu0 0.0
      %5029 = vmatprep.subr.mxu0 0.0
      %5030 = vmatpush1.msra.mxu0 0.0
      %5031 = vmatprep.subr.mxu0 0.0
      %5032 = vmatpush1.msra.mxu0 0.0
      %5033 = vmatprep.subr.mxu0 0.0
      %5034 = vmatpush1.msra.mxu0 %v4977
      %5035 = vmatprep.subr.mxu0 0.0
      %5036 = vmatpush1.msra.mxu0 %v4976
      %5037 = vmatprep.subr.mxu0 0.0
      %5038 = vmatpush1.msra.mxu0 %v4975
      %5039 = vmatprep.subr.mxu0 0.0
      %5040 = vmatpush1.msra.mxu0 %v4974
      %5041 = vmatprep.subr.mxu0 0.0
      %5042 = vmatpush2.msra.mxu0 0.0
      %5043 = vmatprep.subr.mxu0 0.0
      %5044 = vmatpush2.msra.mxu0 0.0
      %5045 = vmatprep.subr.mxu0 0.0
      %5046 = vmatpush2.msra.mxu0 0.0
      %5047 = vmatprep.subr.mxu0 0.0
      %5048 = vmatpush2.msra.mxu0 0.0
      %5049 = vmatprep.subr.mxu0 0.0
      %5050 = vmatpush2.msra.mxu0 0.0
      %5051 = vmatprep.subr.mxu0 0.0
      %5052 = vmatpush2.msra.mxu0 0.0
      %5053 = vmatprep.subr.mxu0 0.0
      %5054 = vmatpush2.msra.mxu0 0.0
      %5055 = vmatprep.subr.mxu0 0.0
      %5056 = vmatpush2.msra.mxu0 0.0
      %5057 = vmatprep.subr.mxu0 0.0
      %5058 = vmatpush2.msra.mxu0 0.0
      %5059 = vmatprep.subr.mxu0 0.0
      %5060 = vmatpush2.msra.mxu0 0.0
      %5061 = vmatprep.subr.mxu0 0.0
      %5062 = vmatpush2.msra.mxu0 0.0
      %5063 = vmatprep.subr.mxu0 0.0
      %5064 = vmatpush2.msra.mxu0 0.0
      %5065 = vmatprep.subr.mxu0 0.0
      %5066 = vmatpush2.msra.mxu0 0.0
      %5067 = vmatprep.subr.mxu0 0.0
      %5068 = vmatpush2.msra.mxu0 0.0
      %5069 = vmatprep.subr.mxu0 0.0
      %5070 = vmatpush2.msra.mxu0 0.0
      %5071 = vmatprep.subr.mxu0 0.0
      %5072 = vmatpush2.msra.mxu0 0.0
      %5073 = vmatprep.mubr.f32.mxu0 0.0
      %5074 = vmatmul.mubr.f32.gmra.mxu0 %v4986
      %v5075 = vpop.f32.mrf.mxu0
      %v5076 = vadd.f32 %v4983, %v5075
      %v5077 = vpop.f32.mrf.mxu0
      %5078 = vmatprep.mubr.f32.mxu0 0.0
      %5079 = vmatmul.mubr.f32.gmra.mxu0 %v4989
      %v5080 = vpop.f32.mrf.mxu0
      %v5081 = vadd.f32 %v4983, %v5080
      %v5082 = vpop.f32.mrf.mxu0
      %5083 = vmatprep.mubr.f32.mxu0 0.0
      %5084 = vmatmul.mubr.f32.gmra.mxu0 %v4992
      %v5085 = vpop.f32.mrf.mxu0
      %v5086 = vadd.f32 %v4983, %v5085
      %v5087 = vpop.f32.mrf.mxu0
      %5088 = vmatprep.mubr.f32.mxu0 0.0
      %5089 = vmatmul.mubr.f32.gmra.mxu0 %v4995
      %v5090 = vpop.f32.mrf.mxu0
      %v5091 = vadd.f32 %v4983, %v5090
      %v5092 = vpop.f32.mrf.mxu0
      %5093 = vmatprep.mubr.f32.mxu0 0.0
      %5094 = vmatmul.mubr.f32.gmra.mxu0 %v4998
      %v5095 = vpop.f32.mrf.mxu0
      %v5096 = vadd.f32 %v4983, %v5095
      %v5097 = vpop.f32.mrf.mxu0
      %5098 = vmatprep.mubr.f32.mxu0 0.0
      %5099 = vmatmul.mubr.f32.gmra.mxu0 %v5001
      %v5100 = vpop.f32.mrf.mxu0
      %v5101 = vadd.f32 %v4983, %v5100
      %v5102 = vpop.f32.mrf.mxu0
      %5103 = vmatprep.mubr.f32.mxu0 0.0
      %5104 = vmatmul.mubr.f32.gmra.mxu0 %v5004
      %v5105 = vpop.f32.mrf.mxu0
      %v5106 = vadd.f32 %v4983, %v5105
      %v5107 = vpop.f32.mrf.mxu0
      %5108 = vmatprep.mubr.f32.mxu0 0.0
      %5109 = vmatmul.mubr.f32.gmra.mxu0 %v5007
      %v5110 = vpop.f32.mrf.mxu0
      %v5111 = vadd.f32 %v4983, %v5110
      %v5112 = vpop.f32.mrf.mxu0
      %5113 = vdwg.mxu0
      %v5114 = vmul.f32 %v5076, 0.5
      %v5115 = vmul.f32 %v5081, 0.5
      %v5116 = vmul.f32 %v5086, 0.5
      %v5117 = vmul.f32 %v5091, 0.5
      %v5118 = vmul.f32 %v5096, 0.5
      %v5119 = vmul.f32 %v5101, 0.5
      %v5120 = vmul.f32 %v5106, 0.5
      %v5121 = vmul.f32 %v5111, 0.5
      %v5122 = vmul.f32 %v5076, 0.70710677
      %v5123 = vmul.f32 %v5081, 0.70710677
      %v5124 = vmul.f32 %v5086, 0.70710677
      %v5125 = vmul.f32 %v5091, 0.70710677
      %v5126 = vmul.f32 %v5096, 0.70710677
      %v5127 = vmul.f32 %v5101, 0.70710677
      %v5128 = vmul.f32 %v5106, 0.70710677
      %v5129 = vmul.f32 %v5111, 0.70710677
      %vm5130 = vcmp.ge.f32.partialorder %v5122, 0.0
      %vm5131 = vcmp.ge.f32.partialorder %v5123, 0.0
      %vm5132 = vcmp.ge.f32.partialorder %v5124, 0.0
      %vm5133 = vcmp.ge.f32.partialorder %v5125, 0.0
      %vm5134 = vcmp.ge.f32.partialorder %v5126, 0.0
      %vm5135 = vcmp.ge.f32.partialorder %v5127, 0.0
      %vm5136 = vcmp.ge.f32.partialorder %v5128, 0.0
      %vm5137 = vcmp.ge.f32.partialorder %v5129, 0.0
      %v5138 = vsel %vm5130, 1.0, -1.0
      %v5139 = vsel %vm5131, 1.0, -1.0
      %v5140 = vsel %vm5132, 1.0, -1.0
      %v5141 = vsel %vm5133, 1.0, -1.0
      %v5142 = vsel %vm5134, 1.0, -1.0
      %v5143 = vsel %vm5135, 1.0, -1.0
      %v5144 = vsel %vm5136, 1.0, -1.0
      %v5145 = vsel %vm5137, 1.0, -1.0
      %v5146 = vand.u32 2147483647, %v5122
      %v5147 = vand.u32 2147483647, %v5123
      %v5148 = vand.u32 2147483647, %v5124
      %v5149 = vand.u32 2147483647, %v5125
      %v5150 = vand.u32 2147483647, %v5126
      %v5151 = vand.u32 2147483647, %v5127
      %v5152 = vand.u32 2147483647, %v5128
      %v5153 = vand.u32 2147483647, %v5129
      %v5154 = vmul.f32 %v5146, 0.3275911
      %v5155 = vmul.f32 %v5147, 0.3275911
      %v5156 = vmul.f32 %v5148, 0.3275911
      %v5157 = vmul.f32 %v5149, 0.3275911
      %v5158 = vmul.f32 %v5150, 0.3275911
      %v5159 = vmul.f32 %v5151, 0.3275911
      %v5160 = vmul.f32 %v5152, 0.3275911
      %v5161 = vmul.f32 %v5153, 0.3275911
      %v5162 = vadd.f32 %v5154, 1.0
      %v5163 = vadd.f32 %v5155, 1.0
      %v5164 = vadd.f32 %v5156, 1.0
      %v5165 = vadd.f32 %v5157, 1.0
      %v5166 = vadd.f32 %v5158, 1.0
      %v5167 = vadd.f32 %v5159, 1.0
      %v5168 = vadd.f32 %v5160, 1.0
      %v5169 = vadd.f32 %v5161, 1.0
      %v5170 = vrcp.pop %v5162
      %v5171 = vmul.f32 1.0, %v5170
      %v5172 = vrcp.pop %v5163
      %v5173 = vmul.f32 1.0, %v5172
      %v5174 = vrcp.pop %v5164
      %v5175 = vmul.f32 1.0, %v5174
      %v5176 = vrcp.pop %v5165
      %v5177 = vmul.f32 1.0, %v5176
      %v5178 = vrcp.pop %v5166
      %v5179 = vmul.f32 1.0, %v5178
      %v5180 = vrcp.pop %v5167
      %v5181 = vmul.f32 1.0, %v5180
      %v5182 = vrcp.pop %v5168
      %v5183 = vmul.f32 1.0, %v5182
      %v5184 = vrcp.pop %v5169
      %v5185 = vmul.f32 1.0, %v5184
      %v5186 = vmul.f32 %v5171, 1.0614054
      %v5187 = vmul.f32 %v5173, 1.0614054
      %v5188 = vmul.f32 %v5175, 1.0614054
      %v5189 = vmul.f32 %v5177, 1.0614054
      %v5190 = vmul.f32 %v5179, 1.0614054
      %v5191 = vmul.f32 %v5181, 1.0614054
      %v5192 = vmul.f32 %v5183, 1.0614054
      %v5193 = vmul.f32 %v5185, 1.0614054
      %v5194 = vadd.f32 %v5186, -1.4531521
      %v5195 = vadd.f32 %v5187, -1.4531521
      %v5196 = vadd.f32 %v5188, -1.4531521
      %v5197 = vadd.f32 %v5189, -1.4531521
      %v5198 = vadd.f32 %v5190, -1.4531521
      %v5199 = vadd.f32 %v5191, -1.4531521
      %v5200 = vadd.f32 %v5192, -1.4531521
      %v5201 = vadd.f32 %v5193, -1.4531521
      %v5202 = vmul.f32 %v5194, %v5171
      %v5203 = vmul.f32 %v5195, %v5173
      %v5204 = vmul.f32 %v5196, %v5175
      %v5205 = vmul.f32 %v5197, %v5177
      %v5206 = vmul.f32 %v5198, %v5179
      %v5207 = vmul.f32 %v5199, %v5181
      %v5208 = vmul.f32 %v5200, %v5183
      %v5209 = vmul.f32 %v5201, %v5185
      %v5210 = vadd.f32 %v5202, 1.4214138
      %v5211 = vadd.f32 %v5203, 1.4214138
      %v5212 = vadd.f32 %v5204, 1.4214138
      %v5213 = vadd.f32 %v5205, 1.4214138
      %v5214 = vadd.f32 %v5206, 1.4214138
      %v5215 = vadd.f32 %v5207, 1.4214138
      %v5216 = vadd.f32 %v5208, 1.4214138
      %v5217 = vadd.f32 %v5209, 1.4214138
      %v5218 = vmul.f32 %v5210, %v5171
      %v5219 = vmul.f32 %v5211, %v5173
      %v5220 = vmul.f32 %v5212, %v5175
      %v5221 = vmul.f32 %v5213, %v5177
      %v5222 = vmul.f32 %v5214, %v5179
      %v5223 = vmul.f32 %v5215, %v5181
      %v5224 = vmul.f32 %v5216, %v5183
      %v5225 = vmul.f32 %v5217, %v5185
      %v5226 = vadd.f32 %v5218, -0.28449672
      %v5227 = vadd.f32 %v5219, -0.28449672
      %v5228 = vadd.f32 %v5220, -0.28449672
      %v5229 = vadd.f32 %v5221, -0.28449672
      %v5230 = vadd.f32 %v5222, -0.28449672
      %v5231 = vadd.f32 %v5223, -0.28449672
      %v5232 = vadd.f32 %v5224, -0.28449672
      %v5233 = vadd.f32 %v5225, -0.28449672
      %v5234 = vmul.f32 %v5226, %v5171
      %v5235 = vmul.f32 %v5227, %v5173
      %v5236 = vmul.f32 %v5228, %v5175
      %v5237 = vmul.f32 %v5229, %v5177
      %v5238 = vmul.f32 %v5230, %v5179
      %v5239 = vmul.f32 %v5231, %v5181
      %v5240 = vmul.f32 %v5232, %v5183
      %v5241 = vmul.f32 %v5233, %v5185
      %v5242 = vadd.f32 %v5234, 0.2548296
      %v5243 = vadd.f32 %v5235, 0.2548296
      %v5244 = vadd.f32 %v5236, 0.2548296
      %v5245 = vadd.f32 %v5237, 0.2548296
      %v5246 = vadd.f32 %v5238, 0.2548296
      %v5247 = vadd.f32 %v5239, 0.2548296
      %v5248 = vadd.f32 %v5240, 0.2548296
      %v5249 = vadd.f32 %v5241, 0.2548296
      %v5250 = vmul.f32 %v5242, %v5171
      %v5251 = vmul.f32 %v5243, %v5173
      %v5252 = vmul.f32 %v5244, %v5175
      %v5253 = vmul.f32 %v5245, %v5177
      %v5254 = vmul.f32 %v5246, %v5179
      %v5255 = vmul.f32 %v5247, %v5181
      %v5256 = vmul.f32 %v5248, %v5183
      %v5257 = vmul.f32 %v5249, %v5185
      %v5258 = vsub.f32 0.0, %v5146
      %v5259 = vsub.f32 0.0, %v5147
      %v5260 = vsub.f32 0.0, %v5148
      %v5261 = vsub.f32 0.0, %v5149
      %v5262 = vsub.f32 0.0, %v5150
      %v5263 = vsub.f32 0.0, %v5151
      %v5264 = vsub.f32 0.0, %v5152
      %v5265 = vsub.f32 0.0, %v5153
      %v5266 = vmul.f32 %v5258, %v5146
      %v5267 = vmul.f32 %v5259, %v5147
      %v5268 = vmul.f32 %v5260, %v5148
      %v5269 = vmul.f32 %v5261, %v5149
      %v5270 = vmul.f32 %v5262, %v5150
      %v5271 = vmul.f32 %v5263, %v5151
      %v5272 = vmul.f32 %v5264, %v5152
      %v5273 = vmul.f32 %v5265, %v5153
      %v5274 = vmul.f32 %v5266, 1.442695
      %v5275 = vpow.pop %v5274
      %v5276 = vmul.f32 %v5267, 1.442695
      %v5277 = vpow.pop %v5276
      %v5278 = vmul.f32 %v5268, 1.442695
      %v5279 = vpow.pop %v5278
      %v5280 = vmul.f32 %v5269, 1.442695
      %v5281 = vpow.pop %v5280
      %v5282 = vmul.f32 %v5270, 1.442695
      %v5283 = vpow.pop %v5282
      %v5284 = vmul.f32 %v5271, 1.442695
      %v5285 = vpow.pop %v5284
      %v5286 = vmul.f32 %v5272, 1.442695
      %v5287 = vpow.pop %v5286
      %v5288 = vmul.f32 %v5273, 1.442695
      %v5289 = vpow.pop %v5288
      %v5290 = vmul.f32 %v5250, %v5275
      %v5291 = vmul.f32 %v5251, %v5277
      %v5292 = vmul.f32 %v5252, %v5279
      %v5293 = vmul.f32 %v5253, %v5281
      %v5294 = vmul.f32 %v5254, %v5283
      %v5295 = vmul.f32 %v5255, %v5285
      %v5296 = vmul.f32 %v5256, %v5287
      %v5297 = vmul.f32 %v5257, %v5289
      %v5298 = vsub.f32 1.0, %v5290
      %v5299 = vsub.f32 1.0, %v5291
      %v5300 = vsub.f32 1.0, %v5292
      %v5301 = vsub.f32 1.0, %v5293
      %v5302 = vsub.f32 1.0, %v5294
      %v5303 = vsub.f32 1.0, %v5295
      %v5304 = vsub.f32 1.0, %v5296
      %v5305 = vsub.f32 1.0, %v5297
      %v5306 = vmul.f32 %v5138, %v5298
      %v5307 = vmul.f32 %v5139, %v5299
      %v5308 = vmul.f32 %v5140, %v5300
      %v5309 = vmul.f32 %v5141, %v5301
      %v5310 = vmul.f32 %v5142, %v5302
      %v5311 = vmul.f32 %v5143, %v5303
      %v5312 = vmul.f32 %v5144, %v5304
      %v5313 = vmul.f32 %v5145, %v5305
      %v5314 = vadd.f32 %v5306, 1.0
      %v5315 = vadd.f32 %v5307, 1.0
      %v5316 = vadd.f32 %v5308, 1.0
      %v5317 = vadd.f32 %v5309, 1.0
      %v5318 = vadd.f32 %v5310, 1.0
      %v5319 = vadd.f32 %v5311, 1.0
      %v5320 = vadd.f32 %v5312, 1.0
      %v5321 = vadd.f32 %v5313, 1.0
      %v5322 = vmul.f32 %v5114, %v5314
      %v5323 = vmul.f32 %v5115, %v5315
      %v5324 = vmul.f32 %v5116, %v5316
      %v5325 = vmul.f32 %v5117, %v5317
      %v5326 = vmul.f32 %v5118, %v5318
      %v5327 = vmul.f32 %v5119, %v5319
      %v5328 = vmul.f32 %v5120, %v5320
      %v5329 = vmul.f32 %v5121, %v5321
      %v5330 = vld [vmem:[%s16] sm:$0xff]
      %v5331 = vld [vmem:[%s16 + $0x8] sm:$0xff]
      %v5332 = vld [vmem:[%s16 + $0x10] sm:$0xff]
      %v5333 = vld [vmem:[%s16 + $0x18] sm:$0xff]
      %v5334 = vld [vmem:[%s16 + $0x20] sm:$0xff]
      %v5335 = vld [vmem:[%s16 + $0x28] sm:$0xff]
      %v5336 = vld [vmem:[%s16 + $0x30] sm:$0xff]
      %v5337 = vld [vmem:[%s16 + $0x38] sm:$0xff]
      %v5338 = vld [vmem:[%s16 + $0x40] sm:$0xff]
      %v5339 = vld [vmem:[%s16 + $0x48] sm:$0xff]
      %v5340 = vld [vmem:[%s16 + $0x50] sm:$0xff]
      %v5341 = vld [vmem:[%s16 + $0x58] sm:$0xff]
      %v5342 = vld [vmem:[%s16 + $0x60] sm:$0xff]
      %v5343 = vld [vmem:[%s16 + $0x68] sm:$0xff]
      %v5344 = vld [vmem:[%s16 + $0x70] sm:$0xff]
      %v5345 = vld [vmem:[%s16 + $0x78] sm:$0xff]
      %v5346 = vld [vmem:[%s17] sm:$0x1]
      %v5348 = vlaneseq
      %v5349 = vshrl.u32 %v5348, 7
      %v5350 = vsub.s32 0, %v5349
      %v5351 = vrot.slane %v5346, %v5350
      %5353 = vmatprep.subr.mxu0 0.0
      %5354 = vmatpush1.msra.mxu0 %v5345
      %5355 = vmatprep.subr.mxu0 0.0
      %5356 = vmatpush1.msra.mxu0 %v5344
      %5357 = vmatprep.subr.mxu0 0.0
      %5358 = vmatpush1.msra.mxu0 %v5343
      %5359 = vmatprep.subr.mxu0 0.0
      %5360 = vmatpush1.msra.mxu0 %v5342
      %5361 = vmatprep.subr.mxu0 0.0
      %5362 = vmatpush1.msra.mxu0 %v5341
      %5363 = vmatprep.subr.mxu0 0.0
      %5364 = vmatpush1.msra.mxu0 %v5340
      %5365 = vmatprep.subr.mxu0 0.0
      %5366 = vmatpush1.msra.mxu0 %v5339
      %5367 = vmatprep.subr.mxu0 0.0
      %5368 = vmatpush1.msra.mxu0 %v5338
      %5369 = vmatprep.subr.mxu0 0.0
      %5370 = vmatpush1.msra.mxu0 %v5337
      %5371 = vmatprep.subr.mxu0 0.0
      %5372 = vmatpush1.msra.mxu0 %v5336
      %5373 = vmatprep.subr.mxu0 0.0
      %5374 = vmatpush1.msra.mxu0 %v5335
      %5375 = vmatprep.subr.mxu0 0.0
      %5376 = vmatpush1.msra.mxu0 %v5334
      %5377 = vmatprep.subr.mxu0 0.0
      %5378 = vmatpush1.msra.mxu0 %v5333
      %5379 = vmatprep.subr.mxu0 0.0
      %5380 = vmatpush1.msra.mxu0 %v5332
      %5381 = vmatprep.subr.mxu0 0.0
      %5382 = vmatpush1.msra.mxu0 %v5331
      %5383 = vmatprep.subr.mxu0 0.0
      %5384 = vmatpush1.msra.mxu0 %v5330
      %5385 = vmatprep.subr.mxu0 0.0
      %5386 = vmatpush2.msra.mxu0 0.0
      %5387 = vmatprep.subr.mxu0 0.0
      %5388 = vmatpush2.msra.mxu0 0.0
      %5389 = vmatprep.subr.mxu0 0.0
      %5390 = vmatpush2.msra.mxu0 0.0
      %5391 = vmatprep.subr.mxu0 0.0
      %5392 = vmatpush2.msra.mxu0 0.0
      %5393 = vmatprep.subr.mxu0 0.0
      %5394 = vmatpush2.msra.mxu0 0.0
      %5395 = vmatprep.subr.mxu0 0.0
      %5396 = vmatpush2.msra.mxu0 0.0
      %5397 = vmatprep.subr.mxu0 0.0
      %5398 = vmatpush2.msra.mxu0 0.0
      %5399 = vmatprep.subr.mxu0 0.0
      %5400 = vmatpush2.msra.mxu0 0.0
      %5401 = vmatprep.subr.mxu0 0.0
      %5402 = vmatpush2.msra.mxu0 0.0
      %5403 = vmatprep.subr.mxu0 0.0
      %5404 = vmatpush2.msra.mxu0 0.0
      %5405 = vmatprep.subr.mxu0 0.0
      %5406 = vmatpush2.msra.mxu0 0.0
      %5407 = vmatprep.subr.mxu0 0.0
      %5408 = vmatpush2.msra.mxu0 0.0
      %5409 = vmatprep.subr.mxu0 0.0
      %5410 = vmatpush2.msra.mxu0 0.0
      %5411 = vmatprep.subr.mxu0 0.0
      %5412 = vmatpush2.msra.mxu0 0.0
      %5413 = vmatprep.subr.mxu0 0.0
      %5414 = vmatpush2.msra.mxu0 0.0
      %5415 = vmatprep.subr.mxu0 0.0
      %5416 = vmatpush2.msra.mxu0 0.0
      %5417 = vmatprep.mubr.f32.mxu0 0.0
      %5418 = vmatmul.mubr.f32.gmra.mxu0 %v5322
      %v5419 = vpop.f32.mrf.mxu0
      %v5420 = vadd.f32 %v5351, %v5419
      %v5421 = vpop.f32.mrf.mxu0
      %5422 = vmatprep.mubr.f32.mxu0 0.0
      %5423 = vmatmul.mubr.f32.gmra.mxu0 %v5323
      %v5424 = vpop.f32.mrf.mxu0
      %v5425 = vadd.f32 %v5351, %v5424
      %v5426 = vpop.f32.mrf.mxu0
      %5427 = vmatprep.mubr.f32.mxu0 0.0
      %5428 = vmatmul.mubr.f32.gmra.mxu0 %v5324
      %v5429 = vpop.f32.mrf.mxu0
      %v5430 = vadd.f32 %v5351, %v5429
      %v5431 = vpop.f32.mrf.mxu0
      %5432 = vmatprep.mubr.f32.mxu0 0.0
      %5433 = vmatmul.mubr.f32.gmra.mxu0 %v5325
      %v5434 = vpop.f32.mrf.mxu0
      %v5435 = vadd.f32 %v5351, %v5434
      %v5436 = vpop.f32.mrf.mxu0
      %5437 = vmatprep.mubr.f32.mxu0 0.0
      %5438 = vmatmul.mubr.f32.gmra.mxu0 %v5326
      %v5439 = vpop.f32.mrf.mxu0
      %v5440 = vadd.f32 %v5351, %v5439
      %v5441 = vpop.f32.mrf.mxu0
      %5442 = vmatprep.mubr.f32.mxu0 0.0
      %5443 = vmatmul.mubr.f32.gmra.mxu0 %v5327
      %v5444 = vpop.f32.mrf.mxu0
      %v5445 = vadd.f32 %v5351, %v5444
      %v5446 = vpop.f32.mrf.mxu0
      %5447 = vmatprep.mubr.f32.mxu0 0.0
      %5448 = vmatmul.mubr.f32.gmra.mxu0 %v5328
      %v5449 = vpop.f32.mrf.mxu0
      %v5450 = vadd.f32 %v5351, %v5449
      %v5451 = vpop.f32.mrf.mxu0
      %5452 = vmatprep.mubr.f32.mxu0 0.0
      %5453 = vmatmul.mubr.f32.gmra.mxu0 %v5329
      %v5454 = vpop.f32.mrf.mxu0
      %v5455 = vadd.f32 %v5351, %v5454
      %v5456 = vpop.f32.mrf.mxu0
      %5457 = vdwg.mxu0
      %v5458 = vadd.f32 %v4832, %v5420
      %v5459 = vadd.f32 %v4833, %v5425
      %v5460 = vadd.f32 %v4834, %v5430
      %v5461 = vadd.f32 %v4835, %v5435
      %v5462 = vadd.f32 %v4836, %v5440
      %v5463 = vadd.f32 %v4837, %v5445
      %v5464 = vadd.f32 %v4838, %v5450
      %v5465 = vadd.f32 %v4839, %v5455
      %5466 = vst.msk [vmem:[%s582] sm:$0xff] %vm594, %v5458
      %5467 = vst.msk [vmem:[%s582 + $0x8] sm:$0xff] %vm594, %v5459
      %5468 = vst.msk [vmem:[%s582 + $0x10] sm:$0xff] %vm594, %v5460
      %5469 = vst.msk [vmem:[%s582 + $0x18] sm:$0xff] %vm594, %v5461
      %5470 = vst.msk [vmem:[%s582 + $0x20] sm:$0xff] %vm594, %v5462
      %5471 = vst.msk [vmem:[%s582 + $0x28] sm:$0xff] %vm594, %v5463
      %5472 = vst.msk [vmem:[%s582 + $0x30] sm:$0xff] %vm594, %v5464
      %5473 = vst.msk [vmem:[%s582 + $0x38] sm:$0xff] %vm594, %v5465
      %s5474 = smul.u32 4, %s29
      %p5475 = scmp.lt.s32.totalorder %s5474, 7
      %s5476 = scalar_select %p5475, %s5474, 7
      %s5477 = smul.addr %s5476, 2
      %s5478 = smul.addr %s5477, 8
      %s5479 = scalar_lea.vmem %s18, %s5478
      // Predicated region
      $region93: #{block_forward.1} parent=91 // pred_check
        %p5480 = pneg %p430
      $region94: #{block_forward.1} parent=91 // pred_check_branch
        %5482 = sbr.rel (%p5480) target = $region96
      $region95: #{block_forward.1} parent=91 // pred_region
        %s5483 = smul.u32 4, %s29
      $region96: #{block_forward.1} parent=91 // pred_fallthru
        _
    $region92: #{block_forward.1} parent=5 // pred_fallthru
      _
    %p5484 = scmp.le.s32.totalorder 2, %s24
    // Predicated region
    $region97: #{block_forward.1} parent=5 // pred_check
      %p5485 = pneg %p5484
    $region98: #{block_forward.1} parent=5 // pred_check_branch
      %5487 = sbr.rel (%p5485) target = $region100
    $region99: #{block_forward.1} parent=5 // pred_region
      %s5488 = ssub.s32 %s24, 2
      // Predicated region
      $region101: #{block_forward.1} parent=99 // pred_check
        %p5489 = pneg %p436
      $region102: #{block_forward.1} parent=99 // pred_check_branch
        %5491 = sbr.rel (%p5489) target = $region104
      $region103: #{block_forward.1} parent=99 // pred_region
        %s5492 = smul.u32 4, %s30
        %p5493 = scmp.lt.s32.totalorder %s5492, 7
        %s5494 = scalar_select %p5493, %s5492, 7
        %s5495 = smul.addr %s5494, 2
        %s5496 = smul.addr %s5495, 8
        %s5497 = scalar_lea.vmem %s18, %s5496
      $region104: #{block_forward.1} parent=99 // pred_fallthru
        _
    $region100: #{block_forward.1} parent=5 // pred_fallthru
      _
  $region6: #{block_forward.1} parent=0 // loop_footer
    %s28 = sadd.s32 1, %s24
  $region7: #{block_forward.1} parent=0 // loop_footer_branch
    %23 = sbr.rel target = $region3
  $region8: #{block_forward.1} parent=0 // loop_exit
    _

</llo_original>
